<compile_context>
chip_gen: v5e
topology: v5e:2x2
jax: 0.10.0
libtpu: 0.0.40
codegen_flags: <defaults>
</compile_context>

<pallas_src>
import jax
import jax.numpy as jnp
from jax import lax
from jax.experimental import pallas as pl
from jax.experimental.pallas import tpu as pltpu


def basic_block_kernel(x_ref, w1_ref, w2_ref, b1_ref, b2_ref, o_ref, xp_s, y_s):
    """One image per grid step, NHWC layout.

    x_ref : (1, H, W, C)   unpadded input block
    w1_ref: (3, 3*C, C)    conv1 weights, kh-major, BN1 scale folded in
    w2_ref: (3, 3*C, C)    conv2 weights, kh-major, BN2 scale folded in
    b1_ref, b2_ref: (1, C) folded BN biases (f32)
    o_ref : (1, H, W, C)   output block
    xp_s  : (H+2, W+2, C)  VMEM scratch: zero-bordered padded input
    y_s   : (H+2, W+2, C)  VMEM scratch: zero-bordered conv1 activation
    """
    _, H, W, C = o_ref.shape

    # Build the 1-pixel zero halo inside the kernel (no wrapper jnp.pad / extra
    # HBM pass).  The border stays zero; the interior is overwritten each step.
    xp_s[...] = jnp.zeros_like(xp_s)
    xp_s[pl.ds(1, H), pl.ds(1, W), :] = x_ref[0]
    y_s[...] = jnp.zeros_like(y_s)

    xp = xp_s[...]                                     # (H+2, W+2, C)

    # ---- conv1 on the HxW interior only, kw-fused taps: 3 matmuls, K = 3*C --
    acc1 = jnp.zeros((H * W, C), jnp.float32)
    for kh in range(3):
        slab = jnp.concatenate(
            [xp[kh:kh + H, kw:kw + W, :] for kw in range(3)], axis=-1)
        # slab is contiguous (H, W, 3C); merging leading dims is layout
        # preserving since W is a sublane multiple -> effectively free.
        acc1 += jnp.dot(slab.reshape(H * W, 3 * C), w1_ref[kh],
                        preferred_element_type=jnp.float32)
    y = jnp.maximum(acc1 + b1_ref[0], 0.0)             # folded BN1 bias + ReLU
    y_s[pl.ds(1, H), pl.ds(1, W), :] = y.reshape(H, W, C).astype(y_s.dtype)

    # ---- conv2 on the zero-bordered activation ------------------------------
    yv = y_s[...]
    acc2 = jnp.zeros((H * W, C), jnp.float32)
    for kh in range(3):
        slab = jnp.concatenate(
            [yv[kh:kh + H, kw:kw + W, :] for kw in range(3)], axis=-1)
        acc2 += jnp.dot(slab.reshape(H * W, 3 * C), w2_ref[kh],
                        preferred_element_type=jnp.float32)

    # folded BN2 bias + identity residual (3-D, straight from the input) + ReLU
    z = acc2.reshape(H, W, C) + b2_ref[0] + x_ref[0].astype(jnp.float32)
    o_ref[0] = jnp.maximum(z, 0.0).astype(o_ref.dtype)


def _fold_bn(gamma, beta, mean, var, eps):
    scale = gamma / jnp.sqrt(var + eps)
    bias = beta - mean * scale
    return scale, bias


def basic_block_pallas(x_nchw, p, eps=1e-5):
    N, Cin, H, W = x_nchw.shape
    Cout = p["w1"].shape[0]
    # Identity residual only (stride=1, dilation=1, downsample=None).
    assert Cin == Cout, "identity residual requires inplanes == planes"
    C = Cout

    x = jnp.transpose(x_nchw, (0, 2, 3, 1))            # NHWC, no wrapper pad

    # Fold BN scale into the conv weights (per output channel); pass bias only.
    s1, b1 = _fold_bn(p["g1"], p["be1"], p["m1"], p["v1"], eps)
    s2, b2 = _fold_bn(p["g2"], p["be2"], p["m2"], p["v2"], eps)
    # torch (Cout, Cin, 3, 3) -> (kh, kw, Cin, Cout) -> scale fold -> (3, 3C, C)
    w1k = (jnp.transpose(p["w1"], (2, 3, 1, 0)) * s1).reshape(3, 3 * C, C)
    w2k = (jnp.transpose(p["w2"], (2, 3, 1, 0)) * s2).reshape(3, 3 * C, C)
    # MXU operands in the activation dtype (cast x/weights to bf16 here for
    # production; biases / accumulators / elementwise stay f32).
    w1k = w1k.astype(x.dtype)
    w2k = w2k.astype(x.dtype)
    b1 = b1.reshape(1, C).astype(jnp.float32)
    b2 = b2.reshape(1, C).astype(jnp.float32)

    out_nhwc = pl.pallas_call(
        basic_block_kernel,
        out_shape=jax.ShapeDtypeStruct((N, H, W, C), x.dtype),
        grid_spec=pltpu.PrefetchScalarGridSpec(
            num_scalar_prefetch=0,
            grid=(N,),
            in_specs=[
                pl.BlockSpec((1, H, W, C), lambda n: (n, 0, 0, 0)),
                pl.BlockSpec((3, 3 * C, C), lambda n: (0, 0, 0)),
                pl.BlockSpec((3, 3 * C, C), lambda n: (0, 0, 0)),
                pl.BlockSpec((1, C), lambda n: (0, 0)),
                pl.BlockSpec((1, C), lambda n: (0, 0)),
            ],
            out_specs=pl.BlockSpec((1, H, W, C), lambda n: (n, 0, 0, 0)),
            scratch_shapes=[
                pltpu.VMEM((H + 2, W + 2, C), x.dtype),   # padded input
                pltpu.VMEM((H + 2, W + 2, C), x.dtype),   # padded conv1 act
            ],
        ),
        compiler_params=pltpu.CompilerParams(
            dimension_semantics=("parallel",),            # batch across cores
            vmem_limit_bytes=32 * 1024 * 1024,
        ),
    )(x, w1k, w2k, b1, b2)

    return jnp.transpose(out_nhwc, (0, 3, 1, 2))          # back to NCHW


def basic_block_ref(x_nchw, p, eps=1e-5):
    """Pure-JAX reference (eval-mode BN, identity residual)."""
    x = jnp.transpose(x_nchw, (0, 2, 3, 1)).astype(jnp.float32)

    def conv(inp, w):
        wt = jnp.transpose(w, (2, 3, 1, 0)).astype(jnp.float32)   # HWIO
        return lax.conv_general_dilated(
            inp, wt, (1, 1), ((1, 1), (1, 1)),
            dimension_numbers=("NHWC", "HWIO", "NHWC"))

    def bn(inp, g, b, m, v):
        return (inp - m) / jnp.sqrt(v + eps) * g + b

    out = jnp.maximum(bn(conv(x, p["w1"]), p["g1"], p["be1"], p["m1"], p["v1"]), 0.0)
    out = bn(conv(out, p["w2"]), p["g2"], p["be2"], p["m2"], p["v2"])
    out = jnp.maximum(out + x, 0.0)
    return jnp.transpose(out, (0, 3, 1, 2))


def make_params(key, inplanes, planes):
    ks = jax.random.split(key, 10)
    f = jnp.float32
    return {
        "w1": 0.1 * jax.random.normal(ks[0], (planes, inplanes, 3, 3), f),
        "g1": 1.0 + 0.1 * jax.random.normal(ks[1], (planes,), f),
        "be1": 0.1 * jax.random.normal(ks[2], (planes,), f),
        "m1": 0.1 * jax.random.normal(ks[3], (planes,), f),
        "v1": 0.5 + jnp.abs(jax.random.normal(ks[4], (planes,), f)),
        "w2": 0.1 * jax.random.normal(ks[5], (planes, planes, 3, 3), f),
        "g2": 1.0 + 0.1 * jax.random.normal(ks[6], (planes,), f),
        "be2": 0.1 * jax.random.normal(ks[7], (planes,), f),
        "m2": 0.1 * jax.random.normal(ks[8], (planes,), f),
        "v2": 0.5 + jnp.abs(jax.random.normal(ks[9], (planes,), f)),
    }


if __name__ == "__main__":
    key = jax.random.PRNGKey(0)
    k_x, k_p = jax.random.split(key)

    # Lane-dense channel count (multiple of 128) per the perf review; small
    # spatial size; batch=2 -> two "parallel" grid steps (one per v7x core).
    N, C, H, W = 2, 128, 16, 16
    x = jax.random.normal(k_x, (N, C, H, W), jnp.float32)
    params = make_params(k_p, C, C)

    out = jax.block_until_ready(basic_block_pallas(x, params))

    ref = basic_block_ref(x, params)
    assert out.shape == ref.shape == (N, C, H, W)
    max_err = float(jnp.max(jnp.abs(out - ref)))
    assert jnp.allclose(out, ref, atol=1e-3, rtol=1e-3), max_err

    print("KERNEL_OK")
</pallas_src>

<mosaic_0001>
module attributes {stable_mosaic.version = 11 : i64} {
  func.func @basic_block_kernel(%arg0: i32, %arg1: memref<1x16x16x128xf32, #tpu.memory_space<vmem>>, %arg2: memref<3x384x128xf32, #tpu.memory_space<vmem>>, %arg3: memref<3x384x128xf32, #tpu.memory_space<vmem>>, %arg4: memref<1x128xf32, #tpu.memory_space<vmem>>, %arg5: memref<1x128xf32, #tpu.memory_space<vmem>>, %arg6: memref<1x16x16x128xf32, #tpu.memory_space<vmem>>, %arg7: memref<18x18x128xf32, #tpu.memory_space<vmem>>, %arg8: memref<18x18x128xf32, #tpu.memory_space<vmem>>) attributes {dimension_semantics = [#tpu.dimension_semantics<parallel>], iteration_bounds = array<i64: 2>, scalar_prefetch = 0 : i64, scratch_operands = 2 : i64, tpu.core_type = #tpu.core_type<tc>, window_params = [{transform_indices = @transform_0, window_bounds = array<i64: 1, 16, 16, 128>}, {pipeline_mode = #tpu.pipeline_mode<synchronous>, transform_indices = @transform_1, window_bounds = array<i64: 3, 384, 128>}, {pipeline_mode = #tpu.pipeline_mode<synchronous>, transform_indices = @transform_2, window_bounds = array<i64: 3, 384, 128>}, {pipeline_mode = #tpu.pipeline_mode<synchronous>, transform_indices = @transform_3, window_bounds = array<i64: 1, 128>}, {pipeline_mode = #tpu.pipeline_mode<synchronous>, transform_indices = @transform_4, window_bounds = array<i64: 1, 128>}, {transform_indices = @transform_5, window_bounds = array<i64: 1, 16, 16, 128>}]} {
    %cst = arith.constant 0.000000e+00 : f32
    %0 = vector.broadcast %cst : f32 to vector<18x18x128xf32>
    %c0 = arith.constant 0 : index
    %c0_0 = arith.constant 0 : index
    %c0_1 = arith.constant 0 : index
    %1 = vector.load %arg7[%c0, %c0_0, %c0_1] : memref<18x18x128xf32, #tpu.memory_space<vmem>>, vector<18x18x128xf32>
    tpu.vector_store %arg7[%c0, %c0_0, %c0_1], %0 {strides = array<i32>} : memref<18x18x128xf32, #tpu.memory_space<vmem>>, vector<18x18x128xf32>,
    %c0_2 = arith.constant 0 : index
    %c0_3 = arith.constant 0 : index
    %c0_4 = arith.constant 0 : index
    %c0_5 = arith.constant 0 : index
    %2 = vector.load %arg1[%c0_2, %c0_3, %c0_4, %c0_5] : memref<1x16x16x128xf32, #tpu.memory_space<vmem>>, vector<1x16x16x128xf32>
    %3 = vector.shape_cast %2 : vector<1x16x16x128xf32> to vector<16x16x128xf32>
    %c1 = arith.constant 1 : index
    %c1_6 = arith.constant 1 : index
    %c0_7 = arith.constant 0 : index
    %4 = vector.load %arg7[%c1, %c1_6, %c0_7] : memref<18x18x128xf32, #tpu.memory_space<vmem>>, vector<16x16x128xf32>
    tpu.vector_store %arg7[%c1, %c1_6, %c0_7], %3 {strides = array<i32>} : memref<18x18x128xf32, #tpu.memory_space<vmem>>, vector<16x16x128xf32>,
    %cst_8 = arith.constant 0.000000e+00 : f32
    %5 = vector.broadcast %cst_8 : f32 to vector<18x18x128xf32>
    %c0_9 = arith.constant 0 : index
    %c0_10 = arith.constant 0 : index
    %c0_11 = arith.constant 0 : index
    %6 = vector.load %arg8[%c0_9, %c0_10, %c0_11] : memref<18x18x128xf32, #tpu.memory_space<vmem>>, vector<18x18x128xf32>
    tpu.vector_store %arg8[%c0_9, %c0_10, %c0_11], %5 {strides = array<i32>} : memref<18x18x128xf32, #tpu.memory_space<vmem>>, vector<18x18x128xf32>,
    %c0_12 = arith.constant 0 : index
    %c0_13 = arith.constant 0 : index
    %c0_14 = arith.constant 0 : index
    %7 = vector.load %arg7[%c0_12, %c0_13, %c0_14] : memref<18x18x128xf32, #tpu.memory_space<vmem>>, vector<18x18x128xf32>
    %cst_15 = arith.constant 0.000000e+00 : f32
    %8 = vector.broadcast %cst_15 : f32 to vector<256x128xf32>
    %9 = vector.extract_strided_slice %7 {offsets = [0, 0, 0], sizes = [16, 16, 128], strides = [1, 1, 1]} : vector<18x18x128xf32> to vector<16x16x128xf32>
    %10 = vector.extract_strided_slice %7 {offsets = [0, 1, 0], sizes = [16, 16, 128], strides = [1, 1, 1]} : vector<18x18x128xf32> to vector<16x16x128xf32>
    %11 = vector.extract_strided_slice %7 {offsets = [0, 2, 0], sizes = [16, 16, 128], strides = [1, 1, 1]} : vector<18x18x128xf32> to vector<16x16x128xf32>
    %12 = tpu.concatenate %9, %10, %11 in 2 : vector<16x16x128xf32>, vector<16x16x128xf32>, vector<16x16x128xf32> -> vector<16x16x384xf32>
    %13 = vector.shape_cast %12 : vector<16x16x384xf32> to vector<256x384xf32>
    %c0_16 = arith.constant 0 : index
    %c0_17 = arith.constant 0 : index
    %c0_18 = arith.constant 0 : index
    %14 = vector.load %arg2[%c0_16, %c0_17, %c0_18] : memref<3x384x128xf32, #tpu.memory_space<vmem>>, vector<1x384x128xf32>
    %15 = vector.shape_cast %14 : vector<1x384x128xf32> to vector<384x128xf32>
    %cst_19 = arith.constant dense<0.000000e+00> : vector<256x128xf32>
    %16 = tpu.matmul %13, %15, %cst_19 {dimension_numbers = #tpu.dot_dimension_numbers<[1], [0], [0], [1], [0, 0, 1, 1], [], []>} : vector<256x384xf32>, vector<384x128xf32>, vector<256x128xf32> -> vector<256x128xf32>
    %17 = arith.addf %8, %16 : vector<256x128xf32>
    %18 = vector.extract_strided_slice %7 {offsets = [1, 0, 0], sizes = [16, 16, 128], strides = [1, 1, 1]} : vector<18x18x128xf32> to vector<16x16x128xf32>
    %19 = vector.extract_strided_slice %7 {offsets = [1, 1, 0], sizes = [16, 16, 128], strides = [1, 1, 1]} : vector<18x18x128xf32> to vector<16x16x128xf32>
    %20 = vector.extract_strided_slice %7 {offsets = [1, 2, 0], sizes = [16, 16, 128], strides = [1, 1, 1]} : vector<18x18x128xf32> to vector<16x16x128xf32>
    %21 = tpu.concatenate %18, %19, %20 in 2 : vector<16x16x128xf32>, vector<16x16x128xf32>, vector<16x16x128xf32> -> vector<16x16x384xf32>
    %22 = vector.shape_cast %21 : vector<16x16x384xf32> to vector<256x384xf32>
    %c1_20 = arith.constant 1 : index
    %c0_21 = arith.constant 0 : index
    %c0_22 = arith.constant 0 : index
    %23 = vector.load %arg2[%c1_20, %c0_21, %c0_22] : memref<3x384x128xf32, #tpu.memory_space<vmem>>, vector<1x384x128xf32>
    %24 = vector.shape_cast %23 : vector<1x384x128xf32> to vector<384x128xf32>
    %cst_23 = arith.constant dense<0.000000e+00> : vector<256x128xf32>
    %25 = tpu.matmul %22, %24, %cst_23 {dimension_numbers = #tpu.dot_dimension_numbers<[1], [0], [0], [1], [0, 0, 1, 1], [], []>} : vector<256x384xf32>, vector<384x128xf32>, vector<256x128xf32> -> vector<256x128xf32>
    %26 = arith.addf %17, %25 : vector<256x128xf32>
    %27 = vector.extract_strided_slice %7 {offsets = [2, 0, 0], sizes = [16, 16, 128], strides = [1, 1, 1]} : vector<18x18x128xf32> to vector<16x16x128xf32>
    %28 = vector.extract_strided_slice %7 {offsets = [2, 1, 0], sizes = [16, 16, 128], strides = [1, 1, 1]} : vector<18x18x128xf32> to vector<16x16x128xf32>
    %29 = vector.extract_strided_slice %7 {offsets = [2, 2, 0], sizes = [16, 16, 128], strides = [1, 1, 1]} : vector<18x18x128xf32> to vector<16x16x128xf32>
    %30 = tpu.concatenate %27, %28, %29 in 2 : vector<16x16x128xf32>, vector<16x16x128xf32>, vector<16x16x128xf32> -> vector<16x16x384xf32>
    %31 = vector.shape_cast %30 : vector<16x16x384xf32> to vector<256x384xf32>
    %c2 = arith.constant 2 : index
    %c0_24 = arith.constant 0 : index
    %c0_25 = arith.constant 0 : index
    %32 = vector.load %arg2[%c2, %c0_24, %c0_25] : memref<3x384x128xf32, #tpu.memory_space<vmem>>, vector<1x384x128xf32>
    %33 = vector.shape_cast %32 : vector<1x384x128xf32> to vector<384x128xf32>
    %cst_26 = arith.constant dense<0.000000e+00> : vector<256x128xf32>
    %34 = tpu.matmul %31, %33, %cst_26 {dimension_numbers = #tpu.dot_dimension_numbers<[1], [0], [0], [1], [0, 0, 1, 1], [], []>} : vector<256x384xf32>, vector<384x128xf32>, vector<256x128xf32> -> vector<256x128xf32>
    %35 = arith.addf %26, %34 : vector<256x128xf32>
    %c0_27 = arith.constant 0 : index
    %c0_28 = arith.constant 0 : index
    %36 = vector.load %arg4[%c0_27, %c0_28] : memref<1x128xf32, #tpu.memory_space<vmem>>, vector<1x128xf32>
    %37 = vector.shape_cast %36 : vector<1x128xf32> to vector<128xf32>
    %38 = vector.shape_cast %37 : vector<128xf32> to vector<1x128xf32>
    %39 = vector.broadcast %38 : vector<1x128xf32> to vector<256x128xf32>
    %40 = arith.addf %35, %39 : vector<256x128xf32>
    %cst_29 = arith.constant 0.000000e+00 : f32
    %41 = vector.broadcast %cst_29 : f32 to vector<256x128xf32>
    %42 = arith.maximumf %40, %41 : vector<256x128xf32>
    %43 = vector.shape_cast %42 : vector<256x128xf32> to vector<16x16x128xf32>
    %c1_30 = arith.constant 1 : index
    %c1_31 = arith.constant 1 : index
    %c0_32 = arith.constant 0 : index
    %44 = vector.load %arg8[%c1_30, %c1_31, %c0_32] : memref<18x18x128xf32, #tpu.memory_space<vmem>>, vector<16x16x128xf32>
    tpu.vector_store %arg8[%c1_30, %c1_31, %c0_32], %43 {strides = array<i32>} : memref<18x18x128xf32, #tpu.memory_space<vmem>>, vector<16x16x128xf32>,
    %c0_33 = arith.constant 0 : index
    %c0_34 = arith.constant 0 : index
    %c0_35 = arith.constant 0 : index
    %45 = vector.load %arg8[%c0_33, %c0_34, %c0_35] : memref<18x18x128xf32, #tpu.memory_space<vmem>>, vector<18x18x128xf32>
    %cst_36 = arith.constant 0.000000e+00 : f32
    %46 = vector.broadcast %cst_36 : f32 to vector<256x128xf32>
    %47 = vector.extract_strided_slice %45 {offsets = [0, 0, 0], sizes = [16, 16, 128], strides = [1, 1, 1]} : vector<18x18x128xf32> to vector<16x16x128xf32>
    %48 = vector.extract_strided_slice %45 {offsets = [0, 1, 0], sizes = [16, 16, 128], strides = [1, 1, 1]} : vector<18x18x128xf32> to vector<16x16x128xf32>
    %49 = vector.extract_strided_slice %45 {offsets = [0, 2, 0], sizes = [16, 16, 128], strides = [1, 1, 1]} : vector<18x18x128xf32> to vector<16x16x128xf32>
    %50 = tpu.concatenate %47, %48, %49 in 2 : vector<16x16x128xf32>, vector<16x16x128xf32>, vector<16x16x128xf32> -> vector<16x16x384xf32>
    %51 = vector.shape_cast %50 : vector<16x16x384xf32> to vector<256x384xf32>
    %c0_37 = arith.constant 0 : index
    %c0_38 = arith.constant 0 : index
    %c0_39 = arith.constant 0 : index
    %52 = vector.load %arg3[%c0_37, %c0_38, %c0_39] : memref<3x384x128xf32, #tpu.memory_space<vmem>>, vector<1x384x128xf32>
    %53 = vector.shape_cast %52 : vector<1x384x128xf32> to vector<384x128xf32>
    %cst_40 = arith.constant dense<0.000000e+00> : vector<256x128xf32>
    %54 = tpu.matmul %51, %53, %cst_40 {dimension_numbers = #tpu.dot_dimension_numbers<[1], [0], [0], [1], [0, 0, 1, 1], [], []>} : vector<256x384xf32>, vector<384x128xf32>, vector<256x128xf32> -> vector<256x128xf32>
    %55 = arith.addf %46, %54 : vector<256x128xf32>
    %56 = vector.extract_strided_slice %45 {offsets = [1, 0, 0], sizes = [16, 16, 128], strides = [1, 1, 1]} : vector<18x18x128xf32> to vector<16x16x128xf32>
    %57 = vector.extract_strided_slice %45 {offsets = [1, 1, 0], sizes = [16, 16, 128], strides = [1, 1, 1]} : vector<18x18x128xf32> to vector<16x16x128xf32>
    %58 = vector.extract_strided_slice %45 {offsets = [1, 2, 0], sizes = [16, 16, 128], strides = [1, 1, 1]} : vector<18x18x128xf32> to vector<16x16x128xf32>
    %59 = tpu.concatenate %56, %57, %58 in 2 : vector<16x16x128xf32>, vector<16x16x128xf32>, vector<16x16x128xf32> -> vector<16x16x384xf32>
    %60 = vector.shape_cast %59 : vector<16x16x384xf32> to vector<256x384xf32>
    %c1_41 = arith.constant 1 : index
    %c0_42 = arith.constant 0 : index
    %c0_43 = arith.constant 0 : index
    %61 = vector.load %arg3[%c1_41, %c0_42, %c0_43] : memref<3x384x128xf32, #tpu.memory_space<vmem>>, vector<1x384x128xf32>
    %62 = vector.shape_cast %61 : vector<1x384x128xf32> to vector<384x128xf32>
    %cst_44 = arith.constant dense<0.000000e+00> : vector<256x128xf32>
    %63 = tpu.matmul %60, %62, %cst_44 {dimension_numbers = #tpu.dot_dimension_numbers<[1], [0], [0], [1], [0, 0, 1, 1], [], []>} : vector<256x384xf32>, vector<384x128xf32>, vector<256x128xf32> -> vector<256x128xf32>
    %64 = arith.addf %55, %63 : vector<256x128xf32>
    %65 = vector.extract_strided_slice %45 {offsets = [2, 0, 0], sizes = [16, 16, 128], strides = [1, 1, 1]} : vector<18x18x128xf32> to vector<16x16x128xf32>
    %66 = vector.extract_strided_slice %45 {offsets = [2, 1, 0], sizes = [16, 16, 128], strides = [1, 1, 1]} : vector<18x18x128xf32> to vector<16x16x128xf32>
    %67 = vector.extract_strided_slice %45 {offsets = [2, 2, 0], sizes = [16, 16, 128], strides = [1, 1, 1]} : vector<18x18x128xf32> to vector<16x16x128xf32>
    %68 = tpu.concatenate %65, %66, %67 in 2 : vector<16x16x128xf32>, vector<16x16x128xf32>, vector<16x16x128xf32> -> vector<16x16x384xf32>
    %69 = vector.shape_cast %68 : vector<16x16x384xf32> to vector<256x384xf32>
    %c2_45 = arith.constant 2 : index
    %c0_46 = arith.constant 0 : index
    %c0_47 = arith.constant 0 : index
    %70 = vector.load %arg3[%c2_45, %c0_46, %c0_47] : memref<3x384x128xf32, #tpu.memory_space<vmem>>, vector<1x384x128xf32>
    %71 = vector.shape_cast %70 : vector<1x384x128xf32> to vector<384x128xf32>
    %cst_48 = arith.constant dense<0.000000e+00> : vector<256x128xf32>
    %72 = tpu.matmul %69, %71, %cst_48 {dimension_numbers = #tpu.dot_dimension_numbers<[1], [0], [0], [1], [0, 0, 1, 1], [], []>} : vector<256x384xf32>, vector<384x128xf32>, vector<256x128xf32> -> vector<256x128xf32>
    %73 = arith.addf %64, %72 : vector<256x128xf32>
    %74 = vector.shape_cast %73 : vector<256x128xf32> to vector<16x16x128xf32>
    %c0_49 = arith.constant 0 : index
    %c0_50 = arith.constant 0 : index
    %75 = vector.load %arg5[%c0_49, %c0_50] : memref<1x128xf32, #tpu.memory_space<vmem>>, vector<1x128xf32>
    %76 = vector.shape_cast %75 : vector<1x128xf32> to vector<128xf32>
    %77 = vector.shape_cast %76 : vector<128xf32> to vector<1x1x128xf32>
    %78 = vector.broadcast %77 : vector<1x1x128xf32> to vector<16x16x128xf32>
    %79 = arith.addf %74, %78 : vector<16x16x128xf32>
    %c0_51 = arith.constant 0 : index
    %c0_52 = arith.constant 0 : index
    %c0_53 = arith.constant 0 : index
    %c0_54 = arith.constant 0 : index
    %80 = vector.load %arg1[%c0_51, %c0_52, %c0_53, %c0_54] : memref<1x16x16x128xf32, #tpu.memory_space<vmem>>, vector<1x16x16x128xf32>
    %81 = vector.shape_cast %80 : vector<1x16x16x128xf32> to vector<16x16x128xf32>
    %82 = arith.addf %79, %81 : vector<16x16x128xf32>
    %cst_55 = arith.constant 0.000000e+00 : f32
    %83 = vector.broadcast %cst_55 : f32 to vector<16x16x128xf32>
    %84 = arith.maximumf %82, %83 : vector<16x16x128xf32>
    %c0_56 = arith.constant 0 : index
    %c0_57 = arith.constant 0 : index
    %c0_58 = arith.constant 0 : index
    %c0_59 = arith.constant 0 : index
    %85 = vector.load %arg6[%c0_56, %c0_57, %c0_58, %c0_59] : memref<1x16x16x128xf32, #tpu.memory_space<vmem>>, vector<1x16x16x128xf32>
    %86 = vector.shape_cast %85 : vector<1x16x16x128xf32> to vector<16x16x128xf32>
    %87 = vector.shape_cast %84 : vector<16x16x128xf32> to vector<1x16x16x128xf32>
    tpu.vector_store %arg6[%c0_56, %c0_57, %c0_58, %c0_59], %87 {strides = array<i32>} : memref<1x16x16x128xf32, #tpu.memory_space<vmem>>, vector<1x16x16x128xf32>,
    return
  }
  func.func @transform_0(%arg0: i32) -> (i32, i32, i32, i32) {
    %c0_i32 = arith.constant 0 : i32
    %c0_i32_0 = arith.constant 0 : i32
    %c0_i32_1 = arith.constant 0 : i32
    %c0_i32_2 = arith.constant 0 : i32
    return %arg0, %c0_i32, %c0_i32_0, %c0_i32_1 : i32, i32, i32, i32
  }
  func.func @transform_1(%arg0: i32) -> (i32, i32, i32) {
    %c0_i32 = arith.constant 0 : i32
    %c0_i32_0 = arith.constant 0 : i32
    %c0_i32_1 = arith.constant 0 : i32
    %c0_i32_2 = arith.constant 0 : i32
    return %c0_i32, %c0_i32_0, %c0_i32_1 : i32, i32, i32
  }
  func.func @transform_2(%arg0: i32) -> (i32, i32, i32) {
    %c0_i32 = arith.constant 0 : i32
    %c0_i32_0 = arith.constant 0 : i32
    %c0_i32_1 = arith.constant 0 : i32
    %c0_i32_2 = arith.constant 0 : i32
    return %c0_i32, %c0_i32_0, %c0_i32_1 : i32, i32, i32
  }
  func.func @transform_3(%arg0: i32) -> (i32, i32) {
    %c0_i32 = arith.constant 0 : i32
    %c0_i32_0 = arith.constant 0 : i32
    %c0_i32_1 = arith.constant 0 : i32
    return %c0_i32, %c0_i32_0 : i32, i32
  }
  func.func @transform_4(%arg0: i32) -> (i32, i32) {
    %c0_i32 = arith.constant 0 : i32
    %c0_i32_0 = arith.constant 0 : i32
    %c0_i32_1 = arith.constant 0 : i32
    return %c0_i32, %c0_i32_0 : i32, i32
  }
  func.func @transform_5(%arg0: i32) -> (i32, i32, i32, i32) {
    %c0_i32 = arith.constant 0 : i32
    %c0_i32_0 = arith.constant 0 : i32
    %c0_i32_1 = arith.constant 0 : i32
    %c0_i32_2 = arith.constant 0 : i32
    return %arg0, %c0_i32, %c0_i32_0, %c0_i32_1 : i32, i32, i32, i32
  }
}

</mosaic_0001>

<llo_original>
// kernel: tpu_custom_call.1
$region0: #{tpu_custom_call.1}
  #allocation0 [shape = 'u32[]', space=smem, size = 0x4, offset = 0x4, fixed_abs, tag = 'smem constant byte address 0x4 - core index']
  #allocation1 [shape = 'u32[72,128]{1,0:T(1,128)}', space=vmem, size = 0x9000, scoped, tag = 'internal scratch']
  #allocation2 [shape = 'f32[18,18,128]{2,1,0:T(8,128)}', space=vmem, size = 0x36000, scoped, tag = 'scratch operand']
  #allocation3 [shape = 'f32[18,18,128]{2,1,0:T(8,128)}', space=vmem, size = 0x36000, scoped, tag = 'scratch operand']
  %s0 = inlined_call_operand.hbm [shape: f32[2,16,16,128], index: 0, kind: input, shape index: {}]
  %s1 = inlined_call_operand.hbm [shape: f32[3,384,128], index: 1, kind: input, shape index: {}]
  %s2 = inlined_call_operand.hbm [shape: f32[3,384,128], index: 2, kind: input, shape index: {}]
  %s3 = inlined_call_operand.vmem [shape: f32[1,128], index: 3, kind: input, shape index: {}]
  %s4 = inlined_call_operand.vmem [shape: f32[1,128], index: 4, kind: input, shape index: {}]
  %s5 = inlined_call_operand.hbm [shape: f32[2,16,16,128], index: 5, kind: output, shape index: {}]
  %s6 = sld [smem:[#allocation0]]
  $region65: #{tpu_custom_call.1} parent=0
    _
  %s8 = ssub.s32 1, %s6
  %s9 = scalar_select 0, %s8, %s6
  $region1: #{tpu_custom_call.1} parent=0
    #allocation4 [shape = 'u8[262144]{0}', space=vmem, size = 0x40000, scoped, tag = 'input window, operand 0']
    #allocation5 [shape = 's32[2]{0}', space=sflag, size = 0x8, scoped, tag = 'scoped memory for tpu_custom_call.1']
    #allocation6 [shape = 's32[2]{0}', space=sflag, size = 0x8, scoped, tag = 'scoped memory for tpu_custom_call.1']
    #allocation7 [shape = 'u8[589824]{0}', space=vmem, size = 0x90000, scoped, tag = 'input window, operand 1, single buffered']
    #allocation8 [shape = 's32[1]{0}', space=sflag, size = 0x4, scoped, tag = 'scoped memory for tpu_custom_call.1']
    #allocation9 [shape = 'u8[589824]{0}', space=vmem, size = 0x90000, scoped, tag = 'input window, operand 2, single buffered']
    #allocation10 [shape = 'u8[262144]{0}', space=vmem, size = 0x40000, scoped, tag = 'output window, operand 0']
    %10 = vsyncpa [#allocation5], 0
    %s11 = scalar_lea.sflag [#allocation5], 1
    %12 = vsyncpa %s11, 0
    %13 = vsyncpa [#allocation8], 0
    %14 = vsyncpa [#allocation6], 0
    %s15 = scalar_lea.sflag [#allocation6], 1
    %16 = vsyncpa %s15, 0
    loop: start=0, step=1, limit=4
    $region2: #{tpu_custom_call.1} parent=1 // loop_pre_header
      _
    $region3: #{tpu_custom_call.1} parent=1 // loop_header
      %s18 = sphi 0, %s22
      %p19 = scmp.ge.s32.totalorder %s18, 4
      %s28 = sphi 0, %s30
      %s31 = sphi 0, %s28
      %s32 = sphi 0, %s31
      %s48 = sphi 0, %s32
      %s52 = sphi 0, %s52
      %s54 = sphi 0, %s52
      %s55 = sphi 0, %s54
      %s69 = sphi 0, %s55
      %s73 = sphi 0, %s73
      %s75 = sphi 0, %s73
      %s76 = sphi 0, %s75
      %s90 = sphi 0, %s76
      %s94 = sphi 0, %s94
      %s96 = sphi 0, %s94
      %s97 = sphi 0, %s96
      %s111 = sphi 0, %s97
      %s115 = sphi 0, %s115
      %s117 = sphi 0, %s115
      %s118 = sphi 0, %s117
      %s132 = sphi 0, %s118
      %s138 = sphi 0, %s140
      %s141 = sphi 0, %s138
      %s142 = sphi 0, %s141
      %s158 = sphi 0, %s142
    $region4: #{tpu_custom_call.1} parent=1 // loop_header_branch
      %21 = sbr.rel (%p19) target = $region8
    $region5: #{tpu_custom_call.1} parent=1 // loop_body
      %s23 = ssub.s32 %s18, 1
      %s24 = ssub.s32 %s18, 2
      %s25 = sadd.s32 %s18, 1
      %s26 = ssub.s32 %s18, %s25
      %p27 = scmp.eq.s32.totalorder %s26, 0
      %s29 = sadd.s32 %s28, 1
      %s30 = scalar_select %p27, %s28, %s29
      %p33 = pneg %p27
      %p34 = scmp.eq.s32.totalorder %s18, 1
      %p35 = por %p33, %p34
      %p36 = scmp.ne.s32.totalorder %s28, %s31
      %p37 = scmp.eq.s32.totalorder %s18, 0
      %p38 = por %p36, %p37
      %p39 = scmp.ne.s32.totalorder %s28, %s31
      %p40 = scmp.eq.s32.totalorder %s23, 1
      %p41 = por %p39, %p40
      %p42 = scmp.ne.s32.totalorder %s31, %s32
      %p43 = scmp.eq.s32.totalorder %s23, 0
      %p44 = por %p42, %p43
      %p45 = scmp.ne.s32.totalorder %s31, %s32
      %p46 = scmp.eq.s32.totalorder %s24, 1
      %p47 = por %p45, %p46
      %p49 = scmp.ne.s32.totalorder %s32, %s48
      %p50 = scmp.eq.s32.totalorder %s24, 0
      %p51 = por %p49, %p50
      %s53 = sadd.s32 %s52, 1
      %p56 = scmp.eq.s32.totalorder %s18, 1
      %p57 = scmp.ne.s32.totalorder %s52, %s54
      %p58 = scmp.eq.s32.totalorder %s18, 0
      %p59 = por %p57, %p58
      %p60 = scmp.ne.s32.totalorder %s52, %s54
      %p61 = scmp.eq.s32.totalorder %s23, 1
      %p62 = por %p60, %p61
      %p63 = scmp.ne.s32.totalorder %s54, %s55
      %p64 = scmp.eq.s32.totalorder %s23, 0
      %p65 = por %p63, %p64
      %p66 = scmp.ne.s32.totalorder %s54, %s55
      %p67 = scmp.eq.s32.totalorder %s24, 1
      %p68 = por %p66, %p67
      %p70 = scmp.ne.s32.totalorder %s55, %s69
      %p71 = scmp.eq.s32.totalorder %s24, 0
      %p72 = por %p70, %p71
      %s74 = sadd.s32 %s73, 1
      %p77 = scmp.eq.s32.totalorder %s18, 1
      %p78 = scmp.ne.s32.totalorder %s73, %s75
      %p79 = scmp.eq.s32.totalorder %s18, 0
      %p80 = por %p78, %p79
      %p81 = scmp.ne.s32.totalorder %s73, %s75
      %p82 = scmp.eq.s32.totalorder %s23, 1
      %p83 = por %p81, %p82
      %p84 = scmp.ne.s32.totalorder %s75, %s76
      %p85 = scmp.eq.s32.totalorder %s23, 0
      %p86 = por %p84, %p85
      %p87 = scmp.ne.s32.totalorder %s75, %s76
      %p88 = scmp.eq.s32.totalorder %s24, 1
      %p89 = por %p87, %p88
      %p91 = scmp.ne.s32.totalorder %s76, %s90
      %p92 = scmp.eq.s32.totalorder %s24, 0
      %p93 = por %p91, %p92
      %s95 = sadd.s32 %s94, 1
      %p98 = scmp.eq.s32.totalorder %s18, 1
      %p99 = scmp.ne.s32.totalorder %s94, %s96
      %p100 = scmp.eq.s32.totalorder %s18, 0
      %p101 = por %p99, %p100
      %p102 = scmp.ne.s32.totalorder %s94, %s96
      %p103 = scmp.eq.s32.totalorder %s23, 1
      %p104 = por %p102, %p103
      %p105 = scmp.ne.s32.totalorder %s96, %s97
      %p106 = scmp.eq.s32.totalorder %s23, 0
      %p107 = por %p105, %p106
      %p108 = scmp.ne.s32.totalorder %s96, %s97
      %p109 = scmp.eq.s32.totalorder %s24, 1
      %p110 = por %p108, %p109
      %p112 = scmp.ne.s32.totalorder %s97, %s111
      %p113 = scmp.eq.s32.totalorder %s24, 0
      %p114 = por %p112, %p113
      %s116 = sadd.s32 %s115, 1
      %p119 = scmp.eq.s32.totalorder %s18, 1
      %p120 = scmp.ne.s32.totalorder %s115, %s117
      %p121 = scmp.eq.s32.totalorder %s18, 0
      %p122 = por %p120, %p121
      %p123 = scmp.ne.s32.totalorder %s115, %s117
      %p124 = scmp.eq.s32.totalorder %s23, 1
      %p125 = por %p123, %p124
      %p126 = scmp.ne.s32.totalorder %s117, %s118
      %p127 = scmp.eq.s32.totalorder %s23, 0
      %p128 = por %p126, %p127
      %p129 = scmp.ne.s32.totalorder %s117, %s118
      %p130 = scmp.eq.s32.totalorder %s24, 1
      %p131 = por %p129, %p130
      %p133 = scmp.ne.s32.totalorder %s118, %s132
      %p134 = scmp.eq.s32.totalorder %s24, 0
      %p135 = por %p133, %p134
      %s136 = ssub.s32 %s18, %s25
      %p137 = scmp.eq.s32.totalorder %s136, 0
      %s139 = sadd.s32 %s138, 1
      %s140 = scalar_select %p137, %s138, %s139
      %p143 = pneg %p137
      %p144 = scmp.eq.s32.totalorder %s18, 1
      %p145 = por %p143, %p144
      %p146 = scmp.ne.s32.totalorder %s138, %s141
      %p147 = scmp.eq.s32.totalorder %s18, 0
      %p148 = por %p146, %p147
      %p149 = scmp.ne.s32.totalorder %s138, %s141
      %p150 = scmp.eq.s32.totalorder %s23, 1
      %p151 = por %p149, %p150
      %p152 = scmp.ne.s32.totalorder %s141, %s142
      %p153 = scmp.eq.s32.totalorder %s23, 0
      %p154 = por %p152, %p153
      %p155 = scmp.ne.s32.totalorder %s141, %s142
      %p156 = scmp.eq.s32.totalorder %s24, 1
      %p157 = por %p155, %p156
      %p159 = scmp.ne.s32.totalorder %s142, %s158
      %p160 = scmp.eq.s32.totalorder %s24, 0
      %p161 = por %p159, %p160
      %p162 = scmp.le.s32.totalorder 1, %s18
      %p163 = scmp.lt.s32.totalorder %s18, 3
      %p164 = pnand %p162, %p163
      %p165 = pneg %p164
      // Predicated region
      $region9: #{tpu_custom_call.1} parent=5 // pred_check
        _
      $region10: #{tpu_custom_call.1} parent=5 // pred_check_branch
        %167 = sbr.rel (%p164) target = $region12
      $region11: #{tpu_custom_call.1} parent=5 // pred_region
        %s168 = ssub.s32 %s18, 1
        // Predicated region
        $region13: #{tpu_custom_call.1} parent=11 // pred_check
          %p169 = pneg %p65
        $region14: #{tpu_custom_call.1} parent=11 // pred_check_branch
          %171 = sbr.rel (%p169) target = $region16
        $region15: #{tpu_custom_call.1} parent=11 // pred_region
          %173 = vsyncadd [#allocation8], 0
          %s174 = sshll.u32 %s1, 4
          %s175 = int_to_ptr.hbm [resolvable:$true] %s174
          %s176 = sshll.u32 [#allocation7], 4
          %s177 = int_to_ptr.vmem [resolvable:$true] %s176
          %182 = dma.hbm_to_vmem [thread:$0]  %s175, 18432, %s177, [#allocation8], 128, 128, 8
        $region16: #{tpu_custom_call.1} parent=11 // pred_fallthru
          _
        // Predicated region
        $region17: #{tpu_custom_call.1} parent=11 // pred_check
          %p183 = pneg %p86
        $region18: #{tpu_custom_call.1} parent=11 // pred_check_branch
          %185 = sbr.rel (%p183) target = $region20
        $region19: #{tpu_custom_call.1} parent=11 // pred_region
          %187 = vsyncadd [#allocation8], 0
          %s188 = sshll.u32 %s2, 4
          %s189 = int_to_ptr.hbm [resolvable:$true] %s188
          %s190 = sshll.u32 [#allocation9], 4
          %s191 = int_to_ptr.vmem [resolvable:$true] %s190
          %196 = dma.hbm_to_vmem [thread:$0]  %s189, 18432, %s191, [#allocation8], 128, 128, 8
        $region20: #{tpu_custom_call.1} parent=11 // pred_fallthru
          _
        // Predicated region
        $region21: #{tpu_custom_call.1} parent=11 // pred_check
          %p197 = pneg %p107
        $region22: #{tpu_custom_call.1} parent=11 // pred_check_branch
          %199 = sbr.rel (%p197) target = $region24
        $region23: #{tpu_custom_call.1} parent=11 // pred_region
          _
        $region24: #{tpu_custom_call.1} parent=11 // pred_fallthru
          _
        // Predicated region
        $region25: #{tpu_custom_call.1} parent=11 // pred_check
          %p200 = pneg %p128
        $region26: #{tpu_custom_call.1} parent=11 // pred_check_branch
          %202 = sbr.rel (%p200) target = $region28
        $region27: #{tpu_custom_call.1} parent=11 // pred_region
          _
        $region28: #{tpu_custom_call.1} parent=11 // pred_fallthru
          _
      $region12: #{tpu_custom_call.1} parent=5 // pred_fallthru
        _
      %p203 = scmp.lt.s32.totalorder %s18, 2
      // Predicated region
      $region29: #{tpu_custom_call.1} parent=5 // pred_check
        %p204 = pneg %p203
      $region30: #{tpu_custom_call.1} parent=5 // pred_check_branch
        %206 = sbr.rel (%p204) target = $region32
      $region31: #{tpu_custom_call.1} parent=5 // pred_region
        // Predicated region
        $region33: #{tpu_custom_call.1} parent=31 // pred_check
          %p207 = pneg %p38
        $region34: #{tpu_custom_call.1} parent=31 // pred_check_branch
          %209 = sbr.rel (%p207) target = $region36
        $region35: #{tpu_custom_call.1} parent=31 // pred_region
          %s210 = sand.u32 %s28, 1
          %s211 = scalar_lea.sflag [#allocation5], %s210
          %s212 = sand.u32 %s28, 1
          %s213 = smul.addr %s212, 256
          %s214 = scalar_lea.vmem [#allocation4], %s213
          %216 = vsyncadd %s211, 0
          %s217 = smul.addr %s18, 32
          %s218 = smul.addr %s217, 8
          %s219 = scalar_lea.hbm %s0, %s218
          %s220 = sshll.u32 %s219, 4
          %s221 = int_to_ptr.hbm [resolvable:$true] %s220
          %s222 = sshll.u32 %s214, 4
          %s223 = int_to_ptr.vmem [resolvable:$true] %s222
          %228 = dma.hbm_to_vmem [thread:$0]  %s221, 4096, %s223, %s211, 128, 128, 8
        $region36: #{tpu_custom_call.1} parent=31 // pred_fallthru
          _
      $region32: #{tpu_custom_call.1} parent=5 // pred_fallthru
        _
      %p229 = scmp.le.s32.totalorder 1, %s18
      %p230 = scmp.lt.s32.totalorder %s18, 3
      %p231 = pnand %p229, %p230
      %p232 = pneg %p231
      // Predicated region
      $region37: #{tpu_custom_call.1} parent=5 // pred_check
        _
      $region38: #{tpu_custom_call.1} parent=5 // pred_check_branch
        %234 = sbr.rel (%p231) target = $region40
      $region39: #{tpu_custom_call.1} parent=5 // pred_region
        %s235 = ssub.s32 %s18, 1
        %s236 = sand.u32 %s31, 1
        %s237 = scalar_lea.sflag [#allocation5], %s236
        %s238 = sand.u32 %s31, 1
        %s239 = smul.addr %s238, 256
        %s240 = scalar_lea.vmem [#allocation4], %s239
        // Predicated region
        $region41: #{tpu_custom_call.1} parent=39 // pred_check
          %p241 = pneg %p44
        $region42: #{tpu_custom_call.1} parent=39 // pred_check_branch
          %243 = sbr.rel (%p241) target = $region44
        $region43: #{tpu_custom_call.1} parent=39 // pred_region
          %245 = dma.done %s237, 4096
        $region44: #{tpu_custom_call.1} parent=39 // pred_fallthru
          _
        // Predicated region
        $region45: #{tpu_custom_call.1} parent=39 // pred_check
          %p246 = pneg %p65
        $region46: #{tpu_custom_call.1} parent=39 // pred_check_branch
          %248 = sbr.rel (%p246) target = $region48
        $region47: #{tpu_custom_call.1} parent=39 // pred_region
          %250 = dma.done [#allocation8], 18432
        $region48: #{tpu_custom_call.1} parent=39 // pred_fallthru
          _
        // Predicated region
        $region49: #{tpu_custom_call.1} parent=39 // pred_check
          %p251 = pneg %p86
        $region50: #{tpu_custom_call.1} parent=39 // pred_check_branch
          %253 = sbr.rel (%p251) target = $region52
        $region51: #{tpu_custom_call.1} parent=39 // pred_region
          %255 = dma.done [#allocation8], 18432
        $region52: #{tpu_custom_call.1} parent=39 // pred_fallthru
          _
        %s256 = sand.u32 %s31, 1
        %s257 = scalar_lea.sflag [#allocation5], %s256
        %s258 = sand.u32 %s31, 1
        %s259 = smul.addr %s258, 256
        %s260 = scalar_lea.vmem [#allocation4], %s259
        %p261 = pneg %p44
        %p262 = pneg %p41
        %p263 = pneg %p65
        %p264 = pneg %p62
        %p265 = pneg %p86
        %p266 = pneg %p83
        %p267 = pneg %p107
        %p268 = pneg %p104
        %p269 = pneg %p128
        %p270 = pneg %p125
        %p271 = pneg %p154
        %p272 = pneg %p151
        %s273 = sand.u32 %s141, 1
        %s274 = scalar_lea.sflag [#allocation6], %s273
        %s275 = sand.u32 %s141, 1
        %s276 = smul.addr %s275, 256
        %s277 = scalar_lea.vmem [#allocation10], %s276
        %278 = vst [vmem:[#allocation2] sm:$0xff] 0.0
        %279 = vst [vmem:[#allocation2 + $0x8] sm:$0xff] 0.0
        %280 = vst [vmem:[#allocation2 + $0x10] sm:$0x3] 0.0
        %281 = vst [vmem:[#allocation2 + $0x18] sm:$0xff] 0.0
        %282 = vst [vmem:[#allocation2 + $0x20] sm:$0xff] 0.0
        %283 = vst [vmem:[#allocation2 + $0x28] sm:$0x3] 0.0
        %284 = vst [vmem:[#allocation2 + $0x30] sm:$0xff] 0.0
        %285 = vst [vmem:[#allocation2 + $0x38] sm:$0xff] 0.0
        %286 = vst [vmem:[#allocation2 + $0x40] sm:$0x3] 0.0
        %287 = vst [vmem:[#allocation2 + $0x48] sm:$0xff] 0.0
        %288 = vst [vmem:[#allocation2 + $0x50] sm:$0xff] 0.0
        %289 = vst [vmem:[#allocation2 + $0x58] sm:$0x3] 0.0
        %290 = vst [vmem:[#allocation2 + $0x60] sm:$0xff] 0.0
        %291 = vst [vmem:[#allocation2 + $0x68] sm:$0xff] 0.0
        %292 = vst [vmem:[#allocation2 + $0x70] sm:$0x3] 0.0
        %293 = vst [vmem:[#allocation2 + $0x78] sm:$0xff] 0.0
        %294 = vst [vmem:[#allocation2 + $0x80] sm:$0xff] 0.0
        %295 = vst [vmem:[#allocation2 + $0x88] sm:$0x3] 0.0
        %296 = vst [vmem:[#allocation2 + $0x90] sm:$0xff] 0.0
        %297 = vst [vmem:[#allocation2 + $0x98] sm:$0xff] 0.0
        %298 = vst [vmem:[#allocation2 + $0xa0] sm:$0x3] 0.0
        %299 = vst [vmem:[#allocation2 + $0xa8] sm:$0xff] 0.0
        %300 = vst [vmem:[#allocation2 + $0xb0] sm:$0xff] 0.0
        %301 = vst [vmem:[#allocation2 + $0xb8] sm:$0x3] 0.0
        %302 = vst [vmem:[#allocation2 + $0xc0] sm:$0xff] 0.0
        %303 = vst [vmem:[#allocation2 + $0xc8] sm:$0xff] 0.0
        %304 = vst [vmem:[#allocation2 + $0xd0] sm:$0x3] 0.0
        %305 = vst [vmem:[#allocation2 + $0xd8] sm:$0xff] 0.0
        %306 = vst [vmem:[#allocation2 + $0xe0] sm:$0xff] 0.0
        %307 = vst [vmem:[#allocation2 + $0xe8] sm:$0x3] 0.0
        %308 = vst [vmem:[#allocation2 + $0xf0] sm:$0xff] 0.0
        %309 = vst [vmem:[#allocation2 + $0xf8] sm:$0xff] 0.0
        %310 = vst [vmem:[#allocation2 + $0x100] sm:$0x3] 0.0
        %311 = vst [vmem:[#allocation2 + $0x108] sm:$0xff] 0.0
        %312 = vst [vmem:[#allocation2 + $0x110] sm:$0xff] 0.0
        %313 = vst [vmem:[#allocation2 + $0x118] sm:$0x3] 0.0
        %314 = vst [vmem:[#allocation2 + $0x120] sm:$0xff] 0.0
        %315 = vst [vmem:[#allocation2 + $0x128] sm:$0xff] 0.0
        %316 = vst [vmem:[#allocation2 + $0x130] sm:$0x3] 0.0
        %317 = vst [vmem:[#allocation2 + $0x138] sm:$0xff] 0.0
        %318 = vst [vmem:[#allocation2 + $0x140] sm:$0xff] 0.0
        %319 = vst [vmem:[#allocation2 + $0x148] sm:$0x3] 0.0
        %320 = vst [vmem:[#allocation2 + $0x150] sm:$0xff] 0.0
        %321 = vst [vmem:[#allocation2 + $0x158] sm:$0xff] 0.0
        %322 = vst [vmem:[#allocation2 + $0x160] sm:$0x3] 0.0
        %323 = vst [vmem:[#allocation2 + $0x168] sm:$0xff] 0.0
        %324 = vst [vmem:[#allocation2 + $0x170] sm:$0xff] 0.0
        %325 = vst [vmem:[#allocation2 + $0x178] sm:$0x3] 0.0
        %326 = vst [vmem:[#allocation2 + $0x180] sm:$0xff] 0.0
        %327 = vst [vmem:[#allocation2 + $0x188] sm:$0xff] 0.0
        %328 = vst [vmem:[#allocation2 + $0x190] sm:$0x3] 0.0
        %329 = vst [vmem:[#allocation2 + $0x198] sm:$0xff] 0.0
        %330 = vst [vmem:[#allocation2 + $0x1a0] sm:$0xff] 0.0
        %331 = vst [vmem:[#allocation2 + $0x1a8] sm:$0x3] 0.0
        %v332 = vld [vmem:[%s240] sm:$0xff]
        %v333 = vld [vmem:[%s240 + $0x8] sm:$0xff]
        %v334 = vld [vmem:[%s240 + $0x10] sm:$0xff]
        %v335 = vld [vmem:[%s240 + $0x18] sm:$0xff]
        %v336 = vld [vmem:[%s240 + $0x20] sm:$0xff]
        %v337 = vld [vmem:[%s240 + $0x28] sm:$0xff]
        %v338 = vld [vmem:[%s240 + $0x30] sm:$0xff]
        %v339 = vld [vmem:[%s240 + $0x38] sm:$0xff]
        %v340 = vld [vmem:[%s240 + $0x40] sm:$0xff]
        %v341 = vld [vmem:[%s240 + $0x48] sm:$0xff]
        %v342 = vld [vmem:[%s240 + $0x50] sm:$0xff]
        %v343 = vld [vmem:[%s240 + $0x58] sm:$0xff]
        %v344 = vld [vmem:[%s240 + $0x60] sm:$0xff]
        %v345 = vld [vmem:[%s240 + $0x68] sm:$0xff]
        %v346 = vld [vmem:[%s240 + $0x70] sm:$0xff]
        %v347 = vld [vmem:[%s240 + $0x78] sm:$0xff]
        %v348 = vld [vmem:[%s240 + $0x80] sm:$0xff]
        %v349 = vld [vmem:[%s240 + $0x88] sm:$0xff]
        %v350 = vld [vmem:[%s240 + $0x90] sm:$0xff]
        %v351 = vld [vmem:[%s240 + $0x98] sm:$0xff]
        %v352 = vld [vmem:[%s240 + $0xa0] sm:$0xff]
        %v353 = vld [vmem:[%s240 + $0xa8] sm:$0xff]
        %v354 = vld [vmem:[%s240 + $0xb0] sm:$0xff]
        %v355 = vld [vmem:[%s240 + $0xb8] sm:$0xff]
        %v356 = vld [vmem:[%s240 + $0xc0] sm:$0xff]
        %v357 = vld [vmem:[%s240 + $0xc8] sm:$0xff]
        %v358 = vld [vmem:[%s240 + $0xd0] sm:$0xff]
        %v359 = vld [vmem:[%s240 + $0xd8] sm:$0xff]
        %v360 = vld [vmem:[%s240 + $0xe0] sm:$0xff]
        %v361 = vld [vmem:[%s240 + $0xe8] sm:$0xff]
        %v362 = vld [vmem:[%s240 + $0xf0] sm:$0xff]
        %v363 = vld [vmem:[%s240 + $0xf8] sm:$0xff]
        %s364 = scalar_lea.vmem [#allocation2], 24
        %365 = vst [vmem:[%s364 + $0x1] sm:$0xff] %v332
        %366 = vst [vmem:[%s364 + $0x9] sm:$0xff] %v333
        %367 = vst [vmem:[%s364 + $0x19] sm:$0xff] %v334
        %368 = vst [vmem:[%s364 + $0x21] sm:$0xff] %v335
        %369 = vst [vmem:[%s364 + $0x31] sm:$0xff] %v336
        %370 = vst [vmem:[%s364 + $0x39] sm:$0xff] %v337
        %371 = vst [vmem:[%s364 + $0x49] sm:$0xff] %v338
        %372 = vst [vmem:[%s364 + $0x51] sm:$0xff] %v339
        %373 = vst [vmem:[%s364 + $0x61] sm:$0xff] %v340
        %374 = vst [vmem:[%s364 + $0x69] sm:$0xff] %v341
        %375 = vst [vmem:[%s364 + $0x79] sm:$0xff] %v342
        %376 = vst [vmem:[%s364 + $0x81] sm:$0xff] %v343
        %377 = vst [vmem:[%s364 + $0x91] sm:$0xff] %v344
        %378 = vst [vmem:[%s364 + $0x99] sm:$0xff] %v345
        %379 = vst [vmem:[%s364 + $0xa9] sm:$0xff] %v346
        %380 = vst [vmem:[%s364 + $0xb1] sm:$0xff] %v347
        %381 = vst [vmem:[%s364 + $0xc1] sm:$0xff] %v348
        %382 = vst [vmem:[%s364 + $0xc9] sm:$0xff] %v349
        %383 = vst [vmem:[%s364 + $0xd9] sm:$0xff] %v350
        %384 = vst [vmem:[%s364 + $0xe1] sm:$0xff] %v351
        %385 = vst [vmem:[%s364 + $0xf1] sm:$0xff] %v352
        %386 = vst [vmem:[%s364 + $0xf9] sm:$0xff] %v353
        %387 = vst [vmem:[%s364 + $0x109] sm:$0xff] %v354
        %388 = vst [vmem:[%s364 + $0x111] sm:$0xff] %v355
        %389 = vst [vmem:[%s364 + $0x121] sm:$0xff] %v356
        %390 = vst [vmem:[%s364 + $0x129] sm:$0xff] %v357
        %391 = vst [vmem:[%s364 + $0x139] sm:$0xff] %v358
        %392 = vst [vmem:[%s364 + $0x141] sm:$0xff] %v359
        %393 = vst [vmem:[%s364 + $0x151] sm:$0xff] %v360
        %394 = vst [vmem:[%s364 + $0x159] sm:$0xff] %v361
        %395 = vst [vmem:[%s364 + $0x169] sm:$0xff] %v362
        %396 = vst [vmem:[%s364 + $0x171] sm:$0xff] %v363
        %397 = vst [vmem:[#allocation3] sm:$0xff] 0.0
        %398 = vst [vmem:[#allocation3 + $0x8] sm:$0xff] 0.0
        %399 = vst [vmem:[#allocation3 + $0x10] sm:$0x3] 0.0
        %400 = vst [vmem:[#allocation3 + $0x18] sm:$0xff] 0.0
        %401 = vst [vmem:[#allocation3 + $0x20] sm:$0xff] 0.0
        %402 = vst [vmem:[#allocation3 + $0x28] sm:$0x3] 0.0
        %403 = vst [vmem:[#allocation3 + $0x30] sm:$0xff] 0.0
        %404 = vst [vmem:[#allocation3 + $0x38] sm:$0xff] 0.0
        %405 = vst [vmem:[#allocation3 + $0x40] sm:$0x3] 0.0
        %406 = vst [vmem:[#allocation3 + $0x48] sm:$0xff] 0.0
        %407 = vst [vmem:[#allocation3 + $0x50] sm:$0xff] 0.0
        %408 = vst [vmem:[#allocation3 + $0x58] sm:$0x3] 0.0
        %409 = vst [vmem:[#allocation3 + $0x60] sm:$0xff] 0.0
        %410 = vst [vmem:[#allocation3 + $0x68] sm:$0xff] 0.0
        %411 = vst [vmem:[#allocation3 + $0x70] sm:$0x3] 0.0
        %412 = vst [vmem:[#allocation3 + $0x78] sm:$0xff] 0.0
        %413 = vst [vmem:[#allocation3 + $0x80] sm:$0xff] 0.0
        %414 = vst [vmem:[#allocation3 + $0x88] sm:$0x3] 0.0
        %415 = vst [vmem:[#allocation3 + $0x90] sm:$0xff] 0.0
        %416 = vst [vmem:[#allocation3 + $0x98] sm:$0xff] 0.0
        %417 = vst [vmem:[#allocation3 + $0xa0] sm:$0x3] 0.0
        %418 = vst [vmem:[#allocation3 + $0xa8] sm:$0xff] 0.0
        %419 = vst [vmem:[#allocation3 + $0xb0] sm:$0xff] 0.0
        %420 = vst [vmem:[#allocation3 + $0xb8] sm:$0x3] 0.0
        %421 = vst [vmem:[#allocation3 + $0xc0] sm:$0xff] 0.0
        %422 = vst [vmem:[#allocation3 + $0xc8] sm:$0xff] 0.0
        %423 = vst [vmem:[#allocation3 + $0xd0] sm:$0x3] 0.0
        %424 = vst [vmem:[#allocation3 + $0xd8] sm:$0xff] 0.0
        %425 = vst [vmem:[#allocation3 + $0xe0] sm:$0xff] 0.0
        %426 = vst [vmem:[#allocation3 + $0xe8] sm:$0x3] 0.0
        %427 = vst [vmem:[#allocation3 + $0xf0] sm:$0xff] 0.0
        %428 = vst [vmem:[#allocation3 + $0xf8] sm:$0xff] 0.0
        %429 = vst [vmem:[#allocation3 + $0x100] sm:$0x3] 0.0
        %430 = vst [vmem:[#allocation3 + $0x108] sm:$0xff] 0.0
        %431 = vst [vmem:[#allocation3 + $0x110] sm:$0xff] 0.0
        %432 = vst [vmem:[#allocation3 + $0x118] sm:$0x3] 0.0
        %433 = vst [vmem:[#allocation3 + $0x120] sm:$0xff] 0.0
        %434 = vst [vmem:[#allocation3 + $0x128] sm:$0xff] 0.0
        %435 = vst [vmem:[#allocation3 + $0x130] sm:$0x3] 0.0
        %436 = vst [vmem:[#allocation3 + $0x138] sm:$0xff] 0.0
        %437 = vst [vmem:[#allocation3 + $0x140] sm:$0xff] 0.0
        %438 = vst [vmem:[#allocation3 + $0x148] sm:$0x3] 0.0
        %439 = vst [vmem:[#allocation3 + $0x150] sm:$0xff] 0.0
        %440 = vst [vmem:[#allocation3 + $0x158] sm:$0xff] 0.0
        %441 = vst [vmem:[#allocation3 + $0x160] sm:$0x3] 0.0
        %442 = vst [vmem:[#allocation3 + $0x168] sm:$0xff] 0.0
        %443 = vst [vmem:[#allocation3 + $0x170] sm:$0xff] 0.0
        %444 = vst [vmem:[#allocation3 + $0x178] sm:$0x3] 0.0
        %445 = vst [vmem:[#allocation3 + $0x180] sm:$0xff] 0.0
        %446 = vst [vmem:[#allocation3 + $0x188] sm:$0xff] 0.0
        %447 = vst [vmem:[#allocation3 + $0x190] sm:$0x3] 0.0
        %448 = vst [vmem:[#allocation3 + $0x198] sm:$0xff] 0.0
        %449 = vst [vmem:[#allocation3 + $0x1a0] sm:$0xff] 0.0
        %450 = vst [vmem:[#allocation3 + $0x1a8] sm:$0x3] 0.0
        %v451 = vld [vmem:[#allocation2] sm:$0xff]
        %v452 = vld [vmem:[#allocation2 + $0x8] sm:$0xff]
        %v453 = vld [vmem:[#allocation2 + $0x10] sm:$0x3]
        %v454 = vld [vmem:[#allocation2 + $0x18] sm:$0xff]
        %v455 = vld [vmem:[#allocation2 + $0x20] sm:$0xff]
        %v456 = vld [vmem:[#allocation2 + $0x28] sm:$0x3]
        %v457 = vld [vmem:[#allocation2 + $0x30] sm:$0xff]
        %v458 = vld [vmem:[#allocation2 + $0x38] sm:$0xff]
        %v459 = vld [vmem:[#allocation2 + $0x40] sm:$0x3]
        %v460 = vld [vmem:[#allocation2 + $0x48] sm:$0xff]
        %v461 = vld [vmem:[#allocation2 + $0x50] sm:$0xff]
        %v462 = vld [vmem:[#allocation2 + $0x58] sm:$0x3]
        %v463 = vld [vmem:[#allocation2 + $0x60] sm:$0xff]
        %v464 = vld [vmem:[#allocation2 + $0x68] sm:$0xff]
        %v465 = vld [vmem:[#allocation2 + $0x70] sm:$0x3]
        %v466 = vld [vmem:[#allocation2 + $0x78] sm:$0xff]
        %v467 = vld [vmem:[#allocation2 + $0x80] sm:$0xff]
        %v468 = vld [vmem:[#allocation2 + $0x88] sm:$0x3]
        %v469 = vld [vmem:[#allocation2 + $0x90] sm:$0xff]
        %v470 = vld [vmem:[#allocation2 + $0x98] sm:$0xff]
        %v471 = vld [vmem:[#allocation2 + $0xa0] sm:$0x3]
        %v472 = vld [vmem:[#allocation2 + $0xa8] sm:$0xff]
        %v473 = vld [vmem:[#allocation2 + $0xb0] sm:$0xff]
        %v474 = vld [vmem:[#allocation2 + $0xb8] sm:$0x3]
        %v475 = vld [vmem:[#allocation2 + $0xc0] sm:$0xff]
        %v476 = vld [vmem:[#allocation2 + $0xc8] sm:$0xff]
        %v477 = vld [vmem:[#allocation2 + $0xd0] sm:$0x3]
        %v478 = vld [vmem:[#allocation2 + $0xd8] sm:$0xff]
        %v479 = vld [vmem:[#allocation2 + $0xe0] sm:$0xff]
        %v480 = vld [vmem:[#allocation2 + $0xe8] sm:$0x3]
        %v481 = vld [vmem:[#allocation2 + $0xf0] sm:$0xff]
        %v482 = vld [vmem:[#allocation2 + $0xf8] sm:$0xff]
        %v483 = vld [vmem:[#allocation2 + $0x100] sm:$0x3]
        %v484 = vld [vmem:[#allocation2 + $0x108] sm:$0xff]
        %v485 = vld [vmem:[#allocation2 + $0x110] sm:$0xff]
        %v486 = vld [vmem:[#allocation2 + $0x118] sm:$0x3]
        %v487 = vld [vmem:[#allocation2 + $0x120] sm:$0xff]
        %v488 = vld [vmem:[#allocation2 + $0x128] sm:$0xff]
        %v489 = vld [vmem:[#allocation2 + $0x130] sm:$0x3]
        %v490 = vld [vmem:[#allocation2 + $0x138] sm:$0xff]
        %v491 = vld [vmem:[#allocation2 + $0x140] sm:$0xff]
        %v492 = vld [vmem:[#allocation2 + $0x148] sm:$0x3]
        %v493 = vld [vmem:[#allocation2 + $0x150] sm:$0xff]
        %v494 = vld [vmem:[#allocation2 + $0x158] sm:$0xff]
        %v495 = vld [vmem:[#allocation2 + $0x160] sm:$0x3]
        %v496 = vld [vmem:[#allocation2 + $0x168] sm:$0xff]
        %v497 = vld [vmem:[#allocation2 + $0x170] sm:$0xff]
        %v498 = vld [vmem:[#allocation2 + $0x178] sm:$0x3]
        %v499 = vld [vmem:[#allocation2 + $0x180] sm:$0xff]
        %v500 = vld [vmem:[#allocation2 + $0x188] sm:$0xff]
        %v501 = vld [vmem:[#allocation2 + $0x190] sm:$0x3]
        %v502 = vld [vmem:[#allocation2 + $0x198] sm:$0xff]
        %v503 = vld [vmem:[#allocation2 + $0x1a0] sm:$0xff]
        %v504 = vld [vmem:[#allocation2 + $0x1a8] sm:$0x3]
        %vm553 = vcmask 1046528
        %v554 = vrot.slane %v451, 1
        %v555 = vrot.slane %v452, 1
        %v556 = vsel %vm553, %v554, %v555
        %v557 = vrot.slane %v453, 1
        %v558 = vsel %vm553, %v555, %v557
        %v559 = vrot.slane %v454, 1
        %v560 = vrot.slane %v455, 1
        %v561 = vsel %vm553, %v559, %v560
        %v562 = vrot.slane %v456, 1
        %v563 = vsel %vm553, %v560, %v562
        %v564 = vrot.slane %v457, 1
        %v565 = vrot.slane %v458, 1
        %v566 = vsel %vm553, %v564, %v565
        %v567 = vrot.slane %v459, 1
        %v568 = vsel %vm553, %v565, %v567
        %v569 = vrot.slane %v460, 1
        %v570 = vrot.slane %v461, 1
        %v571 = vsel %vm553, %v569, %v570
        %v572 = vrot.slane %v462, 1
        %v573 = vsel %vm553, %v570, %v572
        %v574 = vrot.slane %v463, 1
        %v575 = vrot.slane %v464, 1
        %v576 = vsel %vm553, %v574, %v575
        %v577 = vrot.slane %v465, 1
        %v578 = vsel %vm553, %v575, %v577
        %v579 = vrot.slane %v466, 1
        %v580 = vrot.slane %v467, 1
        %v581 = vsel %vm553, %v579, %v580
        %v582 = vrot.slane %v468, 1
        %v583 = vsel %vm553, %v580, %v582
        %v584 = vrot.slane %v469, 1
        %v585 = vrot.slane %v470, 1
        %v586 = vsel %vm553, %v584, %v585
        %v587 = vrot.slane %v471, 1
        %v588 = vsel %vm553, %v585, %v587
        %v589 = vrot.slane %v472, 1
        %v590 = vrot.slane %v473, 1
        %v591 = vsel %vm553, %v589, %v590
        %v592 = vrot.slane %v474, 1
        %v593 = vsel %vm553, %v590, %v592
        %v594 = vrot.slane %v475, 1
        %v595 = vrot.slane %v476, 1
        %v596 = vsel %vm553, %v594, %v595
        %v597 = vrot.slane %v477, 1
        %v598 = vsel %vm553, %v595, %v597
        %v599 = vrot.slane %v478, 1
        %v600 = vrot.slane %v479, 1
        %v601 = vsel %vm553, %v599, %v600
        %v602 = vrot.slane %v480, 1
        %v603 = vsel %vm553, %v600, %v602
        %v604 = vrot.slane %v481, 1
        %v605 = vrot.slane %v482, 1
        %v606 = vsel %vm553, %v604, %v605
        %v607 = vrot.slane %v483, 1
        %v608 = vsel %vm553, %v605, %v607
        %v609 = vrot.slane %v484, 1
        %v610 = vrot.slane %v485, 1
        %v611 = vsel %vm553, %v609, %v610
        %v612 = vrot.slane %v486, 1
        %v613 = vsel %vm553, %v610, %v612
        %v614 = vrot.slane %v487, 1
        %v615 = vrot.slane %v488, 1
        %v616 = vsel %vm553, %v614, %v615
        %v617 = vrot.slane %v489, 1
        %v618 = vsel %vm553, %v615, %v617
        %v619 = vrot.slane %v490, 1
        %v620 = vrot.slane %v491, 1
        %v621 = vsel %vm553, %v619, %v620
        %v622 = vrot.slane %v492, 1
        %v623 = vsel %vm553, %v620, %v622
        %v624 = vrot.slane %v493, 1
        %v625 = vrot.slane %v494, 1
        %v626 = vsel %vm553, %v624, %v625
        %v627 = vrot.slane %v495, 1
        %v628 = vsel %vm553, %v625, %v627
        %v629 = vrot.slane %v496, 1
        %v630 = vrot.slane %v497, 1
        %v631 = vsel %vm553, %v629, %v630
        %v632 = vrot.slane %v498, 1
        %v633 = vsel %vm553, %v630, %v632
        %vm666 = vcmask 1045504
        %v667 = vrot.slane %v451, 2
        %v668 = vrot.slane %v452, 2
        %v669 = vsel %vm666, %v667, %v668
        %v670 = vrot.slane %v453, 2
        %v671 = vsel %vm666, %v668, %v670
        %v672 = vrot.slane %v454, 2
        %v673 = vrot.slane %v455, 2
        %v674 = vsel %vm666, %v672, %v673
        %v675 = vrot.slane %v456, 2
        %v676 = vsel %vm666, %v673, %v675
        %v677 = vrot.slane %v457, 2
        %v678 = vrot.slane %v458, 2
        %v679 = vsel %vm666, %v677, %v678
        %v680 = vrot.slane %v459, 2
        %v681 = vsel %vm666, %v678, %v680
        %v682 = vrot.slane %v460, 2
        %v683 = vrot.slane %v461, 2
        %v684 = vsel %vm666, %v682, %v683
        %v685 = vrot.slane %v462, 2
        %v686 = vsel %vm666, %v683, %v685
        %v687 = vrot.slane %v463, 2
        %v688 = vrot.slane %v464, 2
        %v689 = vsel %vm666, %v687, %v688
        %v690 = vrot.slane %v465, 2
        %v691 = vsel %vm666, %v688, %v690
        %v692 = vrot.slane %v466, 2
        %v693 = vrot.slane %v467, 2
        %v694 = vsel %vm666, %v692, %v693
        %v695 = vrot.slane %v468, 2
        %v696 = vsel %vm666, %v693, %v695
        %v697 = vrot.slane %v469, 2
        %v698 = vrot.slane %v470, 2
        %v699 = vsel %vm666, %v697, %v698
        %v700 = vrot.slane %v471, 2
        %v701 = vsel %vm666, %v698, %v700
        %v702 = vrot.slane %v472, 2
        %v703 = vrot.slane %v473, 2
        %v704 = vsel %vm666, %v702, %v703
        %v705 = vrot.slane %v474, 2
        %v706 = vsel %vm666, %v703, %v705
        %v707 = vrot.slane %v475, 2
        %v708 = vrot.slane %v476, 2
        %v709 = vsel %vm666, %v707, %v708
        %v710 = vrot.slane %v477, 2
        %v711 = vsel %vm666, %v708, %v710
        %v712 = vrot.slane %v478, 2
        %v713 = vrot.slane %v479, 2
        %v714 = vsel %vm666, %v712, %v713
        %v715 = vrot.slane %v480, 2
        %v716 = vsel %vm666, %v713, %v715
        %v717 = vrot.slane %v481, 2
        %v718 = vrot.slane %v482, 2
        %v719 = vsel %vm666, %v717, %v718
        %v720 = vrot.slane %v483, 2
        %v721 = vsel %vm666, %v718, %v720
        %v722 = vrot.slane %v484, 2
        %v723 = vrot.slane %v485, 2
        %v724 = vsel %vm666, %v722, %v723
        %v725 = vrot.slane %v486, 2
        %v726 = vsel %vm666, %v723, %v725
        %v727 = vrot.slane %v487, 2
        %v728 = vrot.slane %v488, 2
        %v729 = vsel %vm666, %v727, %v728
        %v730 = vrot.slane %v489, 2
        %v731 = vsel %vm666, %v728, %v730
        %v732 = vrot.slane %v490, 2
        %v733 = vrot.slane %v491, 2
        %v734 = vsel %vm666, %v732, %v733
        %v735 = vrot.slane %v492, 2
        %v736 = vsel %vm666, %v733, %v735
        %v737 = vrot.slane %v493, 2
        %v738 = vrot.slane %v494, 2
        %v739 = vsel %vm666, %v737, %v738
        %v740 = vrot.slane %v495, 2
        %v741 = vsel %vm666, %v738, %v740
        %v742 = vrot.slane %v496, 2
        %v743 = vrot.slane %v497, 2
        %v744 = vsel %vm666, %v742, %v743
        %v745 = vrot.slane %v498, 2
        %v746 = vsel %vm666, %v743, %v745
        %v779 = vld [vmem:[#allocation7] sm:$0xff]
        %v780 = vld [vmem:[#allocation7 + $0x8] sm:$0xff]
        %v781 = vld [vmem:[#allocation7 + $0x10] sm:$0xff]
        %v782 = vld [vmem:[#allocation7 + $0x18] sm:$0xff]
        %v783 = vld [vmem:[#allocation7 + $0x20] sm:$0xff]
        %v784 = vld [vmem:[#allocation7 + $0x28] sm:$0xff]
        %v785 = vld [vmem:[#allocation7 + $0x30] sm:$0xff]
        %v786 = vld [vmem:[#allocation7 + $0x38] sm:$0xff]
        %v787 = vld [vmem:[#allocation7 + $0x40] sm:$0xff]
        %v788 = vld [vmem:[#allocation7 + $0x48] sm:$0xff]
        %v789 = vld [vmem:[#allocation7 + $0x50] sm:$0xff]
        %v790 = vld [vmem:[#allocation7 + $0x58] sm:$0xff]
        %v791 = vld [vmem:[#allocation7 + $0x60] sm:$0xff]
        %v792 = vld [vmem:[#allocation7 + $0x68] sm:$0xff]
        %v793 = vld [vmem:[#allocation7 + $0x70] sm:$0xff]
        %v794 = vld [vmem:[#allocation7 + $0x78] sm:$0xff]
        %v795 = vld [vmem:[#allocation7 + $0x80] sm:$0xff]
        %v796 = vld [vmem:[#allocation7 + $0x88] sm:$0xff]
        %v797 = vld [vmem:[#allocation7 + $0x90] sm:$0xff]
        %v798 = vld [vmem:[#allocation7 + $0x98] sm:$0xff]
        %v799 = vld [vmem:[#allocation7 + $0xa0] sm:$0xff]
        %v800 = vld [vmem:[#allocation7 + $0xa8] sm:$0xff]
        %v801 = vld [vmem:[#allocation7 + $0xb0] sm:$0xff]
        %v802 = vld [vmem:[#allocation7 + $0xb8] sm:$0xff]
        %v803 = vld [vmem:[#allocation7 + $0xc0] sm:$0xff]
        %v804 = vld [vmem:[#allocation7 + $0xc8] sm:$0xff]
        %v805 = vld [vmem:[#allocation7 + $0xd0] sm:$0xff]
        %v806 = vld [vmem:[#allocation7 + $0xd8] sm:$0xff]
        %v807 = vld [vmem:[#allocation7 + $0xe0] sm:$0xff]
        %v808 = vld [vmem:[#allocation7 + $0xe8] sm:$0xff]
        %v809 = vld [vmem:[#allocation7 + $0xf0] sm:$0xff]
        %v810 = vld [vmem:[#allocation7 + $0xf8] sm:$0xff]
        %v811 = vld [vmem:[#allocation7 + $0x100] sm:$0xff]
        %v812 = vld [vmem:[#allocation7 + $0x108] sm:$0xff]
        %v813 = vld [vmem:[#allocation7 + $0x110] sm:$0xff]
        %v814 = vld [vmem:[#allocation7 + $0x118] sm:$0xff]
        %v815 = vld [vmem:[#allocation7 + $0x120] sm:$0xff]
        %v816 = vld [vmem:[#allocation7 + $0x128] sm:$0xff]
        %v817 = vld [vmem:[#allocation7 + $0x130] sm:$0xff]
        %v818 = vld [vmem:[#allocation7 + $0x138] sm:$0xff]
        %v819 = vld [vmem:[#allocation7 + $0x140] sm:$0xff]
        %v820 = vld [vmem:[#allocation7 + $0x148] sm:$0xff]
        %v821 = vld [vmem:[#allocation7 + $0x150] sm:$0xff]
        %v822 = vld [vmem:[#allocation7 + $0x158] sm:$0xff]
        %v823 = vld [vmem:[#allocation7 + $0x160] sm:$0xff]
        %v824 = vld [vmem:[#allocation7 + $0x168] sm:$0xff]
        %v825 = vld [vmem:[#allocation7 + $0x170] sm:$0xff]
        %v826 = vld [vmem:[#allocation7 + $0x178] sm:$0xff]
        %v830 = vrot.slane %v499, 1
        %v831 = vrot.slane %v500, 1
        %v832 = vsel %vm553, %v830, %v831
        %v833 = vrot.slane %v501, 1
        %v834 = vsel %vm553, %v831, %v833
        %v837 = vrot.slane %v499, 2
        %v838 = vrot.slane %v500, 2
        %v839 = vsel %vm666, %v837, %v838
        %v840 = vrot.slane %v501, 2
        %v841 = vsel %vm666, %v838, %v840
        %s844 = scalar_lea.vmem [#allocation7], 384
        %v845 = vld [vmem:[%s844] sm:$0xff]
        %v846 = vld [vmem:[%s844 + $0x8] sm:$0xff]
        %v847 = vld [vmem:[%s844 + $0x10] sm:$0xff]
        %v848 = vld [vmem:[%s844 + $0x18] sm:$0xff]
        %v849 = vld [vmem:[%s844 + $0x20] sm:$0xff]
        %v850 = vld [vmem:[%s844 + $0x28] sm:$0xff]
        %v851 = vld [vmem:[%s844 + $0x30] sm:$0xff]
        %v852 = vld [vmem:[%s844 + $0x38] sm:$0xff]
        %v853 = vld [vmem:[%s844 + $0x40] sm:$0xff]
        %v854 = vld [vmem:[%s844 + $0x48] sm:$0xff]
        %v855 = vld [vmem:[%s844 + $0x50] sm:$0xff]
        %v856 = vld [vmem:[%s844 + $0x58] sm:$0xff]
        %v857 = vld [vmem:[%s844 + $0x60] sm:$0xff]
        %v858 = vld [vmem:[%s844 + $0x68] sm:$0xff]
        %v859 = vld [vmem:[%s844 + $0x70] sm:$0xff]
        %v860 = vld [vmem:[%s844 + $0x78] sm:$0xff]
        %v861 = vld [vmem:[%s844 + $0x80] sm:$0xff]
        %v862 = vld [vmem:[%s844 + $0x88] sm:$0xff]
        %v863 = vld [vmem:[%s844 + $0x90] sm:$0xff]
        %v864 = vld [vmem:[%s844 + $0x98] sm:$0xff]
        %v865 = vld [vmem:[%s844 + $0xa0] sm:$0xff]
        %v866 = vld [vmem:[%s844 + $0xa8] sm:$0xff]
        %v867 = vld [vmem:[%s844 + $0xb0] sm:$0xff]
        %v868 = vld [vmem:[%s844 + $0xb8] sm:$0xff]
        %v869 = vld [vmem:[%s844 + $0xc0] sm:$0xff]
        %v870 = vld [vmem:[%s844 + $0xc8] sm:$0xff]
        %v871 = vld [vmem:[%s844 + $0xd0] sm:$0xff]
        %v872 = vld [vmem:[%s844 + $0xd8] sm:$0xff]
        %v873 = vld [vmem:[%s844 + $0xe0] sm:$0xff]
        %v874 = vld [vmem:[%s844 + $0xe8] sm:$0xff]
        %v875 = vld [vmem:[%s844 + $0xf0] sm:$0xff]
        %v876 = vld [vmem:[%s844 + $0xf8] sm:$0xff]
        %v877 = vld [vmem:[%s844 + $0x100] sm:$0xff]
        %v878 = vld [vmem:[%s844 + $0x108] sm:$0xff]
        %v879 = vld [vmem:[%s844 + $0x110] sm:$0xff]
        %v880 = vld [vmem:[%s844 + $0x118] sm:$0xff]
        %v881 = vld [vmem:[%s844 + $0x120] sm:$0xff]
        %v882 = vld [vmem:[%s844 + $0x128] sm:$0xff]
        %v883 = vld [vmem:[%s844 + $0x130] sm:$0xff]
        %v884 = vld [vmem:[%s844 + $0x138] sm:$0xff]
        %v885 = vld [vmem:[%s844 + $0x140] sm:$0xff]
        %v886 = vld [vmem:[%s844 + $0x148] sm:$0xff]
        %v887 = vld [vmem:[%s844 + $0x150] sm:$0xff]
        %v888 = vld [vmem:[%s844 + $0x158] sm:$0xff]
        %v889 = vld [vmem:[%s844 + $0x160] sm:$0xff]
        %v890 = vld [vmem:[%s844 + $0x168] sm:$0xff]
        %v891 = vld [vmem:[%s844 + $0x170] sm:$0xff]
        %v892 = vld [vmem:[%s844 + $0x178] sm:$0xff]
        %893 = vmatpush.msra.mxu0 %v860
        %894 = vmatpush.msra.mxu0 %v859
        %895 = vmatpush.msra.mxu0 %v858
        %896 = vmatpush.msra.mxu0 %v857
        %897 = vmatpush.msra.mxu0 %v856
        %898 = vmatpush.msra.mxu0 %v855
        %899 = vmatpush.msra.mxu0 %v854
        %900 = vmatpush.msra.mxu0 %v853
        %901 = vmatpush.msra.mxu0 %v852
        %902 = vmatpush.msra.mxu0 %v851
        %903 = vmatpush.msra.mxu0 %v850
        %904 = vmatpush.msra.mxu0 %v849
        %905 = vmatpush.msra.mxu0 %v848
        %906 = vmatpush.msra.mxu0 %v847
        %907 = vmatpush.msra.mxu0 %v846
        %908 = vmatpush.msra.mxu0 %v845
        %909 = vmatmul.f32.gmra.mxu0 %v454
        %v910 = vpop.f32.mrf.mxu0
        %v911 = vadd.f32 0.0, %v910
        %912 = vmatmul.f32.gmra.mxu0 %v455
        %v913 = vpop.f32.mrf.mxu0
        %v914 = vadd.f32 0.0, %v913
        %915 = vmatmul.f32.gmra.mxu0 %v457
        %v916 = vpop.f32.mrf.mxu0
        %v917 = vadd.f32 0.0, %v916
        %918 = vmatmul.f32.gmra.mxu0 %v458
        %v919 = vpop.f32.mrf.mxu0
        %v920 = vadd.f32 0.0, %v919
        %921 = vmatmul.f32.gmra.mxu0 %v460
        %v922 = vpop.f32.mrf.mxu0
        %v923 = vadd.f32 0.0, %v922
        %924 = vmatmul.f32.gmra.mxu0 %v461
        %v925 = vpop.f32.mrf.mxu0
        %v926 = vadd.f32 0.0, %v925
        %927 = vmatmul.f32.gmra.mxu0 %v463
        %v928 = vpop.f32.mrf.mxu0
        %v929 = vadd.f32 0.0, %v928
        %930 = vmatmul.f32.gmra.mxu0 %v464
        %v931 = vpop.f32.mrf.mxu0
        %v932 = vadd.f32 0.0, %v931
        %933 = vmatmul.f32.gmra.mxu0 %v466
        %v934 = vpop.f32.mrf.mxu0
        %v935 = vadd.f32 0.0, %v934
        %936 = vmatmul.f32.gmra.mxu0 %v467
        %v937 = vpop.f32.mrf.mxu0
        %v938 = vadd.f32 0.0, %v937
        %939 = vmatmul.f32.gmra.mxu0 %v469
        %v940 = vpop.f32.mrf.mxu0
        %v941 = vadd.f32 0.0, %v940
        %942 = vmatmul.f32.gmra.mxu0 %v470
        %v943 = vpop.f32.mrf.mxu0
        %v944 = vadd.f32 0.0, %v943
        %945 = vmatmul.f32.gmra.mxu0 %v472
        %v946 = vpop.f32.mrf.mxu0
        %v947 = vadd.f32 0.0, %v946
        %948 = vmatmul.f32.gmra.mxu0 %v473
        %v949 = vpop.f32.mrf.mxu0
        %v950 = vadd.f32 0.0, %v949
        %951 = vmatmul.f32.gmra.mxu0 %v475
        %v952 = vpop.f32.mrf.mxu0
        %v953 = vadd.f32 0.0, %v952
        %954 = vmatmul.f32.gmra.mxu0 %v476
        %v955 = vpop.f32.mrf.mxu0
        %v956 = vadd.f32 0.0, %v955
        %957 = vmatmul.f32.gmra.mxu0 %v478
        %v958 = vpop.f32.mrf.mxu0
        %v959 = vadd.f32 0.0, %v958
        %960 = vmatmul.f32.gmra.mxu0 %v479
        %v961 = vpop.f32.mrf.mxu0
        %v962 = vadd.f32 0.0, %v961
        %963 = vmatmul.f32.gmra.mxu0 %v481
        %v964 = vpop.f32.mrf.mxu0
        %v965 = vadd.f32 0.0, %v964
        %966 = vmatmul.f32.gmra.mxu0 %v482
        %v967 = vpop.f32.mrf.mxu0
        %v968 = vadd.f32 0.0, %v967
        %969 = vmatmul.f32.gmra.mxu0 %v484
        %v970 = vpop.f32.mrf.mxu0
        %v971 = vadd.f32 0.0, %v970
        %972 = vmatmul.f32.gmra.mxu0 %v485
        %v973 = vpop.f32.mrf.mxu0
        %v974 = vadd.f32 0.0, %v973
        %975 = vmatmul.f32.gmra.mxu0 %v487
        %v976 = vpop.f32.mrf.mxu0
        %v977 = vadd.f32 0.0, %v976
        %978 = vmatmul.f32.gmra.mxu0 %v488
        %v979 = vpop.f32.mrf.mxu0
        %v980 = vadd.f32 0.0, %v979
        %981 = vmatmul.f32.gmra.mxu0 %v490
        %v982 = vpop.f32.mrf.mxu0
        %v983 = vadd.f32 0.0, %v982
        %984 = vmatmul.f32.gmra.mxu0 %v491
        %v985 = vpop.f32.mrf.mxu0
        %v986 = vadd.f32 0.0, %v985
        %987 = vmatmul.f32.gmra.mxu0 %v493
        %v988 = vpop.f32.mrf.mxu0
        %v989 = vadd.f32 0.0, %v988
        %990 = vmatmul.f32.gmra.mxu0 %v494
        %v991 = vpop.f32.mrf.mxu0
        %v992 = vadd.f32 0.0, %v991
        %993 = vmatmul.f32.gmra.mxu0 %v496
        %v994 = vpop.f32.mrf.mxu0
        %v995 = vadd.f32 0.0, %v994
        %996 = vmatmul.f32.gmra.mxu0 %v497
        %v997 = vpop.f32.mrf.mxu0
        %v998 = vadd.f32 0.0, %v997
        %999 = vmatmul.f32.gmra.mxu0 %v499
        %v1000 = vpop.f32.mrf.mxu0
        %v1001 = vadd.f32 0.0, %v1000
        %1002 = vmatmul.f32.gmra.mxu0 %v500
        %v1003 = vpop.f32.mrf.mxu0
        %v1004 = vadd.f32 0.0, %v1003
        %1005 = vdwg.mxu0
        %1006 = vmatpush.msra.mxu0 %v876
        %1007 = vmatpush.msra.mxu0 %v875
        %1008 = vmatpush.msra.mxu0 %v874
        %1009 = vmatpush.msra.mxu0 %v873
        %1010 = vmatpush.msra.mxu0 %v872
        %1011 = vmatpush.msra.mxu0 %v871
        %1012 = vmatpush.msra.mxu0 %v870
        %1013 = vmatpush.msra.mxu0 %v869
        %1014 = vmatpush.msra.mxu0 %v868
        %1015 = vmatpush.msra.mxu0 %v867
        %1016 = vmatpush.msra.mxu0 %v866
        %1017 = vmatpush.msra.mxu0 %v865
        %1018 = vmatpush.msra.mxu0 %v864
        %1019 = vmatpush.msra.mxu0 %v863
        %1020 = vmatpush.msra.mxu0 %v862
        %1021 = vmatpush.msra.mxu0 %v861
        %1022 = vmatmul.f32.gmra.mxu0 %v561
        %v1023 = vpop.f32.mrf.mxu0
        %v1024 = vadd.f32 %v911, %v1023
        %1025 = vmatmul.f32.gmra.mxu0 %v563
        %v1026 = vpop.f32.mrf.mxu0
        %v1027 = vadd.f32 %v914, %v1026
        %1028 = vmatmul.f32.gmra.mxu0 %v566
        %v1029 = vpop.f32.mrf.mxu0
        %v1030 = vadd.f32 %v917, %v1029
        %1031 = vmatmul.f32.gmra.mxu0 %v568
        %v1032 = vpop.f32.mrf.mxu0
        %v1033 = vadd.f32 %v920, %v1032
        %1034 = vmatmul.f32.gmra.mxu0 %v571
        %v1035 = vpop.f32.mrf.mxu0
        %v1036 = vadd.f32 %v923, %v1035
        %1037 = vmatmul.f32.gmra.mxu0 %v573
        %v1038 = vpop.f32.mrf.mxu0
        %v1039 = vadd.f32 %v926, %v1038
        %1040 = vmatmul.f32.gmra.mxu0 %v576
        %v1041 = vpop.f32.mrf.mxu0
        %v1042 = vadd.f32 %v929, %v1041
        %1043 = vmatmul.f32.gmra.mxu0 %v578
        %v1044 = vpop.f32.mrf.mxu0
        %v1045 = vadd.f32 %v932, %v1044
        %1046 = vmatmul.f32.gmra.mxu0 %v581
        %v1047 = vpop.f32.mrf.mxu0
        %v1048 = vadd.f32 %v935, %v1047
        %1049 = vmatmul.f32.gmra.mxu0 %v583
        %v1050 = vpop.f32.mrf.mxu0
        %v1051 = vadd.f32 %v938, %v1050
        %1052 = vmatmul.f32.gmra.mxu0 %v586
        %v1053 = vpop.f32.mrf.mxu0
        %v1054 = vadd.f32 %v941, %v1053
        %1055 = vmatmul.f32.gmra.mxu0 %v588
        %v1056 = vpop.f32.mrf.mxu0
        %v1057 = vadd.f32 %v944, %v1056
        %1058 = vmatmul.f32.gmra.mxu0 %v591
        %v1059 = vpop.f32.mrf.mxu0
        %v1060 = vadd.f32 %v947, %v1059
        %1061 = vmatmul.f32.gmra.mxu0 %v593
        %v1062 = vpop.f32.mrf.mxu0
        %v1063 = vadd.f32 %v950, %v1062
        %1064 = vmatmul.f32.gmra.mxu0 %v596
        %v1065 = vpop.f32.mrf.mxu0
        %v1066 = vadd.f32 %v953, %v1065
        %1067 = vmatmul.f32.gmra.mxu0 %v598
        %v1068 = vpop.f32.mrf.mxu0
        %v1069 = vadd.f32 %v956, %v1068
        %1070 = vmatmul.f32.gmra.mxu0 %v601
        %v1071 = vpop.f32.mrf.mxu0
        %v1072 = vadd.f32 %v959, %v1071
        %1073 = vmatmul.f32.gmra.mxu0 %v603
        %v1074 = vpop.f32.mrf.mxu0
        %v1075 = vadd.f32 %v962, %v1074
        %1076 = vmatmul.f32.gmra.mxu0 %v606
        %v1077 = vpop.f32.mrf.mxu0
        %v1078 = vadd.f32 %v965, %v1077
        %1079 = vmatmul.f32.gmra.mxu0 %v608
        %v1080 = vpop.f32.mrf.mxu0
        %v1081 = vadd.f32 %v968, %v1080
        %1082 = vmatmul.f32.gmra.mxu0 %v611
        %v1083 = vpop.f32.mrf.mxu0
        %v1084 = vadd.f32 %v971, %v1083
        %1085 = vmatmul.f32.gmra.mxu0 %v613
        %v1086 = vpop.f32.mrf.mxu0
        %v1087 = vadd.f32 %v974, %v1086
        %1088 = vmatmul.f32.gmra.mxu0 %v616
        %v1089 = vpop.f32.mrf.mxu0
        %v1090 = vadd.f32 %v977, %v1089
        %1091 = vmatmul.f32.gmra.mxu0 %v618
        %v1092 = vpop.f32.mrf.mxu0
        %v1093 = vadd.f32 %v980, %v1092
        %1094 = vmatmul.f32.gmra.mxu0 %v621
        %v1095 = vpop.f32.mrf.mxu0
        %v1096 = vadd.f32 %v983, %v1095
        %1097 = vmatmul.f32.gmra.mxu0 %v623
        %v1098 = vpop.f32.mrf.mxu0
        %v1099 = vadd.f32 %v986, %v1098
        %1100 = vmatmul.f32.gmra.mxu0 %v626
        %v1101 = vpop.f32.mrf.mxu0
        %v1102 = vadd.f32 %v989, %v1101
        %1103 = vmatmul.f32.gmra.mxu0 %v628
        %v1104 = vpop.f32.mrf.mxu0
        %v1105 = vadd.f32 %v992, %v1104
        %1106 = vmatmul.f32.gmra.mxu0 %v631
        %v1107 = vpop.f32.mrf.mxu0
        %v1108 = vadd.f32 %v995, %v1107
        %1109 = vmatmul.f32.gmra.mxu0 %v633
        %v1110 = vpop.f32.mrf.mxu0
        %v1111 = vadd.f32 %v998, %v1110
        %1112 = vmatmul.f32.gmra.mxu0 %v832
        %v1113 = vpop.f32.mrf.mxu0
        %v1114 = vadd.f32 %v1001, %v1113
        %1115 = vmatmul.f32.gmra.mxu0 %v834
        %v1116 = vpop.f32.mrf.mxu0
        %v1117 = vadd.f32 %v1004, %v1116
        %1118 = vdwg.mxu0
        %1119 = vmatpush.msra.mxu0 %v892
        %1120 = vmatpush.msra.mxu0 %v891
        %1121 = vmatpush.msra.mxu0 %v890
        %1122 = vmatpush.msra.mxu0 %v889
        %1123 = vmatpush.msra.mxu0 %v888
        %1124 = vmatpush.msra.mxu0 %v887
        %1125 = vmatpush.msra.mxu0 %v886
        %1126 = vmatpush.msra.mxu0 %v885
        %1127 = vmatpush.msra.mxu0 %v884
        %1128 = vmatpush.msra.mxu0 %v883
        %1129 = vmatpush.msra.mxu0 %v882
        %1130 = vmatpush.msra.mxu0 %v881
        %1131 = vmatpush.msra.mxu0 %v880
        %1132 = vmatpush.msra.mxu0 %v879
        %1133 = vmatpush.msra.mxu0 %v878
        %1134 = vmatpush.msra.mxu0 %v877
        %1135 = vmatmul.f32.gmra.mxu0 %v674
        %v1136 = vpop.f32.mrf.mxu0
        %v1137 = vadd.f32 %v1024, %v1136
        %1138 = vmatmul.f32.gmra.mxu0 %v676
        %v1139 = vpop.f32.mrf.mxu0
        %v1140 = vadd.f32 %v1027, %v1139
        %1141 = vmatmul.f32.gmra.mxu0 %v679
        %v1142 = vpop.f32.mrf.mxu0
        %v1143 = vadd.f32 %v1030, %v1142
        %1144 = vmatmul.f32.gmra.mxu0 %v681
        %v1145 = vpop.f32.mrf.mxu0
        %v1146 = vadd.f32 %v1033, %v1145
        %1147 = vmatmul.f32.gmra.mxu0 %v684
        %v1148 = vpop.f32.mrf.mxu0
        %v1149 = vadd.f32 %v1036, %v1148
        %1150 = vmatmul.f32.gmra.mxu0 %v686
        %v1151 = vpop.f32.mrf.mxu0
        %v1152 = vadd.f32 %v1039, %v1151
        %1153 = vmatmul.f32.gmra.mxu0 %v689
        %v1154 = vpop.f32.mrf.mxu0
        %v1155 = vadd.f32 %v1042, %v1154
        %1156 = vmatmul.f32.gmra.mxu0 %v691
        %v1157 = vpop.f32.mrf.mxu0
        %v1158 = vadd.f32 %v1045, %v1157
        %1159 = vmatmul.f32.gmra.mxu0 %v694
        %v1160 = vpop.f32.mrf.mxu0
        %v1161 = vadd.f32 %v1048, %v1160
        %1162 = vmatmul.f32.gmra.mxu0 %v696
        %v1163 = vpop.f32.mrf.mxu0
        %v1164 = vadd.f32 %v1051, %v1163
        %1165 = vmatmul.f32.gmra.mxu0 %v699
        %v1166 = vpop.f32.mrf.mxu0
        %v1167 = vadd.f32 %v1054, %v1166
        %1168 = vmatmul.f32.gmra.mxu0 %v701
        %v1169 = vpop.f32.mrf.mxu0
        %v1170 = vadd.f32 %v1057, %v1169
        %1171 = vmatmul.f32.gmra.mxu0 %v704
        %v1172 = vpop.f32.mrf.mxu0
        %v1173 = vadd.f32 %v1060, %v1172
        %1174 = vmatmul.f32.gmra.mxu0 %v706
        %v1175 = vpop.f32.mrf.mxu0
        %v1176 = vadd.f32 %v1063, %v1175
        %1177 = vmatmul.f32.gmra.mxu0 %v709
        %v1178 = vpop.f32.mrf.mxu0
        %v1179 = vadd.f32 %v1066, %v1178
        %1180 = vmatmul.f32.gmra.mxu0 %v711
        %v1181 = vpop.f32.mrf.mxu0
        %v1182 = vadd.f32 %v1069, %v1181
        %1183 = vmatmul.f32.gmra.mxu0 %v714
        %v1184 = vpop.f32.mrf.mxu0
        %v1185 = vadd.f32 %v1072, %v1184
        %1186 = vmatmul.f32.gmra.mxu0 %v716
        %v1187 = vpop.f32.mrf.mxu0
        %v1188 = vadd.f32 %v1075, %v1187
        %1189 = vmatmul.f32.gmra.mxu0 %v719
        %v1190 = vpop.f32.mrf.mxu0
        %v1191 = vadd.f32 %v1078, %v1190
        %1192 = vmatmul.f32.gmra.mxu0 %v721
        %v1193 = vpop.f32.mrf.mxu0
        %v1194 = vadd.f32 %v1081, %v1193
        %1195 = vmatmul.f32.gmra.mxu0 %v724
        %v1196 = vpop.f32.mrf.mxu0
        %v1197 = vadd.f32 %v1084, %v1196
        %1198 = vmatmul.f32.gmra.mxu0 %v726
        %v1199 = vpop.f32.mrf.mxu0
        %v1200 = vadd.f32 %v1087, %v1199
        %1201 = vmatmul.f32.gmra.mxu0 %v729
        %v1202 = vpop.f32.mrf.mxu0
        %v1203 = vadd.f32 %v1090, %v1202
        %1204 = vmatmul.f32.gmra.mxu0 %v731
        %v1205 = vpop.f32.mrf.mxu0
        %v1206 = vadd.f32 %v1093, %v1205
        %1207 = vmatmul.f32.gmra.mxu0 %v734
        %v1208 = vpop.f32.mrf.mxu0
        %v1209 = vadd.f32 %v1096, %v1208
        %1210 = vmatmul.f32.gmra.mxu0 %v736
        %v1211 = vpop.f32.mrf.mxu0
        %v1212 = vadd.f32 %v1099, %v1211
        %1213 = vmatmul.f32.gmra.mxu0 %v739
        %v1214 = vpop.f32.mrf.mxu0
        %v1215 = vadd.f32 %v1102, %v1214
        %1216 = vmatmul.f32.gmra.mxu0 %v741
        %v1217 = vpop.f32.mrf.mxu0
        %v1218 = vadd.f32 %v1105, %v1217
        %1219 = vmatmul.f32.gmra.mxu0 %v744
        %v1220 = vpop.f32.mrf.mxu0
        %v1221 = vadd.f32 %v1108, %v1220
        %1222 = vmatmul.f32.gmra.mxu0 %v746
        %v1223 = vpop.f32.mrf.mxu0
        %v1224 = vadd.f32 %v1111, %v1223
        %1225 = vmatmul.f32.gmra.mxu0 %v839
        %v1226 = vpop.f32.mrf.mxu0
        %v1227 = vadd.f32 %v1114, %v1226
        %1228 = vmatmul.f32.gmra.mxu0 %v841
        %v1229 = vpop.f32.mrf.mxu0
        %v1230 = vadd.f32 %v1117, %v1229
        %1231 = vdwg.mxu0
        %1232 = vmatpush.msra.mxu0 %v794
        %1233 = vmatpush.msra.mxu0 %v793
        %1234 = vmatpush.msra.mxu0 %v792
        %1235 = vmatpush.msra.mxu0 %v791
        %1236 = vmatpush.msra.mxu0 %v790
        %1237 = vmatpush.msra.mxu0 %v789
        %1238 = vmatpush.msra.mxu0 %v788
        %1239 = vmatpush.msra.mxu0 %v787
        %1240 = vmatpush.msra.mxu0 %v786
        %1241 = vmatpush.msra.mxu0 %v785
        %1242 = vmatpush.msra.mxu0 %v784
        %1243 = vmatpush.msra.mxu0 %v783
        %1244 = vmatpush.msra.mxu0 %v782
        %1245 = vmatpush.msra.mxu0 %v781
        %1246 = vmatpush.msra.mxu0 %v780
        %1247 = vmatpush.msra.mxu0 %v779
        %1248 = vmatmul.f32.gmra.mxu0 %v451
        %v1249 = vpop.f32.mrf.mxu0
        %v1250 = vadd.f32 %v1137, %v1249
        %1251 = vmatmul.f32.gmra.mxu0 %v452
        %v1252 = vpop.f32.mrf.mxu0
        %v1253 = vadd.f32 %v1140, %v1252
        %1254 = vmatmul.f32.gmra.mxu0 %v454
        %v1255 = vpop.f32.mrf.mxu0
        %v1256 = vadd.f32 %v1143, %v1255
        %1257 = vmatmul.f32.gmra.mxu0 %v455
        %v1258 = vpop.f32.mrf.mxu0
        %v1259 = vadd.f32 %v1146, %v1258
        %1260 = vmatmul.f32.gmra.mxu0 %v457
        %v1261 = vpop.f32.mrf.mxu0
        %v1262 = vadd.f32 %v1149, %v1261
        %1263 = vmatmul.f32.gmra.mxu0 %v458
        %v1264 = vpop.f32.mrf.mxu0
        %v1265 = vadd.f32 %v1152, %v1264
        %1266 = vmatmul.f32.gmra.mxu0 %v460
        %v1267 = vpop.f32.mrf.mxu0
        %v1268 = vadd.f32 %v1155, %v1267
        %1269 = vmatmul.f32.gmra.mxu0 %v461
        %v1270 = vpop.f32.mrf.mxu0
        %v1271 = vadd.f32 %v1158, %v1270
        %1272 = vmatmul.f32.gmra.mxu0 %v463
        %v1273 = vpop.f32.mrf.mxu0
        %v1274 = vadd.f32 %v1161, %v1273
        %1275 = vmatmul.f32.gmra.mxu0 %v464
        %v1276 = vpop.f32.mrf.mxu0
        %v1277 = vadd.f32 %v1164, %v1276
        %1278 = vmatmul.f32.gmra.mxu0 %v466
        %v1279 = vpop.f32.mrf.mxu0
        %v1280 = vadd.f32 %v1167, %v1279
        %1281 = vmatmul.f32.gmra.mxu0 %v467
        %v1282 = vpop.f32.mrf.mxu0
        %v1283 = vadd.f32 %v1170, %v1282
        %1284 = vmatmul.f32.gmra.mxu0 %v469
        %v1285 = vpop.f32.mrf.mxu0
        %v1286 = vadd.f32 %v1173, %v1285
        %1287 = vmatmul.f32.gmra.mxu0 %v470
        %v1288 = vpop.f32.mrf.mxu0
        %v1289 = vadd.f32 %v1176, %v1288
        %1290 = vmatmul.f32.gmra.mxu0 %v472
        %v1291 = vpop.f32.mrf.mxu0
        %v1292 = vadd.f32 %v1179, %v1291
        %1293 = vmatmul.f32.gmra.mxu0 %v473
        %v1294 = vpop.f32.mrf.mxu0
        %v1295 = vadd.f32 %v1182, %v1294
        %1296 = vmatmul.f32.gmra.mxu0 %v475
        %v1297 = vpop.f32.mrf.mxu0
        %v1298 = vadd.f32 %v1185, %v1297
        %1299 = vmatmul.f32.gmra.mxu0 %v476
        %v1300 = vpop.f32.mrf.mxu0
        %v1301 = vadd.f32 %v1188, %v1300
        %1302 = vmatmul.f32.gmra.mxu0 %v478
        %v1303 = vpop.f32.mrf.mxu0
        %v1304 = vadd.f32 %v1191, %v1303
        %1305 = vmatmul.f32.gmra.mxu0 %v479
        %v1306 = vpop.f32.mrf.mxu0
        %v1307 = vadd.f32 %v1194, %v1306
        %1308 = vmatmul.f32.gmra.mxu0 %v481
        %v1309 = vpop.f32.mrf.mxu0
        %v1310 = vadd.f32 %v1197, %v1309
        %1311 = vmatmul.f32.gmra.mxu0 %v482
        %v1312 = vpop.f32.mrf.mxu0
        %v1313 = vadd.f32 %v1200, %v1312
        %1314 = vmatmul.f32.gmra.mxu0 %v484
        %v1315 = vpop.f32.mrf.mxu0
        %v1316 = vadd.f32 %v1203, %v1315
        %1317 = vmatmul.f32.gmra.mxu0 %v485
        %v1318 = vpop.f32.mrf.mxu0
        %v1319 = vadd.f32 %v1206, %v1318
        %1320 = vmatmul.f32.gmra.mxu0 %v487
        %v1321 = vpop.f32.mrf.mxu0
        %v1322 = vadd.f32 %v1209, %v1321
        %1323 = vmatmul.f32.gmra.mxu0 %v488
        %v1324 = vpop.f32.mrf.mxu0
        %v1325 = vadd.f32 %v1212, %v1324
        %1326 = vmatmul.f32.gmra.mxu0 %v490
        %v1327 = vpop.f32.mrf.mxu0
        %v1328 = vadd.f32 %v1215, %v1327
        %1329 = vmatmul.f32.gmra.mxu0 %v491
        %v1330 = vpop.f32.mrf.mxu0
        %v1331 = vadd.f32 %v1218, %v1330
        %1332 = vmatmul.f32.gmra.mxu0 %v493
        %v1333 = vpop.f32.mrf.mxu0
        %v1334 = vadd.f32 %v1221, %v1333
        %1335 = vmatmul.f32.gmra.mxu0 %v494
        %v1336 = vpop.f32.mrf.mxu0
        %v1337 = vadd.f32 %v1224, %v1336
        %1338 = vmatmul.f32.gmra.mxu0 %v496
        %v1339 = vpop.f32.mrf.mxu0
        %v1340 = vadd.f32 %v1227, %v1339
        %1341 = vmatmul.f32.gmra.mxu0 %v497
        %v1342 = vpop.f32.mrf.mxu0
        %v1343 = vadd.f32 %v1230, %v1342
        %1344 = vdwg.mxu0
        %1345 = vmatpush.msra.mxu0 %v810
        %1346 = vmatpush.msra.mxu0 %v809
        %1347 = vmatpush.msra.mxu0 %v808
        %1348 = vmatpush.msra.mxu0 %v807
        %1349 = vmatpush.msra.mxu0 %v806
        %1350 = vmatpush.msra.mxu0 %v805
        %1351 = vmatpush.msra.mxu0 %v804
        %1352 = vmatpush.msra.mxu0 %v803
        %1353 = vmatpush.msra.mxu0 %v802
        %1354 = vmatpush.msra.mxu0 %v801
        %1355 = vmatpush.msra.mxu0 %v800
        %1356 = vmatpush.msra.mxu0 %v799
        %1357 = vmatpush.msra.mxu0 %v798
        %1358 = vmatpush.msra.mxu0 %v797
        %1359 = vmatpush.msra.mxu0 %v796
        %1360 = vmatpush.msra.mxu0 %v795
        %1361 = vmatmul.f32.gmra.mxu0 %v556
        %v1362 = vpop.f32.mrf.mxu0
        %v1363 = vadd.f32 %v1250, %v1362
        %1364 = vmatmul.f32.gmra.mxu0 %v558
        %v1365 = vpop.f32.mrf.mxu0
        %v1366 = vadd.f32 %v1253, %v1365
        %1367 = vmatmul.f32.gmra.mxu0 %v561
        %v1368 = vpop.f32.mrf.mxu0
        %v1369 = vadd.f32 %v1256, %v1368
        %1370 = vmatmul.f32.gmra.mxu0 %v563
        %v1371 = vpop.f32.mrf.mxu0
        %v1372 = vadd.f32 %v1259, %v1371
        %1373 = vmatmul.f32.gmra.mxu0 %v566
        %v1374 = vpop.f32.mrf.mxu0
        %v1375 = vadd.f32 %v1262, %v1374
        %1376 = vmatmul.f32.gmra.mxu0 %v568
        %v1377 = vpop.f32.mrf.mxu0
        %v1378 = vadd.f32 %v1265, %v1377
        %1379 = vmatmul.f32.gmra.mxu0 %v571
        %v1380 = vpop.f32.mrf.mxu0
        %v1381 = vadd.f32 %v1268, %v1380
        %1382 = vmatmul.f32.gmra.mxu0 %v573
        %v1383 = vpop.f32.mrf.mxu0
        %v1384 = vadd.f32 %v1271, %v1383
        %1385 = vmatmul.f32.gmra.mxu0 %v576
        %v1386 = vpop.f32.mrf.mxu0
        %v1387 = vadd.f32 %v1274, %v1386
        %1388 = vmatmul.f32.gmra.mxu0 %v578
        %v1389 = vpop.f32.mrf.mxu0
        %v1390 = vadd.f32 %v1277, %v1389
        %1391 = vmatmul.f32.gmra.mxu0 %v581
        %v1392 = vpop.f32.mrf.mxu0
        %v1393 = vadd.f32 %v1280, %v1392
        %1394 = vmatmul.f32.gmra.mxu0 %v583
        %v1395 = vpop.f32.mrf.mxu0
        %v1396 = vadd.f32 %v1283, %v1395
        %1397 = vmatmul.f32.gmra.mxu0 %v586
        %v1398 = vpop.f32.mrf.mxu0
        %v1399 = vadd.f32 %v1286, %v1398
        %1400 = vmatmul.f32.gmra.mxu0 %v588
        %v1401 = vpop.f32.mrf.mxu0
        %v1402 = vadd.f32 %v1289, %v1401
        %1403 = vmatmul.f32.gmra.mxu0 %v591
        %v1404 = vpop.f32.mrf.mxu0
        %v1405 = vadd.f32 %v1292, %v1404
        %1406 = vmatmul.f32.gmra.mxu0 %v593
        %v1407 = vpop.f32.mrf.mxu0
        %v1408 = vadd.f32 %v1295, %v1407
        %1409 = vmatmul.f32.gmra.mxu0 %v596
        %v1410 = vpop.f32.mrf.mxu0
        %v1411 = vadd.f32 %v1298, %v1410
        %1412 = vmatmul.f32.gmra.mxu0 %v598
        %v1413 = vpop.f32.mrf.mxu0
        %v1414 = vadd.f32 %v1301, %v1413
        %1415 = vmatmul.f32.gmra.mxu0 %v601
        %v1416 = vpop.f32.mrf.mxu0
        %v1417 = vadd.f32 %v1304, %v1416
        %1418 = vmatmul.f32.gmra.mxu0 %v603
        %v1419 = vpop.f32.mrf.mxu0
        %v1420 = vadd.f32 %v1307, %v1419
        %1421 = vmatmul.f32.gmra.mxu0 %v606
        %v1422 = vpop.f32.mrf.mxu0
        %v1423 = vadd.f32 %v1310, %v1422
        %1424 = vmatmul.f32.gmra.mxu0 %v608
        %v1425 = vpop.f32.mrf.mxu0
        %v1426 = vadd.f32 %v1313, %v1425
        %1427 = vmatmul.f32.gmra.mxu0 %v611
        %v1428 = vpop.f32.mrf.mxu0
        %v1429 = vadd.f32 %v1316, %v1428
        %1430 = vmatmul.f32.gmra.mxu0 %v613
        %v1431 = vpop.f32.mrf.mxu0
        %v1432 = vadd.f32 %v1319, %v1431
        %1433 = vmatmul.f32.gmra.mxu0 %v616
        %v1434 = vpop.f32.mrf.mxu0
        %v1435 = vadd.f32 %v1322, %v1434
        %1436 = vmatmul.f32.gmra.mxu0 %v618
        %v1437 = vpop.f32.mrf.mxu0
        %v1438 = vadd.f32 %v1325, %v1437
        %1439 = vmatmul.f32.gmra.mxu0 %v621
        %v1440 = vpop.f32.mrf.mxu0
        %v1441 = vadd.f32 %v1328, %v1440
        %1442 = vmatmul.f32.gmra.mxu0 %v623
        %v1443 = vpop.f32.mrf.mxu0
        %v1444 = vadd.f32 %v1331, %v1443
        %1445 = vmatmul.f32.gmra.mxu0 %v626
        %v1446 = vpop.f32.mrf.mxu0
        %v1447 = vadd.f32 %v1334, %v1446
        %1448 = vmatmul.f32.gmra.mxu0 %v628
        %v1449 = vpop.f32.mrf.mxu0
        %v1450 = vadd.f32 %v1337, %v1449
        %1451 = vmatmul.f32.gmra.mxu0 %v631
        %v1452 = vpop.f32.mrf.mxu0
        %v1453 = vadd.f32 %v1340, %v1452
        %1454 = vmatmul.f32.gmra.mxu0 %v633
        %v1455 = vpop.f32.mrf.mxu0
        %v1456 = vadd.f32 %v1343, %v1455
        %1457 = vdwg.mxu0
        %1458 = vmatpush.msra.mxu0 %v826
        %1459 = vmatpush.msra.mxu0 %v825
        %1460 = vmatpush.msra.mxu0 %v824
        %1461 = vmatpush.msra.mxu0 %v823
        %1462 = vmatpush.msra.mxu0 %v822
        %1463 = vmatpush.msra.mxu0 %v821
        %1464 = vmatpush.msra.mxu0 %v820
        %1465 = vmatpush.msra.mxu0 %v819
        %1466 = vmatpush.msra.mxu0 %v818
        %1467 = vmatpush.msra.mxu0 %v817
        %1468 = vmatpush.msra.mxu0 %v816
        %1469 = vmatpush.msra.mxu0 %v815
        %1470 = vmatpush.msra.mxu0 %v814
        %1471 = vmatpush.msra.mxu0 %v813
        %1472 = vmatpush.msra.mxu0 %v812
        %1473 = vmatpush.msra.mxu0 %v811
        %1474 = vmatmul.f32.gmra.mxu0 %v669
        %v1475 = vpop.f32.mrf.mxu0
        %v1476 = vadd.f32 %v1363, %v1475
        %1477 = vmatmul.f32.gmra.mxu0 %v671
        %v1478 = vpop.f32.mrf.mxu0
        %v1479 = vadd.f32 %v1366, %v1478
        %1480 = vmatmul.f32.gmra.mxu0 %v674
        %v1481 = vpop.f32.mrf.mxu0
        %v1482 = vadd.f32 %v1369, %v1481
        %1483 = vmatmul.f32.gmra.mxu0 %v676
        %v1484 = vpop.f32.mrf.mxu0
        %v1485 = vadd.f32 %v1372, %v1484
        %1486 = vmatmul.f32.gmra.mxu0 %v679
        %v1487 = vpop.f32.mrf.mxu0
        %v1488 = vadd.f32 %v1375, %v1487
        %1489 = vmatmul.f32.gmra.mxu0 %v681
        %v1490 = vpop.f32.mrf.mxu0
        %v1491 = vadd.f32 %v1378, %v1490
        %1492 = vmatmul.f32.gmra.mxu0 %v684
        %v1493 = vpop.f32.mrf.mxu0
        %v1494 = vadd.f32 %v1381, %v1493
        %1495 = vmatmul.f32.gmra.mxu0 %v686
        %v1496 = vpop.f32.mrf.mxu0
        %v1497 = vadd.f32 %v1384, %v1496
        %1498 = vmatmul.f32.gmra.mxu0 %v689
        %v1499 = vpop.f32.mrf.mxu0
        %v1500 = vadd.f32 %v1387, %v1499
        %1501 = vmatmul.f32.gmra.mxu0 %v691
        %v1502 = vpop.f32.mrf.mxu0
        %v1503 = vadd.f32 %v1390, %v1502
        %1504 = vmatmul.f32.gmra.mxu0 %v694
        %v1505 = vpop.f32.mrf.mxu0
        %v1506 = vadd.f32 %v1393, %v1505
        %1507 = vmatmul.f32.gmra.mxu0 %v696
        %v1508 = vpop.f32.mrf.mxu0
        %v1509 = vadd.f32 %v1396, %v1508
        %1510 = vmatmul.f32.gmra.mxu0 %v699
        %v1511 = vpop.f32.mrf.mxu0
        %v1512 = vadd.f32 %v1399, %v1511
        %1513 = vmatmul.f32.gmra.mxu0 %v701
        %v1514 = vpop.f32.mrf.mxu0
        %v1515 = vadd.f32 %v1402, %v1514
        %1516 = vmatmul.f32.gmra.mxu0 %v704
        %v1517 = vpop.f32.mrf.mxu0
        %v1518 = vadd.f32 %v1405, %v1517
        %1519 = vmatmul.f32.gmra.mxu0 %v706
        %v1520 = vpop.f32.mrf.mxu0
        %v1521 = vadd.f32 %v1408, %v1520
        %1522 = vmatmul.f32.gmra.mxu0 %v709
        %v1523 = vpop.f32.mrf.mxu0
        %v1524 = vadd.f32 %v1411, %v1523
        %1525 = vmatmul.f32.gmra.mxu0 %v711
        %v1526 = vpop.f32.mrf.mxu0
        %v1527 = vadd.f32 %v1414, %v1526
        %1528 = vmatmul.f32.gmra.mxu0 %v714
        %v1529 = vpop.f32.mrf.mxu0
        %v1530 = vadd.f32 %v1417, %v1529
        %1531 = vmatmul.f32.gmra.mxu0 %v716
        %v1532 = vpop.f32.mrf.mxu0
        %v1533 = vadd.f32 %v1420, %v1532
        %1534 = vmatmul.f32.gmra.mxu0 %v719
        %v1535 = vpop.f32.mrf.mxu0
        %v1536 = vadd.f32 %v1423, %v1535
        %1537 = vmatmul.f32.gmra.mxu0 %v721
        %v1538 = vpop.f32.mrf.mxu0
        %v1539 = vadd.f32 %v1426, %v1538
        %1540 = vmatmul.f32.gmra.mxu0 %v724
        %v1541 = vpop.f32.mrf.mxu0
        %v1542 = vadd.f32 %v1429, %v1541
        %1543 = vmatmul.f32.gmra.mxu0 %v726
        %v1544 = vpop.f32.mrf.mxu0
        %v1545 = vadd.f32 %v1432, %v1544
        %1546 = vmatmul.f32.gmra.mxu0 %v729
        %v1547 = vpop.f32.mrf.mxu0
        %v1548 = vadd.f32 %v1435, %v1547
        %1549 = vmatmul.f32.gmra.mxu0 %v731
        %v1550 = vpop.f32.mrf.mxu0
        %v1551 = vadd.f32 %v1438, %v1550
        %1552 = vmatmul.f32.gmra.mxu0 %v734
        %v1553 = vpop.f32.mrf.mxu0
        %v1554 = vadd.f32 %v1441, %v1553
        %1555 = vmatmul.f32.gmra.mxu0 %v736
        %v1556 = vpop.f32.mrf.mxu0
        %v1557 = vadd.f32 %v1444, %v1556
        %1558 = vmatmul.f32.gmra.mxu0 %v739
        %v1559 = vpop.f32.mrf.mxu0
        %v1560 = vadd.f32 %v1447, %v1559
        %1561 = vmatmul.f32.gmra.mxu0 %v741
        %v1562 = vpop.f32.mrf.mxu0
        %v1563 = vadd.f32 %v1450, %v1562
        %1564 = vmatmul.f32.gmra.mxu0 %v744
        %v1565 = vpop.f32.mrf.mxu0
        %v1566 = vadd.f32 %v1453, %v1565
        %1567 = vmatmul.f32.gmra.mxu0 %v746
        %v1568 = vpop.f32.mrf.mxu0
        %v1569 = vadd.f32 %v1456, %v1568
        %1570 = vdwg.mxu0
        %v1574 = vrot.slane %v502, 1
        %v1575 = vrot.slane %v503, 1
        %v1576 = vsel %vm553, %v1574, %v1575
        %v1577 = vrot.slane %v504, 1
        %v1578 = vsel %vm553, %v1575, %v1577
        %v1581 = vrot.slane %v502, 2
        %v1582 = vrot.slane %v503, 2
        %v1583 = vsel %vm666, %v1581, %v1582
        %v1584 = vrot.slane %v504, 2
        %v1585 = vsel %vm666, %v1582, %v1584
        %s1588 = scalar_lea.vmem [#allocation7], 768
        %v1589 = vld [vmem:[%s1588] sm:$0xff]
        %v1590 = vld [vmem:[%s1588 + $0x8] sm:$0xff]
        %v1591 = vld [vmem:[%s1588 + $0x10] sm:$0xff]
        %v1592 = vld [vmem:[%s1588 + $0x18] sm:$0xff]
        %v1593 = vld [vmem:[%s1588 + $0x20] sm:$0xff]
        %v1594 = vld [vmem:[%s1588 + $0x28] sm:$0xff]
        %v1595 = vld [vmem:[%s1588 + $0x30] sm:$0xff]
        %v1596 = vld [vmem:[%s1588 + $0x38] sm:$0xff]
        %v1597 = vld [vmem:[%s1588 + $0x40] sm:$0xff]
        %v1598 = vld [vmem:[%s1588 + $0x48] sm:$0xff]
        %v1599 = vld [vmem:[%s1588 + $0x50] sm:$0xff]
        %v1600 = vld [vmem:[%s1588 + $0x58] sm:$0xff]
        %v1601 = vld [vmem:[%s1588 + $0x60] sm:$0xff]
        %v1602 = vld [vmem:[%s1588 + $0x68] sm:$0xff]
        %v1603 = vld [vmem:[%s1588 + $0x70] sm:$0xff]
        %v1604 = vld [vmem:[%s1588 + $0x78] sm:$0xff]
        %v1605 = vld [vmem:[%s1588 + $0x80] sm:$0xff]
        %v1606 = vld [vmem:[%s1588 + $0x88] sm:$0xff]
        %v1607 = vld [vmem:[%s1588 + $0x90] sm:$0xff]
        %v1608 = vld [vmem:[%s1588 + $0x98] sm:$0xff]
        %v1609 = vld [vmem:[%s1588 + $0xa0] sm:$0xff]
        %v1610 = vld [vmem:[%s1588 + $0xa8] sm:$0xff]
        %v1611 = vld [vmem:[%s1588 + $0xb0] sm:$0xff]
        %v1612 = vld [vmem:[%s1588 + $0xb8] sm:$0xff]
        %v1613 = vld [vmem:[%s1588 + $0xc0] sm:$0xff]
        %v1614 = vld [vmem:[%s1588 + $0xc8] sm:$0xff]
        %v1615 = vld [vmem:[%s1588 + $0xd0] sm:$0xff]
        %v1616 = vld [vmem:[%s1588 + $0xd8] sm:$0xff]
        %v1617 = vld [vmem:[%s1588 + $0xe0] sm:$0xff]
        %v1618 = vld [vmem:[%s1588 + $0xe8] sm:$0xff]
        %v1619 = vld [vmem:[%s1588 + $0xf0] sm:$0xff]
        %v1620 = vld [vmem:[%s1588 + $0xf8] sm:$0xff]
        %v1621 = vld [vmem:[%s1588 + $0x100] sm:$0xff]
        %v1622 = vld [vmem:[%s1588 + $0x108] sm:$0xff]
        %v1623 = vld [vmem:[%s1588 + $0x110] sm:$0xff]
        %v1624 = vld [vmem:[%s1588 + $0x118] sm:$0xff]
        %v1625 = vld [vmem:[%s1588 + $0x120] sm:$0xff]
        %v1626 = vld [vmem:[%s1588 + $0x128] sm:$0xff]
        %v1627 = vld [vmem:[%s1588 + $0x130] sm:$0xff]
        %v1628 = vld [vmem:[%s1588 + $0x138] sm:$0xff]
        %v1629 = vld [vmem:[%s1588 + $0x140] sm:$0xff]
        %v1630 = vld [vmem:[%s1588 + $0x148] sm:$0xff]
        %v1631 = vld [vmem:[%s1588 + $0x150] sm:$0xff]
        %v1632 = vld [vmem:[%s1588 + $0x158] sm:$0xff]
        %v1633 = vld [vmem:[%s1588 + $0x160] sm:$0xff]
        %v1634 = vld [vmem:[%s1588 + $0x168] sm:$0xff]
        %v1635 = vld [vmem:[%s1588 + $0x170] sm:$0xff]
        %v1636 = vld [vmem:[%s1588 + $0x178] sm:$0xff]
        %1637 = vmatpush.msra.mxu0 %v1604
        %1638 = vmatpush.msra.mxu0 %v1603
        %1639 = vmatpush.msra.mxu0 %v1602
        %1640 = vmatpush.msra.mxu0 %v1601
        %1641 = vmatpush.msra.mxu0 %v1600
        %1642 = vmatpush.msra.mxu0 %v1599
        %1643 = vmatpush.msra.mxu0 %v1598
        %1644 = vmatpush.msra.mxu0 %v1597
        %1645 = vmatpush.msra.mxu0 %v1596
        %1646 = vmatpush.msra.mxu0 %v1595
        %1647 = vmatpush.msra.mxu0 %v1594
        %1648 = vmatpush.msra.mxu0 %v1593
        %1649 = vmatpush.msra.mxu0 %v1592
        %1650 = vmatpush.msra.mxu0 %v1591
        %1651 = vmatpush.msra.mxu0 %v1590
        %1652 = vmatpush.msra.mxu0 %v1589
        %1653 = vmatmul.f32.gmra.mxu0 %v457
        %v1654 = vpop.f32.mrf.mxu0
        %v1655 = vadd.f32 0.0, %v1654
        %1656 = vmatmul.f32.gmra.mxu0 %v458
        %v1657 = vpop.f32.mrf.mxu0
        %v1658 = vadd.f32 0.0, %v1657
        %1659 = vmatmul.f32.gmra.mxu0 %v460
        %v1660 = vpop.f32.mrf.mxu0
        %v1661 = vadd.f32 0.0, %v1660
        %1662 = vmatmul.f32.gmra.mxu0 %v461
        %v1663 = vpop.f32.mrf.mxu0
        %v1664 = vadd.f32 0.0, %v1663
        %1665 = vmatmul.f32.gmra.mxu0 %v463
        %v1666 = vpop.f32.mrf.mxu0
        %v1667 = vadd.f32 0.0, %v1666
        %1668 = vmatmul.f32.gmra.mxu0 %v464
        %v1669 = vpop.f32.mrf.mxu0
        %v1670 = vadd.f32 0.0, %v1669
        %1671 = vmatmul.f32.gmra.mxu0 %v466
        %v1672 = vpop.f32.mrf.mxu0
        %v1673 = vadd.f32 0.0, %v1672
        %1674 = vmatmul.f32.gmra.mxu0 %v467
        %v1675 = vpop.f32.mrf.mxu0
        %v1676 = vadd.f32 0.0, %v1675
        %1677 = vmatmul.f32.gmra.mxu0 %v469
        %v1678 = vpop.f32.mrf.mxu0
        %v1679 = vadd.f32 0.0, %v1678
        %1680 = vmatmul.f32.gmra.mxu0 %v470
        %v1681 = vpop.f32.mrf.mxu0
        %v1682 = vadd.f32 0.0, %v1681
        %1683 = vmatmul.f32.gmra.mxu0 %v472
        %v1684 = vpop.f32.mrf.mxu0
        %v1685 = vadd.f32 0.0, %v1684
        %1686 = vmatmul.f32.gmra.mxu0 %v473
        %v1687 = vpop.f32.mrf.mxu0
        %v1688 = vadd.f32 0.0, %v1687
        %1689 = vmatmul.f32.gmra.mxu0 %v475
        %v1690 = vpop.f32.mrf.mxu0
        %v1691 = vadd.f32 0.0, %v1690
        %1692 = vmatmul.f32.gmra.mxu0 %v476
        %v1693 = vpop.f32.mrf.mxu0
        %v1694 = vadd.f32 0.0, %v1693
        %1695 = vmatmul.f32.gmra.mxu0 %v478
        %v1696 = vpop.f32.mrf.mxu0
        %v1697 = vadd.f32 0.0, %v1696
        %1698 = vmatmul.f32.gmra.mxu0 %v479
        %v1699 = vpop.f32.mrf.mxu0
        %v1700 = vadd.f32 0.0, %v1699
        %1701 = vmatmul.f32.gmra.mxu0 %v481
        %v1702 = vpop.f32.mrf.mxu0
        %v1703 = vadd.f32 0.0, %v1702
        %1704 = vmatmul.f32.gmra.mxu0 %v482
        %v1705 = vpop.f32.mrf.mxu0
        %v1706 = vadd.f32 0.0, %v1705
        %1707 = vmatmul.f32.gmra.mxu0 %v484
        %v1708 = vpop.f32.mrf.mxu0
        %v1709 = vadd.f32 0.0, %v1708
        %1710 = vmatmul.f32.gmra.mxu0 %v485
        %v1711 = vpop.f32.mrf.mxu0
        %v1712 = vadd.f32 0.0, %v1711
        %1713 = vmatmul.f32.gmra.mxu0 %v487
        %v1714 = vpop.f32.mrf.mxu0
        %v1715 = vadd.f32 0.0, %v1714
        %1716 = vmatmul.f32.gmra.mxu0 %v488
        %v1717 = vpop.f32.mrf.mxu0
        %v1718 = vadd.f32 0.0, %v1717
        %1719 = vmatmul.f32.gmra.mxu0 %v490
        %v1720 = vpop.f32.mrf.mxu0
        %v1721 = vadd.f32 0.0, %v1720
        %1722 = vmatmul.f32.gmra.mxu0 %v491
        %v1723 = vpop.f32.mrf.mxu0
        %v1724 = vadd.f32 0.0, %v1723
        %1725 = vmatmul.f32.gmra.mxu0 %v493
        %v1726 = vpop.f32.mrf.mxu0
        %v1727 = vadd.f32 0.0, %v1726
        %1728 = vmatmul.f32.gmra.mxu0 %v494
        %v1729 = vpop.f32.mrf.mxu0
        %v1730 = vadd.f32 0.0, %v1729
        %1731 = vmatmul.f32.gmra.mxu0 %v496
        %v1732 = vpop.f32.mrf.mxu0
        %v1733 = vadd.f32 0.0, %v1732
        %1734 = vmatmul.f32.gmra.mxu0 %v497
        %v1735 = vpop.f32.mrf.mxu0
        %v1736 = vadd.f32 0.0, %v1735
        %1737 = vmatmul.f32.gmra.mxu0 %v499
        %v1738 = vpop.f32.mrf.mxu0
        %v1739 = vadd.f32 0.0, %v1738
        %1740 = vmatmul.f32.gmra.mxu0 %v500
        %v1741 = vpop.f32.mrf.mxu0
        %v1742 = vadd.f32 0.0, %v1741
        %1743 = vmatmul.f32.gmra.mxu0 %v502
        %v1744 = vpop.f32.mrf.mxu0
        %v1745 = vadd.f32 0.0, %v1744
        %1746 = vmatmul.f32.gmra.mxu0 %v503
        %v1747 = vpop.f32.mrf.mxu0
        %v1748 = vadd.f32 0.0, %v1747
        %1749 = vdwg.mxu0
        %1750 = vmatpush.msra.mxu0 %v1620
        %1751 = vmatpush.msra.mxu0 %v1619
        %1752 = vmatpush.msra.mxu0 %v1618
        %1753 = vmatpush.msra.mxu0 %v1617
        %1754 = vmatpush.msra.mxu0 %v1616
        %1755 = vmatpush.msra.mxu0 %v1615
        %1756 = vmatpush.msra.mxu0 %v1614
        %1757 = vmatpush.msra.mxu0 %v1613
        %1758 = vmatpush.msra.mxu0 %v1612
        %1759 = vmatpush.msra.mxu0 %v1611
        %1760 = vmatpush.msra.mxu0 %v1610
        %1761 = vmatpush.msra.mxu0 %v1609
        %1762 = vmatpush.msra.mxu0 %v1608
        %1763 = vmatpush.msra.mxu0 %v1607
        %1764 = vmatpush.msra.mxu0 %v1606
        %1765 = vmatpush.msra.mxu0 %v1605
        %1766 = vmatmul.f32.gmra.mxu0 %v566
        %v1767 = vpop.f32.mrf.mxu0
        %v1768 = vadd.f32 %v1655, %v1767
        %1769 = vmatmul.f32.gmra.mxu0 %v568
        %v1770 = vpop.f32.mrf.mxu0
        %v1771 = vadd.f32 %v1658, %v1770
        %1772 = vmatmul.f32.gmra.mxu0 %v571
        %v1773 = vpop.f32.mrf.mxu0
        %v1774 = vadd.f32 %v1661, %v1773
        %1775 = vmatmul.f32.gmra.mxu0 %v573
        %v1776 = vpop.f32.mrf.mxu0
        %v1777 = vadd.f32 %v1664, %v1776
        %1778 = vmatmul.f32.gmra.mxu0 %v576
        %v1779 = vpop.f32.mrf.mxu0
        %v1780 = vadd.f32 %v1667, %v1779
        %1781 = vmatmul.f32.gmra.mxu0 %v578
        %v1782 = vpop.f32.mrf.mxu0
        %v1783 = vadd.f32 %v1670, %v1782
        %1784 = vmatmul.f32.gmra.mxu0 %v581
        %v1785 = vpop.f32.mrf.mxu0
        %v1786 = vadd.f32 %v1673, %v1785
        %1787 = vmatmul.f32.gmra.mxu0 %v583
        %v1788 = vpop.f32.mrf.mxu0
        %v1789 = vadd.f32 %v1676, %v1788
        %1790 = vmatmul.f32.gmra.mxu0 %v586
        %v1791 = vpop.f32.mrf.mxu0
        %v1792 = vadd.f32 %v1679, %v1791
        %1793 = vmatmul.f32.gmra.mxu0 %v588
        %v1794 = vpop.f32.mrf.mxu0
        %v1795 = vadd.f32 %v1682, %v1794
        %1796 = vmatmul.f32.gmra.mxu0 %v591
        %v1797 = vpop.f32.mrf.mxu0
        %v1798 = vadd.f32 %v1685, %v1797
        %1799 = vmatmul.f32.gmra.mxu0 %v593
        %v1800 = vpop.f32.mrf.mxu0
        %v1801 = vadd.f32 %v1688, %v1800
        %1802 = vmatmul.f32.gmra.mxu0 %v596
        %v1803 = vpop.f32.mrf.mxu0
        %v1804 = vadd.f32 %v1691, %v1803
        %1805 = vmatmul.f32.gmra.mxu0 %v598
        %v1806 = vpop.f32.mrf.mxu0
        %v1807 = vadd.f32 %v1694, %v1806
        %1808 = vmatmul.f32.gmra.mxu0 %v601
        %v1809 = vpop.f32.mrf.mxu0
        %v1810 = vadd.f32 %v1697, %v1809
        %1811 = vmatmul.f32.gmra.mxu0 %v603
        %v1812 = vpop.f32.mrf.mxu0
        %v1813 = vadd.f32 %v1700, %v1812
        %1814 = vmatmul.f32.gmra.mxu0 %v606
        %v1815 = vpop.f32.mrf.mxu0
        %v1816 = vadd.f32 %v1703, %v1815
        %1817 = vmatmul.f32.gmra.mxu0 %v608
        %v1818 = vpop.f32.mrf.mxu0
        %v1819 = vadd.f32 %v1706, %v1818
        %1820 = vmatmul.f32.gmra.mxu0 %v611
        %v1821 = vpop.f32.mrf.mxu0
        %v1822 = vadd.f32 %v1709, %v1821
        %1823 = vmatmul.f32.gmra.mxu0 %v613
        %v1824 = vpop.f32.mrf.mxu0
        %v1825 = vadd.f32 %v1712, %v1824
        %1826 = vmatmul.f32.gmra.mxu0 %v616
        %v1827 = vpop.f32.mrf.mxu0
        %v1828 = vadd.f32 %v1715, %v1827
        %1829 = vmatmul.f32.gmra.mxu0 %v618
        %v1830 = vpop.f32.mrf.mxu0
        %v1831 = vadd.f32 %v1718, %v1830
        %1832 = vmatmul.f32.gmra.mxu0 %v621
        %v1833 = vpop.f32.mrf.mxu0
        %v1834 = vadd.f32 %v1721, %v1833
        %1835 = vmatmul.f32.gmra.mxu0 %v623
        %v1836 = vpop.f32.mrf.mxu0
        %v1837 = vadd.f32 %v1724, %v1836
        %1838 = vmatmul.f32.gmra.mxu0 %v626
        %v1839 = vpop.f32.mrf.mxu0
        %v1840 = vadd.f32 %v1727, %v1839
        %1841 = vmatmul.f32.gmra.mxu0 %v628
        %v1842 = vpop.f32.mrf.mxu0
        %v1843 = vadd.f32 %v1730, %v1842
        %1844 = vmatmul.f32.gmra.mxu0 %v631
        %v1845 = vpop.f32.mrf.mxu0
        %v1846 = vadd.f32 %v1733, %v1845
        %1847 = vmatmul.f32.gmra.mxu0 %v633
        %v1848 = vpop.f32.mrf.mxu0
        %v1849 = vadd.f32 %v1736, %v1848
        %1850 = vmatmul.f32.gmra.mxu0 %v832
        %v1851 = vpop.f32.mrf.mxu0
        %v1852 = vadd.f32 %v1739, %v1851
        %1853 = vmatmul.f32.gmra.mxu0 %v834
        %v1854 = vpop.f32.mrf.mxu0
        %v1855 = vadd.f32 %v1742, %v1854
        %1856 = vmatmul.f32.gmra.mxu0 %v1576
        %v1857 = vpop.f32.mrf.mxu0
        %v1858 = vadd.f32 %v1745, %v1857
        %1859 = vmatmul.f32.gmra.mxu0 %v1578
        %v1860 = vpop.f32.mrf.mxu0
        %v1861 = vadd.f32 %v1748, %v1860
        %1862 = vdwg.mxu0
        %1863 = vmatpush.msra.mxu0 %v1636
        %1864 = vmatpush.msra.mxu0 %v1635
        %1865 = vmatpush.msra.mxu0 %v1634
        %1866 = vmatpush.msra.mxu0 %v1633
        %1867 = vmatpush.msra.mxu0 %v1632
        %1868 = vmatpush.msra.mxu0 %v1631
        %1869 = vmatpush.msra.mxu0 %v1630
        %1870 = vmatpush.msra.mxu0 %v1629
        %1871 = vmatpush.msra.mxu0 %v1628
        %1872 = vmatpush.msra.mxu0 %v1627
        %1873 = vmatpush.msra.mxu0 %v1626
        %1874 = vmatpush.msra.mxu0 %v1625
        %1875 = vmatpush.msra.mxu0 %v1624
        %1876 = vmatpush.msra.mxu0 %v1623
        %1877 = vmatpush.msra.mxu0 %v1622
        %1878 = vmatpush.msra.mxu0 %v1621
        %1879 = vmatmul.f32.gmra.mxu0 %v679
        %v1880 = vpop.f32.mrf.mxu0
        %v1881 = vadd.f32 %v1768, %v1880
        %1882 = vmatmul.f32.gmra.mxu0 %v681
        %v1883 = vpop.f32.mrf.mxu0
        %v1884 = vadd.f32 %v1771, %v1883
        %1885 = vmatmul.f32.gmra.mxu0 %v684
        %v1886 = vpop.f32.mrf.mxu0
        %v1887 = vadd.f32 %v1774, %v1886
        %1888 = vmatmul.f32.gmra.mxu0 %v686
        %v1889 = vpop.f32.mrf.mxu0
        %v1890 = vadd.f32 %v1777, %v1889
        %1891 = vmatmul.f32.gmra.mxu0 %v689
        %v1892 = vpop.f32.mrf.mxu0
        %v1893 = vadd.f32 %v1780, %v1892
        %1894 = vmatmul.f32.gmra.mxu0 %v691
        %v1895 = vpop.f32.mrf.mxu0
        %v1896 = vadd.f32 %v1783, %v1895
        %1897 = vmatmul.f32.gmra.mxu0 %v694
        %v1898 = vpop.f32.mrf.mxu0
        %v1899 = vadd.f32 %v1786, %v1898
        %1900 = vmatmul.f32.gmra.mxu0 %v696
        %v1901 = vpop.f32.mrf.mxu0
        %v1902 = vadd.f32 %v1789, %v1901
        %1903 = vmatmul.f32.gmra.mxu0 %v699
        %v1904 = vpop.f32.mrf.mxu0
        %v1905 = vadd.f32 %v1792, %v1904
        %1906 = vmatmul.f32.gmra.mxu0 %v701
        %v1907 = vpop.f32.mrf.mxu0
        %v1908 = vadd.f32 %v1795, %v1907
        %1909 = vmatmul.f32.gmra.mxu0 %v704
        %v1910 = vpop.f32.mrf.mxu0
        %v1911 = vadd.f32 %v1798, %v1910
        %1912 = vmatmul.f32.gmra.mxu0 %v706
        %v1913 = vpop.f32.mrf.mxu0
        %v1914 = vadd.f32 %v1801, %v1913
        %1915 = vmatmul.f32.gmra.mxu0 %v709
        %v1916 = vpop.f32.mrf.mxu0
        %v1917 = vadd.f32 %v1804, %v1916
        %1918 = vmatmul.f32.gmra.mxu0 %v711
        %v1919 = vpop.f32.mrf.mxu0
        %v1920 = vadd.f32 %v1807, %v1919
        %1921 = vmatmul.f32.gmra.mxu0 %v714
        %v1922 = vpop.f32.mrf.mxu0
        %v1923 = vadd.f32 %v1810, %v1922
        %1924 = vmatmul.f32.gmra.mxu0 %v716
        %v1925 = vpop.f32.mrf.mxu0
        %v1926 = vadd.f32 %v1813, %v1925
        %1927 = vmatmul.f32.gmra.mxu0 %v719
        %v1928 = vpop.f32.mrf.mxu0
        %v1929 = vadd.f32 %v1816, %v1928
        %1930 = vmatmul.f32.gmra.mxu0 %v721
        %v1931 = vpop.f32.mrf.mxu0
        %v1932 = vadd.f32 %v1819, %v1931
        %1933 = vmatmul.f32.gmra.mxu0 %v724
        %v1934 = vpop.f32.mrf.mxu0
        %v1935 = vadd.f32 %v1822, %v1934
        %1936 = vmatmul.f32.gmra.mxu0 %v726
        %v1937 = vpop.f32.mrf.mxu0
        %v1938 = vadd.f32 %v1825, %v1937
        %1939 = vmatmul.f32.gmra.mxu0 %v729
        %v1940 = vpop.f32.mrf.mxu0
        %v1941 = vadd.f32 %v1828, %v1940
        %1942 = vmatmul.f32.gmra.mxu0 %v731
        %v1943 = vpop.f32.mrf.mxu0
        %v1944 = vadd.f32 %v1831, %v1943
        %1945 = vmatmul.f32.gmra.mxu0 %v734
        %v1946 = vpop.f32.mrf.mxu0
        %v1947 = vadd.f32 %v1834, %v1946
        %1948 = vmatmul.f32.gmra.mxu0 %v736
        %v1949 = vpop.f32.mrf.mxu0
        %v1950 = vadd.f32 %v1837, %v1949
        %1951 = vmatmul.f32.gmra.mxu0 %v739
        %v1952 = vpop.f32.mrf.mxu0
        %v1953 = vadd.f32 %v1840, %v1952
        %1954 = vmatmul.f32.gmra.mxu0 %v741
        %v1955 = vpop.f32.mrf.mxu0
        %v1956 = vadd.f32 %v1843, %v1955
        %1957 = vmatmul.f32.gmra.mxu0 %v744
        %v1958 = vpop.f32.mrf.mxu0
        %v1959 = vadd.f32 %v1846, %v1958
        %1960 = vmatmul.f32.gmra.mxu0 %v746
        %v1961 = vpop.f32.mrf.mxu0
        %v1962 = vadd.f32 %v1849, %v1961
        %1963 = vmatmul.f32.gmra.mxu0 %v839
        %v1964 = vpop.f32.mrf.mxu0
        %v1965 = vadd.f32 %v1852, %v1964
        %1966 = vmatmul.f32.gmra.mxu0 %v841
        %v1967 = vpop.f32.mrf.mxu0
        %v1968 = vadd.f32 %v1855, %v1967
        %1969 = vmatmul.f32.gmra.mxu0 %v1583
        %v1970 = vpop.f32.mrf.mxu0
        %v1971 = vadd.f32 %v1858, %v1970
        %1972 = vmatmul.f32.gmra.mxu0 %v1585
        %v1973 = vpop.f32.mrf.mxu0
        %v1974 = vadd.f32 %v1861, %v1973
        %1975 = vdwg.mxu0
        %v1976 = vadd.f32 %v1476, %v1881
        %v1977 = vadd.f32 %v1479, %v1884
        %v1978 = vadd.f32 %v1482, %v1887
        %v1979 = vadd.f32 %v1485, %v1890
        %v1980 = vadd.f32 %v1488, %v1893
        %v1981 = vadd.f32 %v1491, %v1896
        %v1982 = vadd.f32 %v1494, %v1899
        %v1983 = vadd.f32 %v1497, %v1902
        %v1984 = vadd.f32 %v1500, %v1905
        %v1985 = vadd.f32 %v1503, %v1908
        %v1986 = vadd.f32 %v1506, %v1911
        %v1987 = vadd.f32 %v1509, %v1914
        %v1988 = vadd.f32 %v1512, %v1917
        %v1989 = vadd.f32 %v1515, %v1920
        %v1990 = vadd.f32 %v1518, %v1923
        %v1991 = vadd.f32 %v1521, %v1926
        %v1992 = vadd.f32 %v1524, %v1929
        %v1993 = vadd.f32 %v1527, %v1932
        %v1994 = vadd.f32 %v1530, %v1935
        %v1995 = vadd.f32 %v1533, %v1938
        %v1996 = vadd.f32 %v1536, %v1941
        %v1997 = vadd.f32 %v1539, %v1944
        %v1998 = vadd.f32 %v1542, %v1947
        %v1999 = vadd.f32 %v1545, %v1950
        %v2000 = vadd.f32 %v1548, %v1953
        %v2001 = vadd.f32 %v1551, %v1956
        %v2002 = vadd.f32 %v1554, %v1959
        %v2003 = vadd.f32 %v1557, %v1962
        %v2004 = vadd.f32 %v1560, %v1965
        %v2005 = vadd.f32 %v1563, %v1968
        %v2006 = vadd.f32 %v1566, %v1971
        %v2007 = vadd.f32 %v1569, %v1974
        %v2008 = vld [vmem:[%s3] sm:$0x1]
        %v2010 = vperm.slane %v2008, 0
        %v2012 = vadd.f32 %v1976, %v2010
        %v2013 = vadd.f32 %v1977, %v2010
        %v2014 = vadd.f32 %v1978, %v2010
        %v2015 = vadd.f32 %v1979, %v2010
        %v2016 = vadd.f32 %v1980, %v2010
        %v2017 = vadd.f32 %v1981, %v2010
        %v2018 = vadd.f32 %v1982, %v2010
        %v2019 = vadd.f32 %v1983, %v2010
        %v2020 = vadd.f32 %v1984, %v2010
        %v2021 = vadd.f32 %v1985, %v2010
        %v2022 = vadd.f32 %v1986, %v2010
        %v2023 = vadd.f32 %v1987, %v2010
        %v2024 = vadd.f32 %v1988, %v2010
        %v2025 = vadd.f32 %v1989, %v2010
        %v2026 = vadd.f32 %v1990, %v2010
        %v2027 = vadd.f32 %v1991, %v2010
        %v2028 = vadd.f32 %v1992, %v2010
        %v2029 = vadd.f32 %v1993, %v2010
        %v2030 = vadd.f32 %v1994, %v2010
        %v2031 = vadd.f32 %v1995, %v2010
        %v2032 = vadd.f32 %v1996, %v2010
        %v2033 = vadd.f32 %v1997, %v2010
        %v2034 = vadd.f32 %v1998, %v2010
        %v2035 = vadd.f32 %v1999, %v2010
        %v2036 = vadd.f32 %v2000, %v2010
        %v2037 = vadd.f32 %v2001, %v2010
        %v2038 = vadd.f32 %v2002, %v2010
        %v2039 = vadd.f32 %v2003, %v2010
        %v2040 = vadd.f32 %v2004, %v2010
        %v2041 = vadd.f32 %v2005, %v2010
        %v2042 = vadd.f32 %v2006, %v2010
        %v2043 = vadd.f32 %v2007, %v2010
        %v2044 = vmax.f32 %v2012, 0.0
        %v2045 = vmax.f32 %v2013, 0.0
        %v2046 = vmax.f32 %v2014, 0.0
        %v2047 = vmax.f32 %v2015, 0.0
        %v2048 = vmax.f32 %v2016, 0.0
        %v2049 = vmax.f32 %v2017, 0.0
        %v2050 = vmax.f32 %v2018, 0.0
        %v2051 = vmax.f32 %v2019, 0.0
        %v2052 = vmax.f32 %v2020, 0.0
        %v2053 = vmax.f32 %v2021, 0.0
        %v2054 = vmax.f32 %v2022, 0.0
        %v2055 = vmax.f32 %v2023, 0.0
        %v2056 = vmax.f32 %v2024, 0.0
        %v2057 = vmax.f32 %v2025, 0.0
        %v2058 = vmax.f32 %v2026, 0.0
        %v2059 = vmax.f32 %v2027, 0.0
        %v2060 = vmax.f32 %v2028, 0.0
        %v2061 = vmax.f32 %v2029, 0.0
        %v2062 = vmax.f32 %v2030, 0.0
        %v2063 = vmax.f32 %v2031, 0.0
        %v2064 = vmax.f32 %v2032, 0.0
        %v2065 = vmax.f32 %v2033, 0.0
        %v2066 = vmax.f32 %v2034, 0.0
        %v2067 = vmax.f32 %v2035, 0.0
        %v2068 = vmax.f32 %v2036, 0.0
        %v2069 = vmax.f32 %v2037, 0.0
        %v2070 = vmax.f32 %v2038, 0.0
        %v2071 = vmax.f32 %v2039, 0.0
        %v2072 = vmax.f32 %v2040, 0.0
        %v2073 = vmax.f32 %v2041, 0.0
        %v2074 = vmax.f32 %v2042, 0.0
        %v2075 = vmax.f32 %v2043, 0.0
        %s2076 = scalar_lea.vmem [#allocation3], 24
        %2077 = vst [vmem:[%s2076 + $0x1] sm:$0xff] %v2044
        %2078 = vst [vmem:[%s2076 + $0x9] sm:$0xff] %v2045
        %2079 = vst [vmem:[%s2076 + $0x19] sm:$0xff] %v2046
        %2080 = vst [vmem:[%s2076 + $0x21] sm:$0xff] %v2047
        %2081 = vst [vmem:[%s2076 + $0x31] sm:$0xff] %v2048
        %2082 = vst [vmem:[%s2076 + $0x39] sm:$0xff] %v2049
        %2083 = vst [vmem:[%s2076 + $0x49] sm:$0xff] %v2050
        %2084 = vst [vmem:[%s2076 + $0x51] sm:$0xff] %v2051
        %2085 = vst [vmem:[%s2076 + $0x61] sm:$0xff] %v2052
        %2086 = vst [vmem:[%s2076 + $0x69] sm:$0xff] %v2053
        %2087 = vst [vmem:[%s2076 + $0x79] sm:$0xff] %v2054
        %2088 = vst [vmem:[%s2076 + $0x81] sm:$0xff] %v2055
        %2089 = vst [vmem:[%s2076 + $0x91] sm:$0xff] %v2056
        %2090 = vst [vmem:[%s2076 + $0x99] sm:$0xff] %v2057
        %2091 = vst [vmem:[%s2076 + $0xa9] sm:$0xff] %v2058
        %2092 = vst [vmem:[%s2076 + $0xb1] sm:$0xff] %v2059
        %2093 = vst [vmem:[%s2076 + $0xc1] sm:$0xff] %v2060
        %2094 = vst [vmem:[%s2076 + $0xc9] sm:$0xff] %v2061
        %2095 = vst [vmem:[%s2076 + $0xd9] sm:$0xff] %v2062
        %2096 = vst [vmem:[%s2076 + $0xe1] sm:$0xff] %v2063
        %2097 = vst [vmem:[%s2076 + $0xf1] sm:$0xff] %v2064
        %2098 = vst [vmem:[%s2076 + $0xf9] sm:$0xff] %v2065
        %2099 = vst [vmem:[%s2076 + $0x109] sm:$0xff] %v2066
        %2100 = vst [vmem:[%s2076 + $0x111] sm:$0xff] %v2067
        %2101 = vst [vmem:[%s2076 + $0x121] sm:$0xff] %v2068
        %2102 = vst [vmem:[%s2076 + $0x129] sm:$0xff] %v2069
        %2103 = vst [vmem:[%s2076 + $0x139] sm:$0xff] %v2070
        %2104 = vst [vmem:[%s2076 + $0x141] sm:$0xff] %v2071
        %2105 = vst [vmem:[%s2076 + $0x151] sm:$0xff] %v2072
        %2106 = vst [vmem:[%s2076 + $0x159] sm:$0xff] %v2073
        %2107 = vst [vmem:[%s2076 + $0x169] sm:$0xff] %v2074
        %2108 = vst [vmem:[%s2076 + $0x171] sm:$0xff] %v2075
        %v2109 = vld [vmem:[#allocation3] sm:$0xff]
        %v2110 = vld [vmem:[#allocation3 + $0x8] sm:$0xff]
        %v2111 = vld [vmem:[#allocation3 + $0x10] sm:$0x3]
        %v2112 = vld [vmem:[#allocation3 + $0x18] sm:$0xff]
        %v2113 = vld [vmem:[#allocation3 + $0x20] sm:$0xff]
        %v2114 = vld [vmem:[#allocation3 + $0x28] sm:$0x3]
        %v2115 = vld [vmem:[#allocation3 + $0x30] sm:$0xff]
        %v2116 = vld [vmem:[#allocation3 + $0x38] sm:$0xff]
        %v2117 = vld [vmem:[#allocation3 + $0x40] sm:$0x3]
        %v2118 = vld [vmem:[#allocation3 + $0x48] sm:$0xff]
        %v2119 = vld [vmem:[#allocation3 + $0x50] sm:$0xff]
        %v2120 = vld [vmem:[#allocation3 + $0x58] sm:$0x3]
        %v2121 = vld [vmem:[#allocation3 + $0x60] sm:$0xff]
        %v2122 = vld [vmem:[#allocation3 + $0x68] sm:$0xff]
        %v2123 = vld [vmem:[#allocation3 + $0x70] sm:$0x3]
        %v2124 = vld [vmem:[#allocation3 + $0x78] sm:$0xff]
        %v2125 = vld [vmem:[#allocation3 + $0x80] sm:$0xff]
        %v2126 = vld [vmem:[#allocation3 + $0x88] sm:$0x3]
        %v2127 = vld [vmem:[#allocation3 + $0x90] sm:$0xff]
        %v2128 = vld [vmem:[#allocation3 + $0x98] sm:$0xff]
        %v2129 = vld [vmem:[#allocation3 + $0xa0] sm:$0x3]
        %v2130 = vld [vmem:[#allocation3 + $0xa8] sm:$0xff]
        %v2131 = vld [vmem:[#allocation3 + $0xb0] sm:$0xff]
        %v2132 = vld [vmem:[#allocation3 + $0xb8] sm:$0x3]
        %v2133 = vld [vmem:[#allocation3 + $0xc0] sm:$0xff]
        %v2134 = vld [vmem:[#allocation3 + $0xc8] sm:$0xff]
        %v2135 = vld [vmem:[#allocation3 + $0xd0] sm:$0x3]
        %v2136 = vld [vmem:[#allocation3 + $0xd8] sm:$0xff]
        %v2137 = vld [vmem:[#allocation3 + $0xe0] sm:$0xff]
        %v2138 = vld [vmem:[#allocation3 + $0xe8] sm:$0x3]
        %v2139 = vld [vmem:[#allocation3 + $0xf0] sm:$0xff]
        %v2140 = vld [vmem:[#allocation3 + $0xf8] sm:$0xff]
        %v2141 = vld [vmem:[#allocation3 + $0x100] sm:$0x3]
        %v2142 = vld [vmem:[#allocation3 + $0x108] sm:$0xff]
        %v2143 = vld [vmem:[#allocation3 + $0x110] sm:$0xff]
        %v2144 = vld [vmem:[#allocation3 + $0x118] sm:$0x3]
        %v2145 = vld [vmem:[#allocation3 + $0x120] sm:$0xff]
        %v2146 = vld [vmem:[#allocation3 + $0x128] sm:$0xff]
        %v2147 = vld [vmem:[#allocation3 + $0x130] sm:$0x3]
        %v2148 = vld [vmem:[#allocation3 + $0x138] sm:$0xff]
        %v2149 = vld [vmem:[#allocation3 + $0x140] sm:$0xff]
        %v2150 = vld [vmem:[#allocation3 + $0x148] sm:$0x3]
        %v2151 = vld [vmem:[#allocation3 + $0x150] sm:$0xff]
        %v2152 = vld [vmem:[#allocation3 + $0x158] sm:$0xff]
        %v2153 = vld [vmem:[#allocation3 + $0x160] sm:$0x3]
        %v2154 = vld [vmem:[#allocation3 + $0x168] sm:$0xff]
        %v2155 = vld [vmem:[#allocation3 + $0x170] sm:$0xff]
        %v2156 = vld [vmem:[#allocation3 + $0x178] sm:$0x3]
        %v2157 = vld [vmem:[#allocation3 + $0x180] sm:$0xff]
        %v2158 = vld [vmem:[#allocation3 + $0x188] sm:$0xff]
        %v2159 = vld [vmem:[#allocation3 + $0x190] sm:$0x3]
        %v2160 = vld [vmem:[#allocation3 + $0x198] sm:$0xff]
        %v2161 = vld [vmem:[#allocation3 + $0x1a0] sm:$0xff]
        %v2162 = vld [vmem:[#allocation3 + $0x1a8] sm:$0x3]
        %v2211 = vrot.slane %v2109, 1
        %v2212 = vrot.slane %v2110, 1
        %v2213 = vsel %vm553, %v2211, %v2212
        %v2214 = vrot.slane %v2111, 1
        %v2215 = vsel %vm553, %v2212, %v2214
        %v2216 = vrot.slane %v2112, 1
        %v2217 = vrot.slane %v2113, 1
        %v2218 = vsel %vm553, %v2216, %v2217
        %v2219 = vrot.slane %v2114, 1
        %v2220 = vsel %vm553, %v2217, %v2219
        %v2221 = vrot.slane %v2115, 1
        %v2222 = vrot.slane %v2116, 1
        %v2223 = vsel %vm553, %v2221, %v2222
        %v2224 = vrot.slane %v2117, 1
        %v2225 = vsel %vm553, %v2222, %v2224
        %v2226 = vrot.slane %v2118, 1
        %v2227 = vrot.slane %v2119, 1
        %v2228 = vsel %vm553, %v2226, %v2227
        %v2229 = vrot.slane %v2120, 1
        %v2230 = vsel %vm553, %v2227, %v2229
        %v2231 = vrot.slane %v2121, 1
        %v2232 = vrot.slane %v2122, 1
        %v2233 = vsel %vm553, %v2231, %v2232
        %v2234 = vrot.slane %v2123, 1
        %v2235 = vsel %vm553, %v2232, %v2234
        %v2236 = vrot.slane %v2124, 1
        %v2237 = vrot.slane %v2125, 1
        %v2238 = vsel %vm553, %v2236, %v2237
        %v2239 = vrot.slane %v2126, 1
        %v2240 = vsel %vm553, %v2237, %v2239
        %v2241 = vrot.slane %v2127, 1
        %v2242 = vrot.slane %v2128, 1
        %v2243 = vsel %vm553, %v2241, %v2242
        %v2244 = vrot.slane %v2129, 1
        %v2245 = vsel %vm553, %v2242, %v2244
        %v2246 = vrot.slane %v2130, 1
        %v2247 = vrot.slane %v2131, 1
        %v2248 = vsel %vm553, %v2246, %v2247
        %v2249 = vrot.slane %v2132, 1
        %v2250 = vsel %vm553, %v2247, %v2249
        %v2251 = vrot.slane %v2133, 1
        %v2252 = vrot.slane %v2134, 1
        %v2253 = vsel %vm553, %v2251, %v2252
        %v2254 = vrot.slane %v2135, 1
        %v2255 = vsel %vm553, %v2252, %v2254
        %v2256 = vrot.slane %v2136, 1
        %v2257 = vrot.slane %v2137, 1
        %v2258 = vsel %vm553, %v2256, %v2257
        %v2259 = vrot.slane %v2138, 1
        %v2260 = vsel %vm553, %v2257, %v2259
        %v2261 = vrot.slane %v2139, 1
        %v2262 = vrot.slane %v2140, 1
        %v2263 = vsel %vm553, %v2261, %v2262
        %v2264 = vrot.slane %v2141, 1
        %v2265 = vsel %vm553, %v2262, %v2264
        %v2266 = vrot.slane %v2142, 1
        %v2267 = vrot.slane %v2143, 1
        %v2268 = vsel %vm553, %v2266, %v2267
        %v2269 = vrot.slane %v2144, 1
        %v2270 = vsel %vm553, %v2267, %v2269
        %v2271 = vrot.slane %v2145, 1
        %v2272 = vrot.slane %v2146, 1
        %v2273 = vsel %vm553, %v2271, %v2272
        %v2274 = vrot.slane %v2147, 1
        %v2275 = vsel %vm553, %v2272, %v2274
        %v2276 = vrot.slane %v2148, 1
        %v2277 = vrot.slane %v2149, 1
        %v2278 = vsel %vm553, %v2276, %v2277
        %v2279 = vrot.slane %v2150, 1
        %v2280 = vsel %vm553, %v2277, %v2279
        %v2281 = vrot.slane %v2151, 1
        %v2282 = vrot.slane %v2152, 1
        %v2283 = vsel %vm553, %v2281, %v2282
        %v2284 = vrot.slane %v2153, 1
        %v2285 = vsel %vm553, %v2282, %v2284
        %v2286 = vrot.slane %v2154, 1
        %v2287 = vrot.slane %v2155, 1
        %v2288 = vsel %vm553, %v2286, %v2287
        %v2289 = vrot.slane %v2156, 1
        %v2290 = vsel %vm553, %v2287, %v2289
        %v2323 = vrot.slane %v2109, 2
        %v2324 = vrot.slane %v2110, 2
        %v2325 = vsel %vm666, %v2323, %v2324
        %v2326 = vrot.slane %v2111, 2
        %v2327 = vsel %vm666, %v2324, %v2326
        %v2328 = vrot.slane %v2112, 2
        %v2329 = vrot.slane %v2113, 2
        %v2330 = vsel %vm666, %v2328, %v2329
        %v2331 = vrot.slane %v2114, 2
        %v2332 = vsel %vm666, %v2329, %v2331
        %v2333 = vrot.slane %v2115, 2
        %v2334 = vrot.slane %v2116, 2
        %v2335 = vsel %vm666, %v2333, %v2334
        %v2336 = vrot.slane %v2117, 2
        %v2337 = vsel %vm666, %v2334, %v2336
        %v2338 = vrot.slane %v2118, 2
        %v2339 = vrot.slane %v2119, 2
        %v2340 = vsel %vm666, %v2338, %v2339
        %v2341 = vrot.slane %v2120, 2
        %v2342 = vsel %vm666, %v2339, %v2341
        %v2343 = vrot.slane %v2121, 2
        %v2344 = vrot.slane %v2122, 2
        %v2345 = vsel %vm666, %v2343, %v2344
        %v2346 = vrot.slane %v2123, 2
        %v2347 = vsel %vm666, %v2344, %v2346
        %v2348 = vrot.slane %v2124, 2
        %v2349 = vrot.slane %v2125, 2
        %v2350 = vsel %vm666, %v2348, %v2349
        %v2351 = vrot.slane %v2126, 2
        %v2352 = vsel %vm666, %v2349, %v2351
        %v2353 = vrot.slane %v2127, 2
        %v2354 = vrot.slane %v2128, 2
        %v2355 = vsel %vm666, %v2353, %v2354
        %v2356 = vrot.slane %v2129, 2
        %v2357 = vsel %vm666, %v2354, %v2356
        %v2358 = vrot.slane %v2130, 2
        %v2359 = vrot.slane %v2131, 2
        %v2360 = vsel %vm666, %v2358, %v2359
        %v2361 = vrot.slane %v2132, 2
        %v2362 = vsel %vm666, %v2359, %v2361
        %v2363 = vrot.slane %v2133, 2
        %v2364 = vrot.slane %v2134, 2
        %v2365 = vsel %vm666, %v2363, %v2364
        %v2366 = vrot.slane %v2135, 2
        %v2367 = vsel %vm666, %v2364, %v2366
        %v2368 = vrot.slane %v2136, 2
        %v2369 = vrot.slane %v2137, 2
        %v2370 = vsel %vm666, %v2368, %v2369
        %v2371 = vrot.slane %v2138, 2
        %v2372 = vsel %vm666, %v2369, %v2371
        %v2373 = vrot.slane %v2139, 2
        %v2374 = vrot.slane %v2140, 2
        %v2375 = vsel %vm666, %v2373, %v2374
        %v2376 = vrot.slane %v2141, 2
        %v2377 = vsel %vm666, %v2374, %v2376
        %v2378 = vrot.slane %v2142, 2
        %v2379 = vrot.slane %v2143, 2
        %v2380 = vsel %vm666, %v2378, %v2379
        %v2381 = vrot.slane %v2144, 2
        %v2382 = vsel %vm666, %v2379, %v2381
        %v2383 = vrot.slane %v2145, 2
        %v2384 = vrot.slane %v2146, 2
        %v2385 = vsel %vm666, %v2383, %v2384
        %v2386 = vrot.slane %v2147, 2
        %v2387 = vsel %vm666, %v2384, %v2386
        %v2388 = vrot.slane %v2148, 2
        %v2389 = vrot.slane %v2149, 2
        %v2390 = vsel %vm666, %v2388, %v2389
        %v2391 = vrot.slane %v2150, 2
        %v2392 = vsel %vm666, %v2389, %v2391
        %v2393 = vrot.slane %v2151, 2
        %v2394 = vrot.slane %v2152, 2
        %v2395 = vsel %vm666, %v2393, %v2394
        %v2396 = vrot.slane %v2153, 2
        %v2397 = vsel %vm666, %v2394, %v2396
        %v2398 = vrot.slane %v2154, 2
        %v2399 = vrot.slane %v2155, 2
        %v2400 = vsel %vm666, %v2398, %v2399
        %v2401 = vrot.slane %v2156, 2
        %v2402 = vsel %vm666, %v2399, %v2401
        %v2435 = vld [vmem:[#allocation9] sm:$0xff]
        %v2436 = vld [vmem:[#allocation9 + $0x8] sm:$0xff]
        %v2437 = vld [vmem:[#allocation9 + $0x10] sm:$0xff]
        %v2438 = vld [vmem:[#allocation9 + $0x18] sm:$0xff]
        %v2439 = vld [vmem:[#allocation9 + $0x20] sm:$0xff]
        %v2440 = vld [vmem:[#allocation9 + $0x28] sm:$0xff]
        %v2441 = vld [vmem:[#allocation9 + $0x30] sm:$0xff]
        %v2442 = vld [vmem:[#allocation9 + $0x38] sm:$0xff]
        %v2443 = vld [vmem:[#allocation9 + $0x40] sm:$0xff]
        %v2444 = vld [vmem:[#allocation9 + $0x48] sm:$0xff]
        %v2445 = vld [vmem:[#allocation9 + $0x50] sm:$0xff]
        %v2446 = vld [vmem:[#allocation9 + $0x58] sm:$0xff]
        %v2447 = vld [vmem:[#allocation9 + $0x60] sm:$0xff]
        %v2448 = vld [vmem:[#allocation9 + $0x68] sm:$0xff]
        %v2449 = vld [vmem:[#allocation9 + $0x70] sm:$0xff]
        %v2450 = vld [vmem:[#allocation9 + $0x78] sm:$0xff]
        %v2451 = vld [vmem:[#allocation9 + $0x80] sm:$0xff]
        %v2452 = vld [vmem:[#allocation9 + $0x88] sm:$0xff]
        %v2453 = vld [vmem:[#allocation9 + $0x90] sm:$0xff]
        %v2454 = vld [vmem:[#allocation9 + $0x98] sm:$0xff]
        %v2455 = vld [vmem:[#allocation9 + $0xa0] sm:$0xff]
        %v2456 = vld [vmem:[#allocation9 + $0xa8] sm:$0xff]
        %v2457 = vld [vmem:[#allocation9 + $0xb0] sm:$0xff]
        %v2458 = vld [vmem:[#allocation9 + $0xb8] sm:$0xff]
        %v2459 = vld [vmem:[#allocation9 + $0xc0] sm:$0xff]
        %v2460 = vld [vmem:[#allocation9 + $0xc8] sm:$0xff]
        %v2461 = vld [vmem:[#allocation9 + $0xd0] sm:$0xff]
        %v2462 = vld [vmem:[#allocation9 + $0xd8] sm:$0xff]
        %v2463 = vld [vmem:[#allocation9 + $0xe0] sm:$0xff]
        %v2464 = vld [vmem:[#allocation9 + $0xe8] sm:$0xff]
        %v2465 = vld [vmem:[#allocation9 + $0xf0] sm:$0xff]
        %v2466 = vld [vmem:[#allocation9 + $0xf8] sm:$0xff]
        %v2467 = vld [vmem:[#allocation9 + $0x100] sm:$0xff]
        %v2468 = vld [vmem:[#allocation9 + $0x108] sm:$0xff]
        %v2469 = vld [vmem:[#allocation9 + $0x110] sm:$0xff]
        %v2470 = vld [vmem:[#allocation9 + $0x118] sm:$0xff]
        %v2471 = vld [vmem:[#allocation9 + $0x120] sm:$0xff]
        %v2472 = vld [vmem:[#allocation9 + $0x128] sm:$0xff]
        %v2473 = vld [vmem:[#allocation9 + $0x130] sm:$0xff]
        %v2474 = vld [vmem:[#allocation9 + $0x138] sm:$0xff]
        %v2475 = vld [vmem:[#allocation9 + $0x140] sm:$0xff]
        %v2476 = vld [vmem:[#allocation9 + $0x148] sm:$0xff]
        %v2477 = vld [vmem:[#allocation9 + $0x150] sm:$0xff]
        %v2478 = vld [vmem:[#allocation9 + $0x158] sm:$0xff]
        %v2479 = vld [vmem:[#allocation9 + $0x160] sm:$0xff]
        %v2480 = vld [vmem:[#allocation9 + $0x168] sm:$0xff]
        %v2481 = vld [vmem:[#allocation9 + $0x170] sm:$0xff]
        %v2482 = vld [vmem:[#allocation9 + $0x178] sm:$0xff]
        %v2486 = vrot.slane %v2157, 1
        %v2487 = vrot.slane %v2158, 1
        %v2488 = vsel %vm553, %v2486, %v2487
        %v2489 = vrot.slane %v2159, 1
        %v2490 = vsel %vm553, %v2487, %v2489
        %v2493 = vrot.slane %v2157, 2
        %v2494 = vrot.slane %v2158, 2
        %v2495 = vsel %vm666, %v2493, %v2494
        %v2496 = vrot.slane %v2159, 2
        %v2497 = vsel %vm666, %v2494, %v2496
        %s2500 = scalar_lea.vmem [#allocation9], 384
        %v2501 = vld [vmem:[%s2500] sm:$0xff]
        %v2502 = vld [vmem:[%s2500 + $0x8] sm:$0xff]
        %v2503 = vld [vmem:[%s2500 + $0x10] sm:$0xff]
        %v2504 = vld [vmem:[%s2500 + $0x18] sm:$0xff]
        %v2505 = vld [vmem:[%s2500 + $0x20] sm:$0xff]
        %v2506 = vld [vmem:[%s2500 + $0x28] sm:$0xff]
        %v2507 = vld [vmem:[%s2500 + $0x30] sm:$0xff]
        %v2508 = vld [vmem:[%s2500 + $0x38] sm:$0xff]
        %v2509 = vld [vmem:[%s2500 + $0x40] sm:$0xff]
        %v2510 = vld [vmem:[%s2500 + $0x48] sm:$0xff]
        %v2511 = vld [vmem:[%s2500 + $0x50] sm:$0xff]
        %v2512 = vld [vmem:[%s2500 + $0x58] sm:$0xff]
        %v2513 = vld [vmem:[%s2500 + $0x60] sm:$0xff]
        %v2514 = vld [vmem:[%s2500 + $0x68] sm:$0xff]
        %v2515 = vld [vmem:[%s2500 + $0x70] sm:$0xff]
        %v2516 = vld [vmem:[%s2500 + $0x78] sm:$0xff]
        %v2517 = vld [vmem:[%s2500 + $0x80] sm:$0xff]
        %v2518 = vld [vmem:[%s2500 + $0x88] sm:$0xff]
        %v2519 = vld [vmem:[%s2500 + $0x90] sm:$0xff]
        %v2520 = vld [vmem:[%s2500 + $0x98] sm:$0xff]
        %v2521 = vld [vmem:[%s2500 + $0xa0] sm:$0xff]
        %v2522 = vld [vmem:[%s2500 + $0xa8] sm:$0xff]
        %v2523 = vld [vmem:[%s2500 + $0xb0] sm:$0xff]
        %v2524 = vld [vmem:[%s2500 + $0xb8] sm:$0xff]
        %v2525 = vld [vmem:[%s2500 + $0xc0] sm:$0xff]
        %v2526 = vld [vmem:[%s2500 + $0xc8] sm:$0xff]
        %v2527 = vld [vmem:[%s2500 + $0xd0] sm:$0xff]
        %v2528 = vld [vmem:[%s2500 + $0xd8] sm:$0xff]
        %v2529 = vld [vmem:[%s2500 + $0xe0] sm:$0xff]
        %v2530 = vld [vmem:[%s2500 + $0xe8] sm:$0xff]
        %v2531 = vld [vmem:[%s2500 + $0xf0] sm:$0xff]
        %v2532 = vld [vmem:[%s2500 + $0xf8] sm:$0xff]
        %v2533 = vld [vmem:[%s2500 + $0x100] sm:$0xff]
        %v2534 = vld [vmem:[%s2500 + $0x108] sm:$0xff]
        %v2535 = vld [vmem:[%s2500 + $0x110] sm:$0xff]
        %v2536 = vld [vmem:[%s2500 + $0x118] sm:$0xff]
        %v2537 = vld [vmem:[%s2500 + $0x120] sm:$0xff]
        %v2538 = vld [vmem:[%s2500 + $0x128] sm:$0xff]
        %v2539 = vld [vmem:[%s2500 + $0x130] sm:$0xff]
        %v2540 = vld [vmem:[%s2500 + $0x138] sm:$0xff]
        %v2541 = vld [vmem:[%s2500 + $0x140] sm:$0xff]
        %v2542 = vld [vmem:[%s2500 + $0x148] sm:$0xff]
        %v2543 = vld [vmem:[%s2500 + $0x150] sm:$0xff]
        %v2544 = vld [vmem:[%s2500 + $0x158] sm:$0xff]
        %v2545 = vld [vmem:[%s2500 + $0x160] sm:$0xff]
        %v2546 = vld [vmem:[%s2500 + $0x168] sm:$0xff]
        %v2547 = vld [vmem:[%s2500 + $0x170] sm:$0xff]
        %v2548 = vld [vmem:[%s2500 + $0x178] sm:$0xff]
        %2549 = vmatpush.msra.mxu0 %v2516
        %2550 = vmatpush.msra.mxu0 %v2515
        %2551 = vmatpush.msra.mxu0 %v2514
        %2552 = vmatpush.msra.mxu0 %v2513
        %2553 = vmatpush.msra.mxu0 %v2512
        %2554 = vmatpush.msra.mxu0 %v2511
        %2555 = vmatpush.msra.mxu0 %v2510
        %2556 = vmatpush.msra.mxu0 %v2509
        %2557 = vmatpush.msra.mxu0 %v2508
        %2558 = vmatpush.msra.mxu0 %v2507
        %2559 = vmatpush.msra.mxu0 %v2506
        %2560 = vmatpush.msra.mxu0 %v2505
        %2561 = vmatpush.msra.mxu0 %v2504
        %2562 = vmatpush.msra.mxu0 %v2503
        %2563 = vmatpush.msra.mxu0 %v2502
        %2564 = vmatpush.msra.mxu0 %v2501
        %2565 = vmatmul.f32.gmra.mxu0 %v2112
        %v2566 = vpop.f32.mrf.mxu0
        %v2567 = vadd.f32 0.0, %v2566
        %2568 = vmatmul.f32.gmra.mxu0 %v2113
        %v2569 = vpop.f32.mrf.mxu0
        %v2570 = vadd.f32 0.0, %v2569
        %2571 = vmatmul.f32.gmra.mxu0 %v2115
        %v2572 = vpop.f32.mrf.mxu0
        %v2573 = vadd.f32 0.0, %v2572
        %2574 = vmatmul.f32.gmra.mxu0 %v2116
        %v2575 = vpop.f32.mrf.mxu0
        %v2576 = vadd.f32 0.0, %v2575
        %2577 = vmatmul.f32.gmra.mxu0 %v2118
        %v2578 = vpop.f32.mrf.mxu0
        %v2579 = vadd.f32 0.0, %v2578
        %2580 = vmatmul.f32.gmra.mxu0 %v2119
        %v2581 = vpop.f32.mrf.mxu0
        %v2582 = vadd.f32 0.0, %v2581
        %2583 = vmatmul.f32.gmra.mxu0 %v2121
        %v2584 = vpop.f32.mrf.mxu0
        %v2585 = vadd.f32 0.0, %v2584
        %2586 = vmatmul.f32.gmra.mxu0 %v2122
        %v2587 = vpop.f32.mrf.mxu0
        %v2588 = vadd.f32 0.0, %v2587
        %2589 = vmatmul.f32.gmra.mxu0 %v2124
        %v2590 = vpop.f32.mrf.mxu0
        %v2591 = vadd.f32 0.0, %v2590
        %2592 = vmatmul.f32.gmra.mxu0 %v2125
        %v2593 = vpop.f32.mrf.mxu0
        %v2594 = vadd.f32 0.0, %v2593
        %2595 = vmatmul.f32.gmra.mxu0 %v2127
        %v2596 = vpop.f32.mrf.mxu0
        %v2597 = vadd.f32 0.0, %v2596
        %2598 = vmatmul.f32.gmra.mxu0 %v2128
        %v2599 = vpop.f32.mrf.mxu0
        %v2600 = vadd.f32 0.0, %v2599
        %2601 = vmatmul.f32.gmra.mxu0 %v2130
        %v2602 = vpop.f32.mrf.mxu0
        %v2603 = vadd.f32 0.0, %v2602
        %2604 = vmatmul.f32.gmra.mxu0 %v2131
        %v2605 = vpop.f32.mrf.mxu0
        %v2606 = vadd.f32 0.0, %v2605
        %2607 = vmatmul.f32.gmra.mxu0 %v2133
        %v2608 = vpop.f32.mrf.mxu0
        %v2609 = vadd.f32 0.0, %v2608
        %2610 = vmatmul.f32.gmra.mxu0 %v2134
        %v2611 = vpop.f32.mrf.mxu0
        %v2612 = vadd.f32 0.0, %v2611
        %2613 = vmatmul.f32.gmra.mxu0 %v2136
        %v2614 = vpop.f32.mrf.mxu0
        %v2615 = vadd.f32 0.0, %v2614
        %2616 = vmatmul.f32.gmra.mxu0 %v2137
        %v2617 = vpop.f32.mrf.mxu0
        %v2618 = vadd.f32 0.0, %v2617
        %2619 = vmatmul.f32.gmra.mxu0 %v2139
        %v2620 = vpop.f32.mrf.mxu0
        %v2621 = vadd.f32 0.0, %v2620
        %2622 = vmatmul.f32.gmra.mxu0 %v2140
        %v2623 = vpop.f32.mrf.mxu0
        %v2624 = vadd.f32 0.0, %v2623
        %2625 = vmatmul.f32.gmra.mxu0 %v2142
        %v2626 = vpop.f32.mrf.mxu0
        %v2627 = vadd.f32 0.0, %v2626
        %2628 = vmatmul.f32.gmra.mxu0 %v2143
        %v2629 = vpop.f32.mrf.mxu0
        %v2630 = vadd.f32 0.0, %v2629
        %2631 = vmatmul.f32.gmra.mxu0 %v2145
        %v2632 = vpop.f32.mrf.mxu0
        %v2633 = vadd.f32 0.0, %v2632
        %2634 = vmatmul.f32.gmra.mxu0 %v2146
        %v2635 = vpop.f32.mrf.mxu0
        %v2636 = vadd.f32 0.0, %v2635
        %2637 = vmatmul.f32.gmra.mxu0 %v2148
        %v2638 = vpop.f32.mrf.mxu0
        %v2639 = vadd.f32 0.0, %v2638
        %2640 = vmatmul.f32.gmra.mxu0 %v2149
        %v2641 = vpop.f32.mrf.mxu0
        %v2642 = vadd.f32 0.0, %v2641
        %2643 = vmatmul.f32.gmra.mxu0 %v2151
        %v2644 = vpop.f32.mrf.mxu0
        %v2645 = vadd.f32 0.0, %v2644
        %2646 = vmatmul.f32.gmra.mxu0 %v2152
        %v2647 = vpop.f32.mrf.mxu0
        %v2648 = vadd.f32 0.0, %v2647
        %2649 = vmatmul.f32.gmra.mxu0 %v2154
        %v2650 = vpop.f32.mrf.mxu0
        %v2651 = vadd.f32 0.0, %v2650
        %2652 = vmatmul.f32.gmra.mxu0 %v2155
        %v2653 = vpop.f32.mrf.mxu0
        %v2654 = vadd.f32 0.0, %v2653
        %2655 = vmatmul.f32.gmra.mxu0 %v2157
        %v2656 = vpop.f32.mrf.mxu0
        %v2657 = vadd.f32 0.0, %v2656
        %2658 = vmatmul.f32.gmra.mxu0 %v2158
        %v2659 = vpop.f32.mrf.mxu0
        %v2660 = vadd.f32 0.0, %v2659
        %2661 = vdwg.mxu0
        %2662 = vmatpush.msra.mxu0 %v2532
        %2663 = vmatpush.msra.mxu0 %v2531
        %2664 = vmatpush.msra.mxu0 %v2530
        %2665 = vmatpush.msra.mxu0 %v2529
        %2666 = vmatpush.msra.mxu0 %v2528
        %2667 = vmatpush.msra.mxu0 %v2527
        %2668 = vmatpush.msra.mxu0 %v2526
        %2669 = vmatpush.msra.mxu0 %v2525
        %2670 = vmatpush.msra.mxu0 %v2524
        %2671 = vmatpush.msra.mxu0 %v2523
        %2672 = vmatpush.msra.mxu0 %v2522
        %2673 = vmatpush.msra.mxu0 %v2521
        %2674 = vmatpush.msra.mxu0 %v2520
        %2675 = vmatpush.msra.mxu0 %v2519
        %2676 = vmatpush.msra.mxu0 %v2518
        %2677 = vmatpush.msra.mxu0 %v2517
        %2678 = vmatmul.f32.gmra.mxu0 %v2218
        %v2679 = vpop.f32.mrf.mxu0
        %v2680 = vadd.f32 %v2567, %v2679
        %2681 = vmatmul.f32.gmra.mxu0 %v2220
        %v2682 = vpop.f32.mrf.mxu0
        %v2683 = vadd.f32 %v2570, %v2682
        %2684 = vmatmul.f32.gmra.mxu0 %v2223
        %v2685 = vpop.f32.mrf.mxu0
        %v2686 = vadd.f32 %v2573, %v2685
        %2687 = vmatmul.f32.gmra.mxu0 %v2225
        %v2688 = vpop.f32.mrf.mxu0
        %v2689 = vadd.f32 %v2576, %v2688
        %2690 = vmatmul.f32.gmra.mxu0 %v2228
        %v2691 = vpop.f32.mrf.mxu0
        %v2692 = vadd.f32 %v2579, %v2691
        %2693 = vmatmul.f32.gmra.mxu0 %v2230
        %v2694 = vpop.f32.mrf.mxu0
        %v2695 = vadd.f32 %v2582, %v2694
        %2696 = vmatmul.f32.gmra.mxu0 %v2233
        %v2697 = vpop.f32.mrf.mxu0
        %v2698 = vadd.f32 %v2585, %v2697
        %2699 = vmatmul.f32.gmra.mxu0 %v2235
        %v2700 = vpop.f32.mrf.mxu0
        %v2701 = vadd.f32 %v2588, %v2700
        %2702 = vmatmul.f32.gmra.mxu0 %v2238
        %v2703 = vpop.f32.mrf.mxu0
        %v2704 = vadd.f32 %v2591, %v2703
        %2705 = vmatmul.f32.gmra.mxu0 %v2240
        %v2706 = vpop.f32.mrf.mxu0
        %v2707 = vadd.f32 %v2594, %v2706
        %2708 = vmatmul.f32.gmra.mxu0 %v2243
        %v2709 = vpop.f32.mrf.mxu0
        %v2710 = vadd.f32 %v2597, %v2709
        %2711 = vmatmul.f32.gmra.mxu0 %v2245
        %v2712 = vpop.f32.mrf.mxu0
        %v2713 = vadd.f32 %v2600, %v2712
        %2714 = vmatmul.f32.gmra.mxu0 %v2248
        %v2715 = vpop.f32.mrf.mxu0
        %v2716 = vadd.f32 %v2603, %v2715
        %2717 = vmatmul.f32.gmra.mxu0 %v2250
        %v2718 = vpop.f32.mrf.mxu0
        %v2719 = vadd.f32 %v2606, %v2718
        %2720 = vmatmul.f32.gmra.mxu0 %v2253
        %v2721 = vpop.f32.mrf.mxu0
        %v2722 = vadd.f32 %v2609, %v2721
        %2723 = vmatmul.f32.gmra.mxu0 %v2255
        %v2724 = vpop.f32.mrf.mxu0
        %v2725 = vadd.f32 %v2612, %v2724
        %2726 = vmatmul.f32.gmra.mxu0 %v2258
        %v2727 = vpop.f32.mrf.mxu0
        %v2728 = vadd.f32 %v2615, %v2727
        %2729 = vmatmul.f32.gmra.mxu0 %v2260
        %v2730 = vpop.f32.mrf.mxu0
        %v2731 = vadd.f32 %v2618, %v2730
        %2732 = vmatmul.f32.gmra.mxu0 %v2263
        %v2733 = vpop.f32.mrf.mxu0
        %v2734 = vadd.f32 %v2621, %v2733
        %2735 = vmatmul.f32.gmra.mxu0 %v2265
        %v2736 = vpop.f32.mrf.mxu0
        %v2737 = vadd.f32 %v2624, %v2736
        %2738 = vmatmul.f32.gmra.mxu0 %v2268
        %v2739 = vpop.f32.mrf.mxu0
        %v2740 = vadd.f32 %v2627, %v2739
        %2741 = vmatmul.f32.gmra.mxu0 %v2270
        %v2742 = vpop.f32.mrf.mxu0
        %v2743 = vadd.f32 %v2630, %v2742
        %2744 = vmatmul.f32.gmra.mxu0 %v2273
        %v2745 = vpop.f32.mrf.mxu0
        %v2746 = vadd.f32 %v2633, %v2745
        %2747 = vmatmul.f32.gmra.mxu0 %v2275
        %v2748 = vpop.f32.mrf.mxu0
        %v2749 = vadd.f32 %v2636, %v2748
        %2750 = vmatmul.f32.gmra.mxu0 %v2278
        %v2751 = vpop.f32.mrf.mxu0
        %v2752 = vadd.f32 %v2639, %v2751
        %2753 = vmatmul.f32.gmra.mxu0 %v2280
        %v2754 = vpop.f32.mrf.mxu0
        %v2755 = vadd.f32 %v2642, %v2754
        %2756 = vmatmul.f32.gmra.mxu0 %v2283
        %v2757 = vpop.f32.mrf.mxu0
        %v2758 = vadd.f32 %v2645, %v2757
        %2759 = vmatmul.f32.gmra.mxu0 %v2285
        %v2760 = vpop.f32.mrf.mxu0
        %v2761 = vadd.f32 %v2648, %v2760
        %2762 = vmatmul.f32.gmra.mxu0 %v2288
        %v2763 = vpop.f32.mrf.mxu0
        %v2764 = vadd.f32 %v2651, %v2763
        %2765 = vmatmul.f32.gmra.mxu0 %v2290
        %v2766 = vpop.f32.mrf.mxu0
        %v2767 = vadd.f32 %v2654, %v2766
        %2768 = vmatmul.f32.gmra.mxu0 %v2488
        %v2769 = vpop.f32.mrf.mxu0
        %v2770 = vadd.f32 %v2657, %v2769
        %2771 = vmatmul.f32.gmra.mxu0 %v2490
        %v2772 = vpop.f32.mrf.mxu0
        %v2773 = vadd.f32 %v2660, %v2772
        %2774 = vdwg.mxu0
        %2775 = vmatpush.msra.mxu0 %v2548
        %2776 = vmatpush.msra.mxu0 %v2547
        %2777 = vmatpush.msra.mxu0 %v2546
        %2778 = vmatpush.msra.mxu0 %v2545
        %2779 = vmatpush.msra.mxu0 %v2544
        %2780 = vmatpush.msra.mxu0 %v2543
        %2781 = vmatpush.msra.mxu0 %v2542
        %2782 = vmatpush.msra.mxu0 %v2541
        %2783 = vmatpush.msra.mxu0 %v2540
        %2784 = vmatpush.msra.mxu0 %v2539
        %2785 = vmatpush.msra.mxu0 %v2538
        %2786 = vmatpush.msra.mxu0 %v2537
        %2787 = vmatpush.msra.mxu0 %v2536
        %2788 = vmatpush.msra.mxu0 %v2535
        %2789 = vmatpush.msra.mxu0 %v2534
        %2790 = vmatpush.msra.mxu0 %v2533
        %2791 = vmatmul.f32.gmra.mxu0 %v2330
        %v2792 = vpop.f32.mrf.mxu0
        %v2793 = vadd.f32 %v2680, %v2792
        %2794 = vmatmul.f32.gmra.mxu0 %v2332
        %v2795 = vpop.f32.mrf.mxu0
        %v2796 = vadd.f32 %v2683, %v2795
        %2797 = vmatmul.f32.gmra.mxu0 %v2335
        %v2798 = vpop.f32.mrf.mxu0
        %v2799 = vadd.f32 %v2686, %v2798
        %2800 = vmatmul.f32.gmra.mxu0 %v2337
        %v2801 = vpop.f32.mrf.mxu0
        %v2802 = vadd.f32 %v2689, %v2801
        %2803 = vmatmul.f32.gmra.mxu0 %v2340
        %v2804 = vpop.f32.mrf.mxu0
        %v2805 = vadd.f32 %v2692, %v2804
        %2806 = vmatmul.f32.gmra.mxu0 %v2342
        %v2807 = vpop.f32.mrf.mxu0
        %v2808 = vadd.f32 %v2695, %v2807
        %2809 = vmatmul.f32.gmra.mxu0 %v2345
        %v2810 = vpop.f32.mrf.mxu0
        %v2811 = vadd.f32 %v2698, %v2810
        %2812 = vmatmul.f32.gmra.mxu0 %v2347
        %v2813 = vpop.f32.mrf.mxu0
        %v2814 = vadd.f32 %v2701, %v2813
        %2815 = vmatmul.f32.gmra.mxu0 %v2350
        %v2816 = vpop.f32.mrf.mxu0
        %v2817 = vadd.f32 %v2704, %v2816
        %2818 = vmatmul.f32.gmra.mxu0 %v2352
        %v2819 = vpop.f32.mrf.mxu0
        %v2820 = vadd.f32 %v2707, %v2819
        %2821 = vmatmul.f32.gmra.mxu0 %v2355
        %v2822 = vpop.f32.mrf.mxu0
        %v2823 = vadd.f32 %v2710, %v2822
        %2824 = vmatmul.f32.gmra.mxu0 %v2357
        %v2825 = vpop.f32.mrf.mxu0
        %v2826 = vadd.f32 %v2713, %v2825
        %2827 = vmatmul.f32.gmra.mxu0 %v2360
        %v2828 = vpop.f32.mrf.mxu0
        %v2829 = vadd.f32 %v2716, %v2828
        %2830 = vmatmul.f32.gmra.mxu0 %v2362
        %v2831 = vpop.f32.mrf.mxu0
        %v2832 = vadd.f32 %v2719, %v2831
        %2833 = vmatmul.f32.gmra.mxu0 %v2365
        %v2834 = vpop.f32.mrf.mxu0
        %v2835 = vadd.f32 %v2722, %v2834
        %2836 = vmatmul.f32.gmra.mxu0 %v2367
        %v2837 = vpop.f32.mrf.mxu0
        %v2838 = vadd.f32 %v2725, %v2837
        %2839 = vmatmul.f32.gmra.mxu0 %v2370
        %v2840 = vpop.f32.mrf.mxu0
        %v2841 = vadd.f32 %v2728, %v2840
        %2842 = vmatmul.f32.gmra.mxu0 %v2372
        %v2843 = vpop.f32.mrf.mxu0
        %v2844 = vadd.f32 %v2731, %v2843
        %2845 = vmatmul.f32.gmra.mxu0 %v2375
        %v2846 = vpop.f32.mrf.mxu0
        %v2847 = vadd.f32 %v2734, %v2846
        %2848 = vmatmul.f32.gmra.mxu0 %v2377
        %v2849 = vpop.f32.mrf.mxu0
        %v2850 = vadd.f32 %v2737, %v2849
        %2851 = vmatmul.f32.gmra.mxu0 %v2380
        %v2852 = vpop.f32.mrf.mxu0
        %v2853 = vadd.f32 %v2740, %v2852
        %2854 = vmatmul.f32.gmra.mxu0 %v2382
        %v2855 = vpop.f32.mrf.mxu0
        %v2856 = vadd.f32 %v2743, %v2855
        %2857 = vmatmul.f32.gmra.mxu0 %v2385
        %v2858 = vpop.f32.mrf.mxu0
        %v2859 = vadd.f32 %v2746, %v2858
        %2860 = vmatmul.f32.gmra.mxu0 %v2387
        %v2861 = vpop.f32.mrf.mxu0
        %v2862 = vadd.f32 %v2749, %v2861
        %2863 = vmatmul.f32.gmra.mxu0 %v2390
        %v2864 = vpop.f32.mrf.mxu0
        %v2865 = vadd.f32 %v2752, %v2864
        %2866 = vmatmul.f32.gmra.mxu0 %v2392
        %v2867 = vpop.f32.mrf.mxu0
        %v2868 = vadd.f32 %v2755, %v2867
        %2869 = vmatmul.f32.gmra.mxu0 %v2395
        %v2870 = vpop.f32.mrf.mxu0
        %v2871 = vadd.f32 %v2758, %v2870
        %2872 = vmatmul.f32.gmra.mxu0 %v2397
        %v2873 = vpop.f32.mrf.mxu0
        %v2874 = vadd.f32 %v2761, %v2873
        %2875 = vmatmul.f32.gmra.mxu0 %v2400
        %v2876 = vpop.f32.mrf.mxu0
        %v2877 = vadd.f32 %v2764, %v2876
        %2878 = vmatmul.f32.gmra.mxu0 %v2402
        %v2879 = vpop.f32.mrf.mxu0
        %v2880 = vadd.f32 %v2767, %v2879
        %2881 = vmatmul.f32.gmra.mxu0 %v2495
        %v2882 = vpop.f32.mrf.mxu0
        %v2883 = vadd.f32 %v2770, %v2882
        %2884 = vmatmul.f32.gmra.mxu0 %v2497
        %v2885 = vpop.f32.mrf.mxu0
        %v2886 = vadd.f32 %v2773, %v2885
        %2887 = vdwg.mxu0
        %2888 = vmatpush.msra.mxu0 %v2450
        %2889 = vmatpush.msra.mxu0 %v2449
        %2890 = vmatpush.msra.mxu0 %v2448
        %2891 = vmatpush.msra.mxu0 %v2447
        %2892 = vmatpush.msra.mxu0 %v2446
        %2893 = vmatpush.msra.mxu0 %v2445
        %2894 = vmatpush.msra.mxu0 %v2444
        %2895 = vmatpush.msra.mxu0 %v2443
        %2896 = vmatpush.msra.mxu0 %v2442
        %2897 = vmatpush.msra.mxu0 %v2441
        %2898 = vmatpush.msra.mxu0 %v2440
        %2899 = vmatpush.msra.mxu0 %v2439
        %2900 = vmatpush.msra.mxu0 %v2438
        %2901 = vmatpush.msra.mxu0 %v2437
        %2902 = vmatpush.msra.mxu0 %v2436
        %2903 = vmatpush.msra.mxu0 %v2435
        %2904 = vmatmul.f32.gmra.mxu0 %v2109
        %v2905 = vpop.f32.mrf.mxu0
        %v2906 = vadd.f32 %v2793, %v2905
        %2907 = vmatmul.f32.gmra.mxu0 %v2110
        %v2908 = vpop.f32.mrf.mxu0
        %v2909 = vadd.f32 %v2796, %v2908
        %2910 = vmatmul.f32.gmra.mxu0 %v2112
        %v2911 = vpop.f32.mrf.mxu0
        %v2912 = vadd.f32 %v2799, %v2911
        %2913 = vmatmul.f32.gmra.mxu0 %v2113
        %v2914 = vpop.f32.mrf.mxu0
        %v2915 = vadd.f32 %v2802, %v2914
        %2916 = vmatmul.f32.gmra.mxu0 %v2115
        %v2917 = vpop.f32.mrf.mxu0
        %v2918 = vadd.f32 %v2805, %v2917
        %2919 = vmatmul.f32.gmra.mxu0 %v2116
        %v2920 = vpop.f32.mrf.mxu0
        %v2921 = vadd.f32 %v2808, %v2920
        %2922 = vmatmul.f32.gmra.mxu0 %v2118
        %v2923 = vpop.f32.mrf.mxu0
        %v2924 = vadd.f32 %v2811, %v2923
        %2925 = vmatmul.f32.gmra.mxu0 %v2119
        %v2926 = vpop.f32.mrf.mxu0
        %v2927 = vadd.f32 %v2814, %v2926
        %2928 = vmatmul.f32.gmra.mxu0 %v2121
        %v2929 = vpop.f32.mrf.mxu0
        %v2930 = vadd.f32 %v2817, %v2929
        %2931 = vmatmul.f32.gmra.mxu0 %v2122
        %v2932 = vpop.f32.mrf.mxu0
        %v2933 = vadd.f32 %v2820, %v2932
        %2934 = vmatmul.f32.gmra.mxu0 %v2124
        %v2935 = vpop.f32.mrf.mxu0
        %v2936 = vadd.f32 %v2823, %v2935
        %2937 = vmatmul.f32.gmra.mxu0 %v2125
        %v2938 = vpop.f32.mrf.mxu0
        %v2939 = vadd.f32 %v2826, %v2938
        %2940 = vmatmul.f32.gmra.mxu0 %v2127
        %v2941 = vpop.f32.mrf.mxu0
        %v2942 = vadd.f32 %v2829, %v2941
        %2943 = vmatmul.f32.gmra.mxu0 %v2128
        %v2944 = vpop.f32.mrf.mxu0
        %v2945 = vadd.f32 %v2832, %v2944
        %2946 = vmatmul.f32.gmra.mxu0 %v2130
        %v2947 = vpop.f32.mrf.mxu0
        %v2948 = vadd.f32 %v2835, %v2947
        %2949 = vmatmul.f32.gmra.mxu0 %v2131
        %v2950 = vpop.f32.mrf.mxu0
        %v2951 = vadd.f32 %v2838, %v2950
        %2952 = vmatmul.f32.gmra.mxu0 %v2133
        %v2953 = vpop.f32.mrf.mxu0
        %v2954 = vadd.f32 %v2841, %v2953
        %2955 = vmatmul.f32.gmra.mxu0 %v2134
        %v2956 = vpop.f32.mrf.mxu0
        %v2957 = vadd.f32 %v2844, %v2956
        %2958 = vmatmul.f32.gmra.mxu0 %v2136
        %v2959 = vpop.f32.mrf.mxu0
        %v2960 = vadd.f32 %v2847, %v2959
        %2961 = vmatmul.f32.gmra.mxu0 %v2137
        %v2962 = vpop.f32.mrf.mxu0
        %v2963 = vadd.f32 %v2850, %v2962
        %2964 = vmatmul.f32.gmra.mxu0 %v2139
        %v2965 = vpop.f32.mrf.mxu0
        %v2966 = vadd.f32 %v2853, %v2965
        %2967 = vmatmul.f32.gmra.mxu0 %v2140
        %v2968 = vpop.f32.mrf.mxu0
        %v2969 = vadd.f32 %v2856, %v2968
        %2970 = vmatmul.f32.gmra.mxu0 %v2142
        %v2971 = vpop.f32.mrf.mxu0
        %v2972 = vadd.f32 %v2859, %v2971
        %2973 = vmatmul.f32.gmra.mxu0 %v2143
        %v2974 = vpop.f32.mrf.mxu0
        %v2975 = vadd.f32 %v2862, %v2974
        %2976 = vmatmul.f32.gmra.mxu0 %v2145
        %v2977 = vpop.f32.mrf.mxu0
        %v2978 = vadd.f32 %v2865, %v2977
        %2979 = vmatmul.f32.gmra.mxu0 %v2146
        %v2980 = vpop.f32.mrf.mxu0
        %v2981 = vadd.f32 %v2868, %v2980
        %2982 = vmatmul.f32.gmra.mxu0 %v2148
        %v2983 = vpop.f32.mrf.mxu0
        %v2984 = vadd.f32 %v2871, %v2983
        %2985 = vmatmul.f32.gmra.mxu0 %v2149
        %v2986 = vpop.f32.mrf.mxu0
        %v2987 = vadd.f32 %v2874, %v2986
        %2988 = vmatmul.f32.gmra.mxu0 %v2151
        %v2989 = vpop.f32.mrf.mxu0
        %v2990 = vadd.f32 %v2877, %v2989
        %2991 = vmatmul.f32.gmra.mxu0 %v2152
        %v2992 = vpop.f32.mrf.mxu0
        %v2993 = vadd.f32 %v2880, %v2992
        %2994 = vmatmul.f32.gmra.mxu0 %v2154
        %v2995 = vpop.f32.mrf.mxu0
        %v2996 = vadd.f32 %v2883, %v2995
        %2997 = vmatmul.f32.gmra.mxu0 %v2155
        %v2998 = vpop.f32.mrf.mxu0
        %v2999 = vadd.f32 %v2886, %v2998
        %3000 = vdwg.mxu0
        %3001 = vmatpush.msra.mxu0 %v2466
        %3002 = vmatpush.msra.mxu0 %v2465
        %3003 = vmatpush.msra.mxu0 %v2464
        %3004 = vmatpush.msra.mxu0 %v2463
        %3005 = vmatpush.msra.mxu0 %v2462
        %3006 = vmatpush.msra.mxu0 %v2461
        %3007 = vmatpush.msra.mxu0 %v2460
        %3008 = vmatpush.msra.mxu0 %v2459
        %3009 = vmatpush.msra.mxu0 %v2458
        %3010 = vmatpush.msra.mxu0 %v2457
        %3011 = vmatpush.msra.mxu0 %v2456
        %3012 = vmatpush.msra.mxu0 %v2455
        %3013 = vmatpush.msra.mxu0 %v2454
        %3014 = vmatpush.msra.mxu0 %v2453
        %3015 = vmatpush.msra.mxu0 %v2452
        %3016 = vmatpush.msra.mxu0 %v2451
        %3017 = vmatmul.f32.gmra.mxu0 %v2213
        %v3018 = vpop.f32.mrf.mxu0
        %v3019 = vadd.f32 %v2906, %v3018
        %3020 = vmatmul.f32.gmra.mxu0 %v2215
        %v3021 = vpop.f32.mrf.mxu0
        %v3022 = vadd.f32 %v2909, %v3021
        %3023 = vmatmul.f32.gmra.mxu0 %v2218
        %v3024 = vpop.f32.mrf.mxu0
        %v3025 = vadd.f32 %v2912, %v3024
        %3026 = vmatmul.f32.gmra.mxu0 %v2220
        %v3027 = vpop.f32.mrf.mxu0
        %v3028 = vadd.f32 %v2915, %v3027
        %3029 = vmatmul.f32.gmra.mxu0 %v2223
        %v3030 = vpop.f32.mrf.mxu0
        %v3031 = vadd.f32 %v2918, %v3030
        %3032 = vmatmul.f32.gmra.mxu0 %v2225
        %v3033 = vpop.f32.mrf.mxu0
        %v3034 = vadd.f32 %v2921, %v3033
        %3035 = vmatmul.f32.gmra.mxu0 %v2228
        %v3036 = vpop.f32.mrf.mxu0
        %v3037 = vadd.f32 %v2924, %v3036
        %3038 = vmatmul.f32.gmra.mxu0 %v2230
        %v3039 = vpop.f32.mrf.mxu0
        %v3040 = vadd.f32 %v2927, %v3039
        %3041 = vmatmul.f32.gmra.mxu0 %v2233
        %v3042 = vpop.f32.mrf.mxu0
        %v3043 = vadd.f32 %v2930, %v3042
        %3044 = vmatmul.f32.gmra.mxu0 %v2235
        %v3045 = vpop.f32.mrf.mxu0
        %v3046 = vadd.f32 %v2933, %v3045
        %3047 = vmatmul.f32.gmra.mxu0 %v2238
        %v3048 = vpop.f32.mrf.mxu0
        %v3049 = vadd.f32 %v2936, %v3048
        %3050 = vmatmul.f32.gmra.mxu0 %v2240
        %v3051 = vpop.f32.mrf.mxu0
        %v3052 = vadd.f32 %v2939, %v3051
        %3053 = vmatmul.f32.gmra.mxu0 %v2243
        %v3054 = vpop.f32.mrf.mxu0
        %v3055 = vadd.f32 %v2942, %v3054
        %3056 = vmatmul.f32.gmra.mxu0 %v2245
        %v3057 = vpop.f32.mrf.mxu0
        %v3058 = vadd.f32 %v2945, %v3057
        %3059 = vmatmul.f32.gmra.mxu0 %v2248
        %v3060 = vpop.f32.mrf.mxu0
        %v3061 = vadd.f32 %v2948, %v3060
        %3062 = vmatmul.f32.gmra.mxu0 %v2250
        %v3063 = vpop.f32.mrf.mxu0
        %v3064 = vadd.f32 %v2951, %v3063
        %3065 = vmatmul.f32.gmra.mxu0 %v2253
        %v3066 = vpop.f32.mrf.mxu0
        %v3067 = vadd.f32 %v2954, %v3066
        %3068 = vmatmul.f32.gmra.mxu0 %v2255
        %v3069 = vpop.f32.mrf.mxu0
        %v3070 = vadd.f32 %v2957, %v3069
        %3071 = vmatmul.f32.gmra.mxu0 %v2258
        %v3072 = vpop.f32.mrf.mxu0
        %v3073 = vadd.f32 %v2960, %v3072
        %3074 = vmatmul.f32.gmra.mxu0 %v2260
        %v3075 = vpop.f32.mrf.mxu0
        %v3076 = vadd.f32 %v2963, %v3075
        %3077 = vmatmul.f32.gmra.mxu0 %v2263
        %v3078 = vpop.f32.mrf.mxu0
        %v3079 = vadd.f32 %v2966, %v3078
        %3080 = vmatmul.f32.gmra.mxu0 %v2265
        %v3081 = vpop.f32.mrf.mxu0
        %v3082 = vadd.f32 %v2969, %v3081
        %3083 = vmatmul.f32.gmra.mxu0 %v2268
        %v3084 = vpop.f32.mrf.mxu0
        %v3085 = vadd.f32 %v2972, %v3084
        %3086 = vmatmul.f32.gmra.mxu0 %v2270
        %v3087 = vpop.f32.mrf.mxu0
        %v3088 = vadd.f32 %v2975, %v3087
        %3089 = vmatmul.f32.gmra.mxu0 %v2273
        %v3090 = vpop.f32.mrf.mxu0
        %v3091 = vadd.f32 %v2978, %v3090
        %3092 = vmatmul.f32.gmra.mxu0 %v2275
        %v3093 = vpop.f32.mrf.mxu0
        %v3094 = vadd.f32 %v2981, %v3093
        %3095 = vmatmul.f32.gmra.mxu0 %v2278
        %v3096 = vpop.f32.mrf.mxu0
        %v3097 = vadd.f32 %v2984, %v3096
        %3098 = vmatmul.f32.gmra.mxu0 %v2280
        %v3099 = vpop.f32.mrf.mxu0
        %v3100 = vadd.f32 %v2987, %v3099
        %3101 = vmatmul.f32.gmra.mxu0 %v2283
        %v3102 = vpop.f32.mrf.mxu0
        %v3103 = vadd.f32 %v2990, %v3102
        %3104 = vmatmul.f32.gmra.mxu0 %v2285
        %v3105 = vpop.f32.mrf.mxu0
        %v3106 = vadd.f32 %v2993, %v3105
        %3107 = vmatmul.f32.gmra.mxu0 %v2288
        %v3108 = vpop.f32.mrf.mxu0
        %v3109 = vadd.f32 %v2996, %v3108
        %3110 = vmatmul.f32.gmra.mxu0 %v2290
        %v3111 = vpop.f32.mrf.mxu0
        %v3112 = vadd.f32 %v2999, %v3111
        %3113 = vdwg.mxu0
        %3114 = vmatpush.msra.mxu0 %v2482
        %3115 = vmatpush.msra.mxu0 %v2481
        %3116 = vmatpush.msra.mxu0 %v2480
        %3117 = vmatpush.msra.mxu0 %v2479
        %3118 = vmatpush.msra.mxu0 %v2478
        %3119 = vmatpush.msra.mxu0 %v2477
        %3120 = vmatpush.msra.mxu0 %v2476
        %3121 = vmatpush.msra.mxu0 %v2475
        %3122 = vmatpush.msra.mxu0 %v2474
        %3123 = vmatpush.msra.mxu0 %v2473
        %3124 = vmatpush.msra.mxu0 %v2472
        %3125 = vmatpush.msra.mxu0 %v2471
        %3126 = vmatpush.msra.mxu0 %v2470
        %3127 = vmatpush.msra.mxu0 %v2469
        %3128 = vmatpush.msra.mxu0 %v2468
        %3129 = vmatpush.msra.mxu0 %v2467
        %3130 = vmatmul.f32.gmra.mxu0 %v2325
        %v3131 = vpop.f32.mrf.mxu0
        %v3132 = vadd.f32 %v3019, %v3131
        %3133 = vmatmul.f32.gmra.mxu0 %v2327
        %v3134 = vpop.f32.mrf.mxu0
        %v3135 = vadd.f32 %v3022, %v3134
        %3136 = vmatmul.f32.gmra.mxu0 %v2330
        %v3137 = vpop.f32.mrf.mxu0
        %v3138 = vadd.f32 %v3025, %v3137
        %3139 = vmatmul.f32.gmra.mxu0 %v2332
        %v3140 = vpop.f32.mrf.mxu0
        %v3141 = vadd.f32 %v3028, %v3140
        %3142 = vmatmul.f32.gmra.mxu0 %v2335
        %v3143 = vpop.f32.mrf.mxu0
        %v3144 = vadd.f32 %v3031, %v3143
        %3145 = vmatmul.f32.gmra.mxu0 %v2337
        %v3146 = vpop.f32.mrf.mxu0
        %v3147 = vadd.f32 %v3034, %v3146
        %3148 = vmatmul.f32.gmra.mxu0 %v2340
        %v3149 = vpop.f32.mrf.mxu0
        %v3150 = vadd.f32 %v3037, %v3149
        %3151 = vmatmul.f32.gmra.mxu0 %v2342
        %v3152 = vpop.f32.mrf.mxu0
        %v3153 = vadd.f32 %v3040, %v3152
        %3154 = vmatmul.f32.gmra.mxu0 %v2345
        %v3155 = vpop.f32.mrf.mxu0
        %v3156 = vadd.f32 %v3043, %v3155
        %3157 = vmatmul.f32.gmra.mxu0 %v2347
        %v3158 = vpop.f32.mrf.mxu0
        %v3159 = vadd.f32 %v3046, %v3158
        %3160 = vmatmul.f32.gmra.mxu0 %v2350
        %v3161 = vpop.f32.mrf.mxu0
        %v3162 = vadd.f32 %v3049, %v3161
        %3163 = vmatmul.f32.gmra.mxu0 %v2352
        %v3164 = vpop.f32.mrf.mxu0
        %v3165 = vadd.f32 %v3052, %v3164
        %3166 = vmatmul.f32.gmra.mxu0 %v2355
        %v3167 = vpop.f32.mrf.mxu0
        %v3168 = vadd.f32 %v3055, %v3167
        %3169 = vmatmul.f32.gmra.mxu0 %v2357
        %v3170 = vpop.f32.mrf.mxu0
        %v3171 = vadd.f32 %v3058, %v3170
        %3172 = vmatmul.f32.gmra.mxu0 %v2360
        %v3173 = vpop.f32.mrf.mxu0
        %v3174 = vadd.f32 %v3061, %v3173
        %3175 = vmatmul.f32.gmra.mxu0 %v2362
        %v3176 = vpop.f32.mrf.mxu0
        %v3177 = vadd.f32 %v3064, %v3176
        %3178 = vmatmul.f32.gmra.mxu0 %v2365
        %v3179 = vpop.f32.mrf.mxu0
        %v3180 = vadd.f32 %v3067, %v3179
        %3181 = vmatmul.f32.gmra.mxu0 %v2367
        %v3182 = vpop.f32.mrf.mxu0
        %v3183 = vadd.f32 %v3070, %v3182
        %3184 = vmatmul.f32.gmra.mxu0 %v2370
        %v3185 = vpop.f32.mrf.mxu0
        %v3186 = vadd.f32 %v3073, %v3185
        %3187 = vmatmul.f32.gmra.mxu0 %v2372
        %v3188 = vpop.f32.mrf.mxu0
        %v3189 = vadd.f32 %v3076, %v3188
        %3190 = vmatmul.f32.gmra.mxu0 %v2375
        %v3191 = vpop.f32.mrf.mxu0
        %v3192 = vadd.f32 %v3079, %v3191
        %3193 = vmatmul.f32.gmra.mxu0 %v2377
        %v3194 = vpop.f32.mrf.mxu0
        %v3195 = vadd.f32 %v3082, %v3194
        %3196 = vmatmul.f32.gmra.mxu0 %v2380
        %v3197 = vpop.f32.mrf.mxu0
        %v3198 = vadd.f32 %v3085, %v3197
        %3199 = vmatmul.f32.gmra.mxu0 %v2382
        %v3200 = vpop.f32.mrf.mxu0
        %v3201 = vadd.f32 %v3088, %v3200
        %3202 = vmatmul.f32.gmra.mxu0 %v2385
        %v3203 = vpop.f32.mrf.mxu0
        %v3204 = vadd.f32 %v3091, %v3203
        %3205 = vmatmul.f32.gmra.mxu0 %v2387
        %v3206 = vpop.f32.mrf.mxu0
        %v3207 = vadd.f32 %v3094, %v3206
        %3208 = vmatmul.f32.gmra.mxu0 %v2390
        %v3209 = vpop.f32.mrf.mxu0
        %v3210 = vadd.f32 %v3097, %v3209
        %3211 = vmatmul.f32.gmra.mxu0 %v2392
        %v3212 = vpop.f32.mrf.mxu0
        %v3213 = vadd.f32 %v3100, %v3212
        %3214 = vmatmul.f32.gmra.mxu0 %v2395
        %v3215 = vpop.f32.mrf.mxu0
        %v3216 = vadd.f32 %v3103, %v3215
        %3217 = vmatmul.f32.gmra.mxu0 %v2397
        %v3218 = vpop.f32.mrf.mxu0
        %v3219 = vadd.f32 %v3106, %v3218
        %3220 = vmatmul.f32.gmra.mxu0 %v2400
        %v3221 = vpop.f32.mrf.mxu0
        %v3222 = vadd.f32 %v3109, %v3221
        %3223 = vmatmul.f32.gmra.mxu0 %v2402
        %v3224 = vpop.f32.mrf.mxu0
        %v3225 = vadd.f32 %v3112, %v3224
        %3226 = vdwg.mxu0
        %v3230 = vrot.slane %v2160, 1
        %v3231 = vrot.slane %v2161, 1
        %v3232 = vsel %vm553, %v3230, %v3231
        %v3233 = vrot.slane %v2162, 1
        %v3234 = vsel %vm553, %v3231, %v3233
        %v3237 = vrot.slane %v2160, 2
        %v3238 = vrot.slane %v2161, 2
        %v3239 = vsel %vm666, %v3237, %v3238
        %v3240 = vrot.slane %v2162, 2
        %v3241 = vsel %vm666, %v3238, %v3240
        %s3244 = scalar_lea.vmem [#allocation9], 768
        %v3245 = vld [vmem:[%s3244] sm:$0xff]
        %v3246 = vld [vmem:[%s3244 + $0x8] sm:$0xff]
        %v3247 = vld [vmem:[%s3244 + $0x10] sm:$0xff]
        %v3248 = vld [vmem:[%s3244 + $0x18] sm:$0xff]
        %v3249 = vld [vmem:[%s3244 + $0x20] sm:$0xff]
        %v3250 = vld [vmem:[%s3244 + $0x28] sm:$0xff]
        %v3251 = vld [vmem:[%s3244 + $0x30] sm:$0xff]
        %v3252 = vld [vmem:[%s3244 + $0x38] sm:$0xff]
        %v3253 = vld [vmem:[%s3244 + $0x40] sm:$0xff]
        %v3254 = vld [vmem:[%s3244 + $0x48] sm:$0xff]
        %v3255 = vld [vmem:[%s3244 + $0x50] sm:$0xff]
        %v3256 = vld [vmem:[%s3244 + $0x58] sm:$0xff]
        %v3257 = vld [vmem:[%s3244 + $0x60] sm:$0xff]
        %v3258 = vld [vmem:[%s3244 + $0x68] sm:$0xff]
        %v3259 = vld [vmem:[%s3244 + $0x70] sm:$0xff]
        %v3260 = vld [vmem:[%s3244 + $0x78] sm:$0xff]
        %v3261 = vld [vmem:[%s3244 + $0x80] sm:$0xff]
        %v3262 = vld [vmem:[%s3244 + $0x88] sm:$0xff]
        %v3263 = vld [vmem:[%s3244 + $0x90] sm:$0xff]
        %v3264 = vld [vmem:[%s3244 + $0x98] sm:$0xff]
        %v3265 = vld [vmem:[%s3244 + $0xa0] sm:$0xff]
        %v3266 = vld [vmem:[%s3244 + $0xa8] sm:$0xff]
        %v3267 = vld [vmem:[%s3244 + $0xb0] sm:$0xff]
        %v3268 = vld [vmem:[%s3244 + $0xb8] sm:$0xff]
        %v3269 = vld [vmem:[%s3244 + $0xc0] sm:$0xff]
        %v3270 = vld [vmem:[%s3244 + $0xc8] sm:$0xff]
        %v3271 = vld [vmem:[%s3244 + $0xd0] sm:$0xff]
        %v3272 = vld [vmem:[%s3244 + $0xd8] sm:$0xff]
        %v3273 = vld [vmem:[%s3244 + $0xe0] sm:$0xff]
        %v3274 = vld [vmem:[%s3244 + $0xe8] sm:$0xff]
        %v3275 = vld [vmem:[%s3244 + $0xf0] sm:$0xff]
        %v3276 = vld [vmem:[%s3244 + $0xf8] sm:$0xff]
        %v3277 = vld [vmem:[%s3244 + $0x100] sm:$0xff]
        %v3278 = vld [vmem:[%s3244 + $0x108] sm:$0xff]
        %v3279 = vld [vmem:[%s3244 + $0x110] sm:$0xff]
        %v3280 = vld [vmem:[%s3244 + $0x118] sm:$0xff]
        %v3281 = vld [vmem:[%s3244 + $0x120] sm:$0xff]
        %v3282 = vld [vmem:[%s3244 + $0x128] sm:$0xff]
        %v3283 = vld [vmem:[%s3244 + $0x130] sm:$0xff]
        %v3284 = vld [vmem:[%s3244 + $0x138] sm:$0xff]
        %v3285 = vld [vmem:[%s3244 + $0x140] sm:$0xff]
        %v3286 = vld [vmem:[%s3244 + $0x148] sm:$0xff]
        %v3287 = vld [vmem:[%s3244 + $0x150] sm:$0xff]
        %v3288 = vld [vmem:[%s3244 + $0x158] sm:$0xff]
        %v3289 = vld [vmem:[%s3244 + $0x160] sm:$0xff]
        %v3290 = vld [vmem:[%s3244 + $0x168] sm:$0xff]
        %v3291 = vld [vmem:[%s3244 + $0x170] sm:$0xff]
        %v3292 = vld [vmem:[%s3244 + $0x178] sm:$0xff]
        %3293 = vmatpush.msra.mxu0 %v3260
        %3294 = vmatpush.msra.mxu0 %v3259
        %3295 = vmatpush.msra.mxu0 %v3258
        %3296 = vmatpush.msra.mxu0 %v3257
        %3297 = vmatpush.msra.mxu0 %v3256
        %3298 = vmatpush.msra.mxu0 %v3255
        %3299 = vmatpush.msra.mxu0 %v3254
        %3300 = vmatpush.msra.mxu0 %v3253
        %3301 = vmatpush.msra.mxu0 %v3252
        %3302 = vmatpush.msra.mxu0 %v3251
        %3303 = vmatpush.msra.mxu0 %v3250
        %3304 = vmatpush.msra.mxu0 %v3249
        %3305 = vmatpush.msra.mxu0 %v3248
        %3306 = vmatpush.msra.mxu0 %v3247
        %3307 = vmatpush.msra.mxu0 %v3246
        %3308 = vmatpush.msra.mxu0 %v3245
        %3309 = vmatmul.f32.gmra.mxu0 %v2115
        %v3310 = vpop.f32.mrf.mxu0
        %v3311 = vadd.f32 0.0, %v3310
        %3312 = vmatmul.f32.gmra.mxu0 %v2116
        %v3313 = vpop.f32.mrf.mxu0
        %v3314 = vadd.f32 0.0, %v3313
        %3315 = vmatmul.f32.gmra.mxu0 %v2118
        %v3316 = vpop.f32.mrf.mxu0
        %v3317 = vadd.f32 0.0, %v3316
        %3318 = vmatmul.f32.gmra.mxu0 %v2119
        %v3319 = vpop.f32.mrf.mxu0
        %v3320 = vadd.f32 0.0, %v3319
        %3321 = vmatmul.f32.gmra.mxu0 %v2121
        %v3322 = vpop.f32.mrf.mxu0
        %v3323 = vadd.f32 0.0, %v3322
        %3324 = vmatmul.f32.gmra.mxu0 %v2122
        %v3325 = vpop.f32.mrf.mxu0
        %v3326 = vadd.f32 0.0, %v3325
        %3327 = vmatmul.f32.gmra.mxu0 %v2124
        %v3328 = vpop.f32.mrf.mxu0
        %v3329 = vadd.f32 0.0, %v3328
        %3330 = vmatmul.f32.gmra.mxu0 %v2125
        %v3331 = vpop.f32.mrf.mxu0
        %v3332 = vadd.f32 0.0, %v3331
        %3333 = vmatmul.f32.gmra.mxu0 %v2127
        %v3334 = vpop.f32.mrf.mxu0
        %v3335 = vadd.f32 0.0, %v3334
        %3336 = vmatmul.f32.gmra.mxu0 %v2128
        %v3337 = vpop.f32.mrf.mxu0
        %v3338 = vadd.f32 0.0, %v3337
        %3339 = vmatmul.f32.gmra.mxu0 %v2130
        %v3340 = vpop.f32.mrf.mxu0
        %v3341 = vadd.f32 0.0, %v3340
        %3342 = vmatmul.f32.gmra.mxu0 %v2131
        %v3343 = vpop.f32.mrf.mxu0
        %v3344 = vadd.f32 0.0, %v3343
        %3345 = vmatmul.f32.gmra.mxu0 %v2133
        %v3346 = vpop.f32.mrf.mxu0
        %v3347 = vadd.f32 0.0, %v3346
        %3348 = vmatmul.f32.gmra.mxu0 %v2134
        %v3349 = vpop.f32.mrf.mxu0
        %v3350 = vadd.f32 0.0, %v3349
        %3351 = vmatmul.f32.gmra.mxu0 %v2136
        %v3352 = vpop.f32.mrf.mxu0
        %v3353 = vadd.f32 0.0, %v3352
        %3354 = vmatmul.f32.gmra.mxu0 %v2137
        %v3355 = vpop.f32.mrf.mxu0
        %v3356 = vadd.f32 0.0, %v3355
        %3357 = vmatmul.f32.gmra.mxu0 %v2139
        %v3358 = vpop.f32.mrf.mxu0
        %v3359 = vadd.f32 0.0, %v3358
        %3360 = vmatmul.f32.gmra.mxu0 %v2140
        %v3361 = vpop.f32.mrf.mxu0
        %v3362 = vadd.f32 0.0, %v3361
        %3363 = vmatmul.f32.gmra.mxu0 %v2142
        %v3364 = vpop.f32.mrf.mxu0
        %v3365 = vadd.f32 0.0, %v3364
        %3366 = vmatmul.f32.gmra.mxu0 %v2143
        %v3367 = vpop.f32.mrf.mxu0
        %v3368 = vadd.f32 0.0, %v3367
        %3369 = vmatmul.f32.gmra.mxu0 %v2145
        %v3370 = vpop.f32.mrf.mxu0
        %v3371 = vadd.f32 0.0, %v3370
        %3372 = vmatmul.f32.gmra.mxu0 %v2146
        %v3373 = vpop.f32.mrf.mxu0
        %v3374 = vadd.f32 0.0, %v3373
        %3375 = vmatmul.f32.gmra.mxu0 %v2148
        %v3376 = vpop.f32.mrf.mxu0
        %v3377 = vadd.f32 0.0, %v3376
        %3378 = vmatmul.f32.gmra.mxu0 %v2149
        %v3379 = vpop.f32.mrf.mxu0
        %v3380 = vadd.f32 0.0, %v3379
        %3381 = vmatmul.f32.gmra.mxu0 %v2151
        %v3382 = vpop.f32.mrf.mxu0
        %v3383 = vadd.f32 0.0, %v3382
        %3384 = vmatmul.f32.gmra.mxu0 %v2152
        %v3385 = vpop.f32.mrf.mxu0
        %v3386 = vadd.f32 0.0, %v3385
        %3387 = vmatmul.f32.gmra.mxu0 %v2154
        %v3388 = vpop.f32.mrf.mxu0
        %v3389 = vadd.f32 0.0, %v3388
        %3390 = vmatmul.f32.gmra.mxu0 %v2155
        %v3391 = vpop.f32.mrf.mxu0
        %v3392 = vadd.f32 0.0, %v3391
        %3393 = vmatmul.f32.gmra.mxu0 %v2157
        %v3394 = vpop.f32.mrf.mxu0
        %v3395 = vadd.f32 0.0, %v3394
        %3396 = vmatmul.f32.gmra.mxu0 %v2158
        %v3397 = vpop.f32.mrf.mxu0
        %v3398 = vadd.f32 0.0, %v3397
        %3399 = vmatmul.f32.gmra.mxu0 %v2160
        %v3400 = vpop.f32.mrf.mxu0
        %v3401 = vadd.f32 0.0, %v3400
        %3402 = vmatmul.f32.gmra.mxu0 %v2161
        %v3403 = vpop.f32.mrf.mxu0
        %v3404 = vadd.f32 0.0, %v3403
        %3405 = vdwg.mxu0
        %3406 = vmatpush.msra.mxu0 %v3276
        %3407 = vmatpush.msra.mxu0 %v3275
        %3408 = vmatpush.msra.mxu0 %v3274
        %3409 = vmatpush.msra.mxu0 %v3273
        %3410 = vmatpush.msra.mxu0 %v3272
        %3411 = vmatpush.msra.mxu0 %v3271
        %3412 = vmatpush.msra.mxu0 %v3270
        %3413 = vmatpush.msra.mxu0 %v3269
        %3414 = vmatpush.msra.mxu0 %v3268
        %3415 = vmatpush.msra.mxu0 %v3267
        %3416 = vmatpush.msra.mxu0 %v3266
        %3417 = vmatpush.msra.mxu0 %v3265
        %3418 = vmatpush.msra.mxu0 %v3264
        %3419 = vmatpush.msra.mxu0 %v3263
        %3420 = vmatpush.msra.mxu0 %v3262
        %3421 = vmatpush.msra.mxu0 %v3261
        %3422 = vmatmul.f32.gmra.mxu0 %v2223
        %v3423 = vpop.f32.mrf.mxu0
        %v3424 = vadd.f32 %v3311, %v3423
        %3425 = vmatmul.f32.gmra.mxu0 %v2225
        %v3426 = vpop.f32.mrf.mxu0
        %v3427 = vadd.f32 %v3314, %v3426
        %3428 = vmatmul.f32.gmra.mxu0 %v2228
        %v3429 = vpop.f32.mrf.mxu0
        %v3430 = vadd.f32 %v3317, %v3429
        %3431 = vmatmul.f32.gmra.mxu0 %v2230
        %v3432 = vpop.f32.mrf.mxu0
        %v3433 = vadd.f32 %v3320, %v3432
        %3434 = vmatmul.f32.gmra.mxu0 %v2233
        %v3435 = vpop.f32.mrf.mxu0
        %v3436 = vadd.f32 %v3323, %v3435
        %3437 = vmatmul.f32.gmra.mxu0 %v2235
        %v3438 = vpop.f32.mrf.mxu0
        %v3439 = vadd.f32 %v3326, %v3438
        %3440 = vmatmul.f32.gmra.mxu0 %v2238
        %v3441 = vpop.f32.mrf.mxu0
        %v3442 = vadd.f32 %v3329, %v3441
        %3443 = vmatmul.f32.gmra.mxu0 %v2240
        %v3444 = vpop.f32.mrf.mxu0
        %v3445 = vadd.f32 %v3332, %v3444
        %3446 = vmatmul.f32.gmra.mxu0 %v2243
        %v3447 = vpop.f32.mrf.mxu0
        %v3448 = vadd.f32 %v3335, %v3447
        %3449 = vmatmul.f32.gmra.mxu0 %v2245
        %v3450 = vpop.f32.mrf.mxu0
        %v3451 = vadd.f32 %v3338, %v3450
        %3452 = vmatmul.f32.gmra.mxu0 %v2248
        %v3453 = vpop.f32.mrf.mxu0
        %v3454 = vadd.f32 %v3341, %v3453
        %3455 = vmatmul.f32.gmra.mxu0 %v2250
        %v3456 = vpop.f32.mrf.mxu0
        %v3457 = vadd.f32 %v3344, %v3456
        %3458 = vmatmul.f32.gmra.mxu0 %v2253
        %v3459 = vpop.f32.mrf.mxu0
        %v3460 = vadd.f32 %v3347, %v3459
        %3461 = vmatmul.f32.gmra.mxu0 %v2255
        %v3462 = vpop.f32.mrf.mxu0
        %v3463 = vadd.f32 %v3350, %v3462
        %3464 = vmatmul.f32.gmra.mxu0 %v2258
        %v3465 = vpop.f32.mrf.mxu0
        %v3466 = vadd.f32 %v3353, %v3465
        %3467 = vmatmul.f32.gmra.mxu0 %v2260
        %v3468 = vpop.f32.mrf.mxu0
        %v3469 = vadd.f32 %v3356, %v3468
        %3470 = vmatmul.f32.gmra.mxu0 %v2263
        %v3471 = vpop.f32.mrf.mxu0
        %v3472 = vadd.f32 %v3359, %v3471
        %3473 = vmatmul.f32.gmra.mxu0 %v2265
        %v3474 = vpop.f32.mrf.mxu0
        %v3475 = vadd.f32 %v3362, %v3474
        %3476 = vmatmul.f32.gmra.mxu0 %v2268
        %v3477 = vpop.f32.mrf.mxu0
        %v3478 = vadd.f32 %v3365, %v3477
        %3479 = vmatmul.f32.gmra.mxu0 %v2270
        %v3480 = vpop.f32.mrf.mxu0
        %v3481 = vadd.f32 %v3368, %v3480
        %3482 = vmatmul.f32.gmra.mxu0 %v2273
        %v3483 = vpop.f32.mrf.mxu0
        %v3484 = vadd.f32 %v3371, %v3483
        %3485 = vmatmul.f32.gmra.mxu0 %v2275
        %v3486 = vpop.f32.mrf.mxu0
        %v3487 = vadd.f32 %v3374, %v3486
        %3488 = vmatmul.f32.gmra.mxu0 %v2278
        %v3489 = vpop.f32.mrf.mxu0
        %v3490 = vadd.f32 %v3377, %v3489
        %3491 = vmatmul.f32.gmra.mxu0 %v2280
        %v3492 = vpop.f32.mrf.mxu0
        %v3493 = vadd.f32 %v3380, %v3492
        %3494 = vmatmul.f32.gmra.mxu0 %v2283
        %v3495 = vpop.f32.mrf.mxu0
        %v3496 = vadd.f32 %v3383, %v3495
        %3497 = vmatmul.f32.gmra.mxu0 %v2285
        %v3498 = vpop.f32.mrf.mxu0
        %v3499 = vadd.f32 %v3386, %v3498
        %3500 = vmatmul.f32.gmra.mxu0 %v2288
        %v3501 = vpop.f32.mrf.mxu0
        %v3502 = vadd.f32 %v3389, %v3501
        %3503 = vmatmul.f32.gmra.mxu0 %v2290
        %v3504 = vpop.f32.mrf.mxu0
        %v3505 = vadd.f32 %v3392, %v3504
        %3506 = vmatmul.f32.gmra.mxu0 %v2488
        %v3507 = vpop.f32.mrf.mxu0
        %v3508 = vadd.f32 %v3395, %v3507
        %3509 = vmatmul.f32.gmra.mxu0 %v2490
        %v3510 = vpop.f32.mrf.mxu0
        %v3511 = vadd.f32 %v3398, %v3510
        %3512 = vmatmul.f32.gmra.mxu0 %v3232
        %v3513 = vpop.f32.mrf.mxu0
        %v3514 = vadd.f32 %v3401, %v3513
        %3515 = vmatmul.f32.gmra.mxu0 %v3234
        %v3516 = vpop.f32.mrf.mxu0
        %v3517 = vadd.f32 %v3404, %v3516
        %3518 = vdwg.mxu0
        %3519 = vmatpush.msra.mxu0 %v3292
        %3520 = vmatpush.msra.mxu0 %v3291
        %3521 = vmatpush.msra.mxu0 %v3290
        %3522 = vmatpush.msra.mxu0 %v3289
        %3523 = vmatpush.msra.mxu0 %v3288
        %3524 = vmatpush.msra.mxu0 %v3287
        %3525 = vmatpush.msra.mxu0 %v3286
        %3526 = vmatpush.msra.mxu0 %v3285
        %3527 = vmatpush.msra.mxu0 %v3284
        %3528 = vmatpush.msra.mxu0 %v3283
        %3529 = vmatpush.msra.mxu0 %v3282
        %3530 = vmatpush.msra.mxu0 %v3281
        %3531 = vmatpush.msra.mxu0 %v3280
        %3532 = vmatpush.msra.mxu0 %v3279
        %3533 = vmatpush.msra.mxu0 %v3278
        %3534 = vmatpush.msra.mxu0 %v3277
        %3535 = vmatmul.f32.gmra.mxu0 %v2335
        %v3536 = vpop.f32.mrf.mxu0
        %v3537 = vadd.f32 %v3424, %v3536
        %3538 = vmatmul.f32.gmra.mxu0 %v2337
        %v3539 = vpop.f32.mrf.mxu0
        %v3540 = vadd.f32 %v3427, %v3539
        %3541 = vmatmul.f32.gmra.mxu0 %v2340
        %v3542 = vpop.f32.mrf.mxu0
        %v3543 = vadd.f32 %v3430, %v3542
        %3544 = vmatmul.f32.gmra.mxu0 %v2342
        %v3545 = vpop.f32.mrf.mxu0
        %v3546 = vadd.f32 %v3433, %v3545
        %3547 = vmatmul.f32.gmra.mxu0 %v2345
        %v3548 = vpop.f32.mrf.mxu0
        %v3549 = vadd.f32 %v3436, %v3548
        %3550 = vmatmul.f32.gmra.mxu0 %v2347
        %v3551 = vpop.f32.mrf.mxu0
        %v3552 = vadd.f32 %v3439, %v3551
        %3553 = vmatmul.f32.gmra.mxu0 %v2350
        %v3554 = vpop.f32.mrf.mxu0
        %v3555 = vadd.f32 %v3442, %v3554
        %3556 = vmatmul.f32.gmra.mxu0 %v2352
        %v3557 = vpop.f32.mrf.mxu0
        %v3558 = vadd.f32 %v3445, %v3557
        %3559 = vmatmul.f32.gmra.mxu0 %v2355
        %v3560 = vpop.f32.mrf.mxu0
        %v3561 = vadd.f32 %v3448, %v3560
        %3562 = vmatmul.f32.gmra.mxu0 %v2357
        %v3563 = vpop.f32.mrf.mxu0
        %v3564 = vadd.f32 %v3451, %v3563
        %3565 = vmatmul.f32.gmra.mxu0 %v2360
        %v3566 = vpop.f32.mrf.mxu0
        %v3567 = vadd.f32 %v3454, %v3566
        %3568 = vmatmul.f32.gmra.mxu0 %v2362
        %v3569 = vpop.f32.mrf.mxu0
        %v3570 = vadd.f32 %v3457, %v3569
        %3571 = vmatmul.f32.gmra.mxu0 %v2365
        %v3572 = vpop.f32.mrf.mxu0
        %v3573 = vadd.f32 %v3460, %v3572
        %3574 = vmatmul.f32.gmra.mxu0 %v2367
        %v3575 = vpop.f32.mrf.mxu0
        %v3576 = vadd.f32 %v3463, %v3575
        %3577 = vmatmul.f32.gmra.mxu0 %v2370
        %v3578 = vpop.f32.mrf.mxu0
        %v3579 = vadd.f32 %v3466, %v3578
        %3580 = vmatmul.f32.gmra.mxu0 %v2372
        %v3581 = vpop.f32.mrf.mxu0
        %v3582 = vadd.f32 %v3469, %v3581
        %3583 = vmatmul.f32.gmra.mxu0 %v2375
        %v3584 = vpop.f32.mrf.mxu0
        %v3585 = vadd.f32 %v3472, %v3584
        %3586 = vmatmul.f32.gmra.mxu0 %v2377
        %v3587 = vpop.f32.mrf.mxu0
        %v3588 = vadd.f32 %v3475, %v3587
        %3589 = vmatmul.f32.gmra.mxu0 %v2380
        %v3590 = vpop.f32.mrf.mxu0
        %v3591 = vadd.f32 %v3478, %v3590
        %3592 = vmatmul.f32.gmra.mxu0 %v2382
        %v3593 = vpop.f32.mrf.mxu0
        %v3594 = vadd.f32 %v3481, %v3593
        %3595 = vmatmul.f32.gmra.mxu0 %v2385
        %v3596 = vpop.f32.mrf.mxu0
        %v3597 = vadd.f32 %v3484, %v3596
        %3598 = vmatmul.f32.gmra.mxu0 %v2387
        %v3599 = vpop.f32.mrf.mxu0
        %v3600 = vadd.f32 %v3487, %v3599
        %3601 = vmatmul.f32.gmra.mxu0 %v2390
        %v3602 = vpop.f32.mrf.mxu0
        %v3603 = vadd.f32 %v3490, %v3602
        %3604 = vmatmul.f32.gmra.mxu0 %v2392
        %v3605 = vpop.f32.mrf.mxu0
        %v3606 = vadd.f32 %v3493, %v3605
        %3607 = vmatmul.f32.gmra.mxu0 %v2395
        %v3608 = vpop.f32.mrf.mxu0
        %v3609 = vadd.f32 %v3496, %v3608
        %3610 = vmatmul.f32.gmra.mxu0 %v2397
        %v3611 = vpop.f32.mrf.mxu0
        %v3612 = vadd.f32 %v3499, %v3611
        %3613 = vmatmul.f32.gmra.mxu0 %v2400
        %v3614 = vpop.f32.mrf.mxu0
        %v3615 = vadd.f32 %v3502, %v3614
        %3616 = vmatmul.f32.gmra.mxu0 %v2402
        %v3617 = vpop.f32.mrf.mxu0
        %v3618 = vadd.f32 %v3505, %v3617
        %3619 = vmatmul.f32.gmra.mxu0 %v2495
        %v3620 = vpop.f32.mrf.mxu0
        %v3621 = vadd.f32 %v3508, %v3620
        %3622 = vmatmul.f32.gmra.mxu0 %v2497
        %v3623 = vpop.f32.mrf.mxu0
        %v3624 = vadd.f32 %v3511, %v3623
        %3625 = vmatmul.f32.gmra.mxu0 %v3239
        %v3626 = vpop.f32.mrf.mxu0
        %v3627 = vadd.f32 %v3514, %v3626
        %3628 = vmatmul.f32.gmra.mxu0 %v3241
        %v3629 = vpop.f32.mrf.mxu0
        %v3630 = vadd.f32 %v3517, %v3629
        %3631 = vdwg.mxu0
        %v3632 = vadd.f32 %v3132, %v3537
        %v3633 = vadd.f32 %v3135, %v3540
        %v3634 = vadd.f32 %v3138, %v3543
        %v3635 = vadd.f32 %v3141, %v3546
        %v3636 = vadd.f32 %v3144, %v3549
        %v3637 = vadd.f32 %v3147, %v3552
        %v3638 = vadd.f32 %v3150, %v3555
        %v3639 = vadd.f32 %v3153, %v3558
        %v3640 = vadd.f32 %v3156, %v3561
        %v3641 = vadd.f32 %v3159, %v3564
        %v3642 = vadd.f32 %v3162, %v3567
        %v3643 = vadd.f32 %v3165, %v3570
        %v3644 = vadd.f32 %v3168, %v3573
        %v3645 = vadd.f32 %v3171, %v3576
        %v3646 = vadd.f32 %v3174, %v3579
        %v3647 = vadd.f32 %v3177, %v3582
        %v3648 = vadd.f32 %v3180, %v3585
        %v3649 = vadd.f32 %v3183, %v3588
        %v3650 = vadd.f32 %v3186, %v3591
        %v3651 = vadd.f32 %v3189, %v3594
        %v3652 = vadd.f32 %v3192, %v3597
        %v3653 = vadd.f32 %v3195, %v3600
        %v3654 = vadd.f32 %v3198, %v3603
        %v3655 = vadd.f32 %v3201, %v3606
        %v3656 = vadd.f32 %v3204, %v3609
        %v3657 = vadd.f32 %v3207, %v3612
        %v3658 = vadd.f32 %v3210, %v3615
        %v3659 = vadd.f32 %v3213, %v3618
        %v3660 = vadd.f32 %v3216, %v3621
        %v3661 = vadd.f32 %v3219, %v3624
        %v3662 = vadd.f32 %v3222, %v3627
        %v3663 = vadd.f32 %v3225, %v3630
        %v3664 = vld [vmem:[%s4] sm:$0x1]
        %v3666 = vperm.slane %v3664, 0
        %v3668 = vadd.f32 %v3632, %v3666
        %v3669 = vadd.f32 %v3633, %v3666
        %v3670 = vadd.f32 %v3634, %v3666
        %v3671 = vadd.f32 %v3635, %v3666
        %v3672 = vadd.f32 %v3636, %v3666
        %v3673 = vadd.f32 %v3637, %v3666
        %v3674 = vadd.f32 %v3638, %v3666
        %v3675 = vadd.f32 %v3639, %v3666
        %v3676 = vadd.f32 %v3640, %v3666
        %v3677 = vadd.f32 %v3641, %v3666
        %v3678 = vadd.f32 %v3642, %v3666
        %v3679 = vadd.f32 %v3643, %v3666
        %v3680 = vadd.f32 %v3644, %v3666
        %v3681 = vadd.f32 %v3645, %v3666
        %v3682 = vadd.f32 %v3646, %v3666
        %v3683 = vadd.f32 %v3647, %v3666
        %v3684 = vadd.f32 %v3648, %v3666
        %v3685 = vadd.f32 %v3649, %v3666
        %v3686 = vadd.f32 %v3650, %v3666
        %v3687 = vadd.f32 %v3651, %v3666
        %v3688 = vadd.f32 %v3652, %v3666
        %v3689 = vadd.f32 %v3653, %v3666
        %v3690 = vadd.f32 %v3654, %v3666
        %v3691 = vadd.f32 %v3655, %v3666
        %v3692 = vadd.f32 %v3656, %v3666
        %v3693 = vadd.f32 %v3657, %v3666
        %v3694 = vadd.f32 %v3658, %v3666
        %v3695 = vadd.f32 %v3659, %v3666
        %v3696 = vadd.f32 %v3660, %v3666
        %v3697 = vadd.f32 %v3661, %v3666
        %v3698 = vadd.f32 %v3662, %v3666
        %v3699 = vadd.f32 %v3663, %v3666
        %v3700 = vld [vmem:[%s240] sm:$0xff]
        %v3701 = vld [vmem:[%s240 + $0x8] sm:$0xff]
        %v3702 = vld [vmem:[%s240 + $0x10] sm:$0xff]
        %v3703 = vld [vmem:[%s240 + $0x18] sm:$0xff]
        %v3704 = vld [vmem:[%s240 + $0x20] sm:$0xff]
        %v3705 = vld [vmem:[%s240 + $0x28] sm:$0xff]
        %v3706 = vld [vmem:[%s240 + $0x30] sm:$0xff]
        %v3707 = vld [vmem:[%s240 + $0x38] sm:$0xff]
        %v3708 = vld [vmem:[%s240 + $0x40] sm:$0xff]
        %v3709 = vld [vmem:[%s240 + $0x48] sm:$0xff]
        %v3710 = vld [vmem:[%s240 + $0x50] sm:$0xff]
        %v3711 = vld [vmem:[%s240 + $0x58] sm:$0xff]
        %v3712 = vld [vmem:[%s240 + $0x60] sm:$0xff]
        %v3713 = vld [vmem:[%s240 + $0x68] sm:$0xff]
        %v3714 = vld [vmem:[%s240 + $0x70] sm:$0xff]
        %v3715 = vld [vmem:[%s240 + $0x78] sm:$0xff]
        %v3716 = vld [vmem:[%s240 + $0x80] sm:$0xff]
        %v3717 = vld [vmem:[%s240 + $0x88] sm:$0xff]
        %v3718 = vld [vmem:[%s240 + $0x90] sm:$0xff]
        %v3719 = vld [vmem:[%s240 + $0x98] sm:$0xff]
        %v3720 = vld [vmem:[%s240 + $0xa0] sm:$0xff]
        %v3721 = vld [vmem:[%s240 + $0xa8] sm:$0xff]
        %v3722 = vld [vmem:[%s240 + $0xb0] sm:$0xff]
        %v3723 = vld [vmem:[%s240 + $0xb8] sm:$0xff]
        %v3724 = vld [vmem:[%s240 + $0xc0] sm:$0xff]
        %v3725 = vld [vmem:[%s240 + $0xc8] sm:$0xff]
        %v3726 = vld [vmem:[%s240 + $0xd0] sm:$0xff]
        %v3727 = vld [vmem:[%s240 + $0xd8] sm:$0xff]
        %v3728 = vld [vmem:[%s240 + $0xe0] sm:$0xff]
        %v3729 = vld [vmem:[%s240 + $0xe8] sm:$0xff]
        %v3730 = vld [vmem:[%s240 + $0xf0] sm:$0xff]
        %v3731 = vld [vmem:[%s240 + $0xf8] sm:$0xff]
        %v3732 = vadd.f32 %v3668, %v3700
        %v3733 = vadd.f32 %v3669, %v3701
        %v3734 = vadd.f32 %v3670, %v3702
        %v3735 = vadd.f32 %v3671, %v3703
        %v3736 = vadd.f32 %v3672, %v3704
        %v3737 = vadd.f32 %v3673, %v3705
        %v3738 = vadd.f32 %v3674, %v3706
        %v3739 = vadd.f32 %v3675, %v3707
        %v3740 = vadd.f32 %v3676, %v3708
        %v3741 = vadd.f32 %v3677, %v3709
        %v3742 = vadd.f32 %v3678, %v3710
        %v3743 = vadd.f32 %v3679, %v3711
        %v3744 = vadd.f32 %v3680, %v3712
        %v3745 = vadd.f32 %v3681, %v3713
        %v3746 = vadd.f32 %v3682, %v3714
        %v3747 = vadd.f32 %v3683, %v3715
        %v3748 = vadd.f32 %v3684, %v3716
        %v3749 = vadd.f32 %v3685, %v3717
        %v3750 = vadd.f32 %v3686, %v3718
        %v3751 = vadd.f32 %v3687, %v3719
        %v3752 = vadd.f32 %v3688, %v3720
        %v3753 = vadd.f32 %v3689, %v3721
        %v3754 = vadd.f32 %v3690, %v3722
        %v3755 = vadd.f32 %v3691, %v3723
        %v3756 = vadd.f32 %v3692, %v3724
        %v3757 = vadd.f32 %v3693, %v3725
        %v3758 = vadd.f32 %v3694, %v3726
        %v3759 = vadd.f32 %v3695, %v3727
        %v3760 = vadd.f32 %v3696, %v3728
        %v3761 = vadd.f32 %v3697, %v3729
        %v3762 = vadd.f32 %v3698, %v3730
        %v3763 = vadd.f32 %v3699, %v3731
        %v3764 = vmax.f32 %v3732, 0.0
        %v3765 = vmax.f32 %v3733, 0.0
        %v3766 = vmax.f32 %v3734, 0.0
        %v3767 = vmax.f32 %v3735, 0.0
        %v3768 = vmax.f32 %v3736, 0.0
        %v3769 = vmax.f32 %v3737, 0.0
        %v3770 = vmax.f32 %v3738, 0.0
        %v3771 = vmax.f32 %v3739, 0.0
        %v3772 = vmax.f32 %v3740, 0.0
        %v3773 = vmax.f32 %v3741, 0.0
        %v3774 = vmax.f32 %v3742, 0.0
        %v3775 = vmax.f32 %v3743, 0.0
        %v3776 = vmax.f32 %v3744, 0.0
        %v3777 = vmax.f32 %v3745, 0.0
        %v3778 = vmax.f32 %v3746, 0.0
        %v3779 = vmax.f32 %v3747, 0.0
        %v3780 = vmax.f32 %v3748, 0.0
        %v3781 = vmax.f32 %v3749, 0.0
        %v3782 = vmax.f32 %v3750, 0.0
        %v3783 = vmax.f32 %v3751, 0.0
        %v3784 = vmax.f32 %v3752, 0.0
        %v3785 = vmax.f32 %v3753, 0.0
        %v3786 = vmax.f32 %v3754, 0.0
        %v3787 = vmax.f32 %v3755, 0.0
        %v3788 = vmax.f32 %v3756, 0.0
        %v3789 = vmax.f32 %v3757, 0.0
        %v3790 = vmax.f32 %v3758, 0.0
        %v3791 = vmax.f32 %v3759, 0.0
        %v3792 = vmax.f32 %v3760, 0.0
        %v3793 = vmax.f32 %v3761, 0.0
        %v3794 = vmax.f32 %v3762, 0.0
        %v3795 = vmax.f32 %v3763, 0.0
        %3796 = vst [vmem:[%s277] sm:$0xff] %v3764
        %3797 = vst [vmem:[%s277 + $0x8] sm:$0xff] %v3765
        %3798 = vst [vmem:[%s277 + $0x10] sm:$0xff] %v3766
        %3799 = vst [vmem:[%s277 + $0x18] sm:$0xff] %v3767
        %3800 = vst [vmem:[%s277 + $0x20] sm:$0xff] %v3768
        %3801 = vst [vmem:[%s277 + $0x28] sm:$0xff] %v3769
        %3802 = vst [vmem:[%s277 + $0x30] sm:$0xff] %v3770
        %3803 = vst [vmem:[%s277 + $0x38] sm:$0xff] %v3771
        %3804 = vst [vmem:[%s277 + $0x40] sm:$0xff] %v3772
        %3805 = vst [vmem:[%s277 + $0x48] sm:$0xff] %v3773
        %3806 = vst [vmem:[%s277 + $0x50] sm:$0xff] %v3774
        %3807 = vst [vmem:[%s277 + $0x58] sm:$0xff] %v3775
        %3808 = vst [vmem:[%s277 + $0x60] sm:$0xff] %v3776
        %3809 = vst [vmem:[%s277 + $0x68] sm:$0xff] %v3777
        %3810 = vst [vmem:[%s277 + $0x70] sm:$0xff] %v3778
        %3811 = vst [vmem:[%s277 + $0x78] sm:$0xff] %v3779
        %3812 = vst [vmem:[%s277 + $0x80] sm:$0xff] %v3780
        %3813 = vst [vmem:[%s277 + $0x88] sm:$0xff] %v3781
        %3814 = vst [vmem:[%s277 + $0x90] sm:$0xff] %v3782
        %3815 = vst [vmem:[%s277 + $0x98] sm:$0xff] %v3783
        %3816 = vst [vmem:[%s277 + $0xa0] sm:$0xff] %v3784
        %3817 = vst [vmem:[%s277 + $0xa8] sm:$0xff] %v3785
        %3818 = vst [vmem:[%s277 + $0xb0] sm:$0xff] %v3786
        %3819 = vst [vmem:[%s277 + $0xb8] sm:$0xff] %v3787
        %3820 = vst [vmem:[%s277 + $0xc0] sm:$0xff] %v3788
        %3821 = vst [vmem:[%s277 + $0xc8] sm:$0xff] %v3789
        %3822 = vst [vmem:[%s277 + $0xd0] sm:$0xff] %v3790
        %3823 = vst [vmem:[%s277 + $0xd8] sm:$0xff] %v3791
        %3824 = vst [vmem:[%s277 + $0xe0] sm:$0xff] %v3792
        %3825 = vst [vmem:[%s277 + $0xe8] sm:$0xff] %v3793
        %3826 = vst [vmem:[%s277 + $0xf0] sm:$0xff] %v3794
        %3827 = vst [vmem:[%s277 + $0xf8] sm:$0xff] %v3795
        %s3828 = sand.u32 %s141, 1
        %s3829 = scalar_lea.sflag [#allocation6], %s3828
        %s3830 = sand.u32 %s141, 1
        %s3831 = smul.addr %s3830, 256
        %s3832 = scalar_lea.vmem [#allocation10], %s3831
        // Predicated region
        $region53: #{tpu_custom_call.1} parent=39 // pred_check
          %p3833 = pneg %p151
        $region54: #{tpu_custom_call.1} parent=39 // pred_check_branch
          %3835 = sbr.rel (%p3833) target = $region56
        $region55: #{tpu_custom_call.1} parent=39 // pred_region
          %3837 = vsyncadd %s3829, 0
          %s3838 = smul.addr %s23, 32
          %s3839 = smul.addr %s3838, 8
          %s3840 = scalar_lea.hbm %s5, %s3839
          %s3841 = sshll.u32 %s3832, 4
          %s3842 = int_to_ptr.vmem [resolvable:$true] %s3841
          %s3843 = sshll.u32 %s3840, 4
          %s3844 = int_to_ptr.hbm [resolvable:$true] %s3843
          %3849 = dma.vmem_to_hbm [thread:$0]  %s3842, 4096, %s3844, %s3829, 128, 128, 8
        $region56: #{tpu_custom_call.1} parent=39 // pred_fallthru
          _
      $region40: #{tpu_custom_call.1} parent=5 // pred_fallthru
        _
      %p3850 = scmp.le.s32.totalorder 2, %s18
      // Predicated region
      $region57: #{tpu_custom_call.1} parent=5 // pred_check
        %p3851 = pneg %p3850
      $region58: #{tpu_custom_call.1} parent=5 // pred_check_branch
        %3853 = sbr.rel (%p3851) target = $region60
      $region59: #{tpu_custom_call.1} parent=5 // pred_region
        %s3854 = ssub.s32 %s18, 2
        // Predicated region
        $region61: #{tpu_custom_call.1} parent=59 // pred_check
          %p3855 = pneg %p157
        $region62: #{tpu_custom_call.1} parent=59 // pred_check_branch
          %3857 = sbr.rel (%p3855) target = $region64
        $region63: #{tpu_custom_call.1} parent=59 // pred_region
          %s3858 = sand.u32 %s142, 1
          %s3859 = scalar_lea.sflag [#allocation6], %s3858
          %s3860 = sand.u32 %s142, 1
          %s3861 = smul.addr %s3860, 256
          %s3862 = scalar_lea.vmem [#allocation10], %s3861
          %3864 = dma.done %s3859, 4096
        $region64: #{tpu_custom_call.1} parent=59 // pred_fallthru
          _
      $region60: #{tpu_custom_call.1} parent=5 // pred_fallthru
        _
    $region6: #{tpu_custom_call.1} parent=1 // loop_footer
      %s22 = sadd.s32 1, %s18
    $region7: #{tpu_custom_call.1} parent=1 // loop_footer_branch
      %17 = sbr.rel target = $region3
    $region8: #{tpu_custom_call.1} parent=1 // loop_exit
      _
    %3865 = vsyncpa [#allocation5], 1
    %s3866 = scalar_lea.sflag [#allocation5], 1
    %3867 = vsyncpa %s3866, 1
    %3868 = vsyncpa [#allocation8], 1
    %3869 = vsyncpa [#allocation6], 1
    %s3870 = scalar_lea.sflag [#allocation6], 1
    %3871 = vsyncpa %s3870, 1

</llo_original>
